<compile_context>
chip_gen: v7x
topology: tpu7x:2x2x1
jax: 0.10.0
libtpu: 0.0.40
codegen_flags: <defaults>
</compile_context>

<pallas_src>
import jax
import jax.numpy as jnp
from jax import lax
from jax.experimental import pallas as pl
from jax.experimental.pallas import tpu as pltpu

_BIAS_ROWS = 8  # bias padded to one sublane tile so every slab sub-slice is 8-aligned


# ----------------------------------------------------------------------------
# Fused Pallas kernel: 4 stacked LSTM layers + Linear head, one invocation.
# ----------------------------------------------------------------------------
def _fused_lstm_fc_kernel(src_ref, slab_ref, fc_ref, out_ref, act_scr, gates_scr):
    """src_ref   : (S, input_size) f32   (the single surviving batch row)
       slab_ref  : (L*(2H+8), 4H)  f32   per layer block: [Wx(pad->H); Wh; bias(pad->8)]
       fc_ref    : (H+1, horizon)  f32   [fc_w_t ; fc_b]
       out_ref   : (S, horizon)    f32
       act_scr   : (S, H)   VMEM scratch — hidden states of the current layer
       gates_scr : (S, 4H)  VMEM scratch — hoisted per-layer input projection
    """
    S, H = act_scr.shape
    G = 4 * H
    input_size = src_ref.shape[1]
    layer_rows = 2 * H + _BIAS_ROWS
    num_layers = slab_ref.shape[0] // layer_rows

    for l in range(num_layers):
        base = l * layer_rows                                   # static python int
        wh = slab_ref[base + H:base + 2 * H, :]                 # (H, 4H) — hoisted
        b = slab_ref[base + 2 * H:base + 2 * H + 1, :]          # (1, 4H)

        # ---- hoisted input projection (no recurrent dependency) --------------
        if l == 0:
            if input_size == 1:
                # (S,1) x (1,4H): VPU broadcast multiply, no MXU push.
                x_b = jnp.broadcast_to(src_ref[...], (S, G))
                w_b = jnp.broadcast_to(slab_ref[base:base + 1, :], (S, G))
                gates_pre = x_b * w_b
            else:
                gates_pre = jnp.dot(src_ref[...],
                                    slab_ref[base:base + input_size, :],
                                    preferred_element_type=jnp.float32)
        else:
            gates_pre = jnp.dot(act_scr[...], slab_ref[base:base + H, :],
                                preferred_element_type=jnp.float32)
        gates_scr[...] = gates_pre + jnp.broadcast_to(b, (S, G))

        # ---- serial recurrence: exactly ONE MXU dot per step ------------------
        def step(t, carry):
            h, c = carry
            g = gates_scr[pl.ds(t, 1), :] + jnp.dot(
                h, wh, preferred_element_type=jnp.float32)       # (1, 4H)
            sig = jax.nn.sigmoid(g)                              # one full-vreg EUP op
            i_g = sig[:, 0 * H:1 * H]
            f_g = sig[:, 1 * H:2 * H]
            o_g = sig[:, 3 * H:4 * H]
            g_g = jnp.tanh(g[:, 2 * H:3 * H])
            c_new = f_g * c + i_g * g_g
            h_new = o_g * jnp.tanh(c_new)
            act_scr[pl.ds(t, 1), :] = h_new                      # feeds next layer / FC
            return (h_new, c_new)

        zeros = jnp.zeros((1, H), jnp.float32)
        lax.fori_loop(0, S, step, (zeros, zeros), unroll=True)

    # ---- Linear head: one matmul + one store, after all layers ---------------
    fc_w = fc_ref[0:H, :]                                        # (H, horizon)
    fc_b = fc_ref[H:H + 1, :]                                    # (1, horizon)
    y = jnp.dot(act_scr[...], fc_w, preferred_element_type=jnp.float32)
    out_ref[...] = (y + jnp.broadcast_to(fc_b, y.shape)).astype(out_ref.dtype)


# ----------------------------------------------------------------------------
# Wrapper
# ----------------------------------------------------------------------------
@jax.jit
def lstm_forward(slab, fc_slab, src):
    """slab: packed LSTM params, fc_slab: packed head, src: (S, B, input_size).
    Returns (S, 1, horizon), identical to `fc(lstm(src)[0][:, -1:])`."""
    S, B, input_size = src.shape
    H = fc_slab.shape[0] - 1
    horizon = fc_slab.shape[1]

    # PyTorch: out[:, -1:] keeps only the LAST BATCH row (nn.LSTM built without
    # batch_first). Batch rows are independent (zero initial state), so only
    # that row is fed to the kernel — bit-identical, half the work.
    src_last = src[:, -1, :]                                     # (S, input_size)

    vmem = pl.BlockSpec(memory_space=pltpu.MemorySpace.VMEM)
    out_flat = pl.pallas_call(
        _fused_lstm_fc_kernel,
        out_shape=jax.ShapeDtypeStruct((S, horizon), jnp.float32),
        in_specs=[vmem, vmem, vmem],
        out_specs=vmem,
        scratch_shapes=[pltpu.VMEM((S, H), jnp.float32),         # act_scr
                        pltpu.VMEM((S, 4 * H), jnp.float32)],    # gates_scr
    )(src_last, slab, fc_slab)

    return out_flat[:, None, :]                                  # (S, 1, horizon)


# ----------------------------------------------------------------------------
# Host-side parameter packing (one LSTM slab + one FC slab, 8-row aligned)
# ----------------------------------------------------------------------------
def pack_params(params, hidden_size):
    H = hidden_size
    blocks = []
    for (wx, wh, b) in params["lstm"]:            # wx (Din,4H), wh (H,4H), b (1,4H)
        din = wx.shape[0]
        assert din <= H, "input_size must be <= hidden_size for slab packing"
        wx_p = jnp.zeros((H, 4 * H), jnp.float32).at[:din].set(wx)
        b_p = jnp.zeros((_BIAS_ROWS, 4 * H), jnp.float32).at[0:1].set(b)
        blocks += [wx_p, wh, b_p]
    slab = jnp.concatenate(blocks, axis=0)                        # (L*(2H+8), 4H)
    fc_slab = jnp.concatenate([params["fc_w_t"], params["fc_b"]], axis=0)  # (H+1, horizon)
    return slab, fc_slab


# ----------------------------------------------------------------------------
# Deterministic parameter init (matches nn.LSTM / nn.Linear shapes)
# ----------------------------------------------------------------------------
def init_params(key, input_size, hidden_size, horizon, num_layers):
    H = hidden_size
    bound = 1.0 / jnp.sqrt(H)
    layers = []
    k = key
    for layer in range(num_layers):
        d_in = input_size if layer == 0 else H
        k, k1, k2, k3, k4 = jax.random.split(k, 5)
        w_ih = jax.random.uniform(k1, (4 * H, d_in), jnp.float32, -bound, bound)
        w_hh = jax.random.uniform(k2, (4 * H, H), jnp.float32, -bound, bound)
        b_ih = jax.random.uniform(k3, (4 * H,), jnp.float32, -bound, bound)
        b_hh = jax.random.uniform(k4, (4 * H,), jnp.float32, -bound, bound)
        layers.append((w_ih.T, w_hh.T, (b_ih + b_hh)[None, :]))
    k, kw, kb = jax.random.split(k, 3)
    fcb = 1.0 / jnp.sqrt(H)
    fc_w = jax.random.uniform(kw, (horizon, H), jnp.float32, -fcb, fcb)
    fc_b = jax.random.uniform(kb, (horizon,), jnp.float32, -fcb, fcb)
    return {"lstm": layers, "fc_w_t": fc_w.T, "fc_b": fc_b[None, :]}


# ----------------------------------------------------------------------------
# Pure-JAX reference (lax.scan) for correctness check
# ----------------------------------------------------------------------------
def reference_forward(params, src):
    out = src
    for (wx, wh, b) in params["lstm"]:
        H = wh.shape[0]
        B = out.shape[1]

        def step(carry, x_t):
            h, c = carry
            gates = x_t @ wx + h @ wh + b[0]
            i_g = jax.nn.sigmoid(gates[:, 0 * H:1 * H])
            f_g = jax.nn.sigmoid(gates[:, 1 * H:2 * H])
            g_g = jnp.tanh(gates[:, 2 * H:3 * H])
            o_g = jax.nn.sigmoid(gates[:, 3 * H:4 * H])
            c_new = f_g * c + i_g * g_g
            h_new = o_g * jnp.tanh(c_new)
            return (h_new, c_new), h_new

        init = (jnp.zeros((B, H), jnp.float32), jnp.zeros((B, H), jnp.float32))
        _, out = lax.scan(step, init, out)
    last = out[:, -1, :]
    y = last @ params["fc_w_t"] + params["fc_b"]
    return y[:, None, :]


# ----------------------------------------------------------------------------
if __name__ == "__main__":
    key = jax.random.PRNGKey(0)
    S, B, input_size = 8, 2, 1
    hidden_size, horizon, num_layers = 32, 1, 4

    params = init_params(key, input_size, hidden_size, horizon, num_layers)
    slab, fc_slab = pack_params(params, hidden_size)
    src = jax.random.normal(jax.random.fold_in(key, 7), (S, B, input_size),
                            dtype=jnp.float32)

    out = jax.block_until_ready(lstm_forward(slab, fc_slab, src))
    ref = reference_forward(params, src)

    assert out.shape == (S, 1, horizon), out.shape
    assert jnp.allclose(out, ref, atol=2e-4, rtol=2e-4), (
        f"max abs err {jnp.max(jnp.abs(out - ref))}")
    print("KERNEL_OK")
</pallas_src>

<mosaic_0001>
module attributes {stable_mosaic.version = 11 : i64} {
  func.func @_fused_lstm_fc_kernel(%arg0: memref<8x1xf32, #tpu.memory_space<vmem>>, %arg1: memref<288x128xf32, #tpu.memory_space<vmem>>, %arg2: memref<33x1xf32, #tpu.memory_space<vmem>>, %arg3: memref<8x1xf32, #tpu.memory_space<vmem>>, %arg4: memref<8x32xf32, #tpu.memory_space<vmem>>, %arg5: memref<8x128xf32, #tpu.memory_space<vmem>>) attributes {dimension_semantics = [], scalar_prefetch = 0 : i64, scratch_operands = 2 : i64, tpu.core_type = #tpu.core_type<tc>} {
    %c32 = arith.constant 32 : index
    %c0 = arith.constant 0 : index
    %0 = vector.load %arg1[%c32, %c0] : memref<288x128xf32, #tpu.memory_space<vmem>>, vector<32x128xf32>
    %c64 = arith.constant 64 : index
    %c0_0 = arith.constant 0 : index
    %1 = vector.load %arg1[%c64, %c0_0] : memref<288x128xf32, #tpu.memory_space<vmem>>, vector<1x128xf32>
    %c0_1 = arith.constant 0 : index
    %c0_2 = arith.constant 0 : index
    %2 = vector.load %arg0[%c0_1, %c0_2] : memref<8x1xf32, #tpu.memory_space<vmem>>, vector<8x1xf32>
    %3 = vector.shape_cast %2 : vector<8x1xf32> to vector<8x1xf32>
    %4 = vector.broadcast %3 : vector<8x1xf32> to vector<8x128xf32>
    %c0_3 = arith.constant 0 : index
    %c0_4 = arith.constant 0 : index
    %5 = vector.load %arg1[%c0_3, %c0_4] : memref<288x128xf32, #tpu.memory_space<vmem>>, vector<1x128xf32>
    %6 = vector.shape_cast %5 : vector<1x128xf32> to vector<1x128xf32>
    %7 = vector.broadcast %6 : vector<1x128xf32> to vector<8x128xf32>
    %8 = arith.mulf %4, %7 : vector<8x128xf32>
    %9 = vector.shape_cast %1 : vector<1x128xf32> to vector<1x128xf32>
    %10 = vector.broadcast %9 : vector<1x128xf32> to vector<8x128xf32>
    %11 = arith.addf %8, %10 : vector<8x128xf32>
    %c0_5 = arith.constant 0 : index
    %c0_6 = arith.constant 0 : index
    %12 = vector.load %arg5[%c0_5, %c0_6] : memref<8x128xf32, #tpu.memory_space<vmem>>, vector<8x128xf32>
    tpu.vector_store %arg5[%c0_5, %c0_6], %11 {strides = array<i32>} : memref<8x128xf32, #tpu.memory_space<vmem>>, vector<8x128xf32>,
    %cst = arith.constant 0.000000e+00 : f32
    %13 = vector.broadcast %cst : f32 to vector<1x32xf32>
    %c0_i32 = arith.constant 0 : i32
    %14 = arith.index_cast %c0_i32 : i32 to index
    %c0_7 = arith.constant 0 : index
    %15 = vector.load %arg5[%14, %c0_7] : memref<8x128xf32, #tpu.memory_space<vmem>>, vector<1x128xf32>
    %cst_8 = arith.constant dense<0.000000e+00> : vector<1x128xf32>
    %16 = tpu.matmul %13, %0, %cst_8 {dimension_numbers = #tpu.dot_dimension_numbers<[1], [0], [0], [1], [0, 0, 1, 1], [], []>} : vector<1x32xf32>, vector<32x128xf32>, vector<1x128xf32> -> vector<1x128xf32>
    %17 = arith.addf %15, %16 : vector<1x128xf32>
    %18 = arith.negf %17 : vector<1x128xf32>
    %19 = math.exp %18 : vector<1x128xf32>
    %cst_9 = arith.constant 1.000000e+00 : f32
    %20 = vector.broadcast %cst_9 : f32 to vector<1x128xf32>
    %21 = arith.addf %20, %19 : vector<1x128xf32>
    %22 = arith.divf %20, %21 : vector<1x128xf32>
    %23 = vector.extract_strided_slice %22 {offsets = [0, 0], sizes = [1, 32], strides = [1, 1]} : vector<1x128xf32> to vector<1x32xf32>
    %24 = vector.extract_strided_slice %22 {offsets = [0, 32], sizes = [1, 32], strides = [1, 1]} : vector<1x128xf32> to vector<1x32xf32>
    %25 = vector.extract_strided_slice %22 {offsets = [0, 96], sizes = [1, 32], strides = [1, 1]} : vector<1x128xf32> to vector<1x32xf32>
    %26 = vector.extract_strided_slice %17 {offsets = [0, 64], sizes = [1, 32], strides = [1, 1]} : vector<1x128xf32> to vector<1x32xf32>
    %27 = math.tanh %26 : vector<1x32xf32>
    %28 = arith.mulf %24, %13 : vector<1x32xf32>
    %29 = arith.mulf %23, %27 : vector<1x32xf32>
    %30 = arith.addf %28, %29 : vector<1x32xf32>
    %31 = math.tanh %30 : vector<1x32xf32>
    %32 = arith.mulf %25, %31 : vector<1x32xf32>
    %33 = arith.index_cast %c0_i32 : i32 to index
    %c0_10 = arith.constant 0 : index
    %34 = vector.load %arg4[%33, %c0_10] : memref<8x32xf32, #tpu.memory_space<vmem>>, vector<1x32xf32>
    tpu.vector_store %arg4[%33, %c0_10], %32 {strides = array<i32>} : memref<8x32xf32, #tpu.memory_space<vmem>>, vector<1x32xf32>,
    %c1_i32 = arith.constant 1 : i32
    %35 = arith.index_cast %c1_i32 : i32 to index
    %c0_11 = arith.constant 0 : index
    %36 = vector.load %arg5[%35, %c0_11] : memref<8x128xf32, #tpu.memory_space<vmem>>, vector<1x128xf32>
    %cst_12 = arith.constant dense<0.000000e+00> : vector<1x128xf32>
    %37 = tpu.matmul %32, %0, %cst_12 {dimension_numbers = #tpu.dot_dimension_numbers<[1], [0], [0], [1], [0, 0, 1, 1], [], []>} : vector<1x32xf32>, vector<32x128xf32>, vector<1x128xf32> -> vector<1x128xf32>
    %38 = arith.addf %36, %37 : vector<1x128xf32>
    %39 = arith.negf %38 : vector<1x128xf32>
    %40 = math.exp %39 : vector<1x128xf32>
    %cst_13 = arith.constant 1.000000e+00 : f32
    %41 = vector.broadcast %cst_13 : f32 to vector<1x128xf32>
    %42 = arith.addf %41, %40 : vector<1x128xf32>
    %43 = arith.divf %41, %42 : vector<1x128xf32>
    %44 = vector.extract_strided_slice %43 {offsets = [0, 0], sizes = [1, 32], strides = [1, 1]} : vector<1x128xf32> to vector<1x32xf32>
    %45 = vector.extract_strided_slice %43 {offsets = [0, 32], sizes = [1, 32], strides = [1, 1]} : vector<1x128xf32> to vector<1x32xf32>
    %46 = vector.extract_strided_slice %43 {offsets = [0, 96], sizes = [1, 32], strides = [1, 1]} : vector<1x128xf32> to vector<1x32xf32>
    %47 = vector.extract_strided_slice %38 {offsets = [0, 64], sizes = [1, 32], strides = [1, 1]} : vector<1x128xf32> to vector<1x32xf32>
    %48 = math.tanh %47 : vector<1x32xf32>
    %49 = arith.mulf %45, %30 : vector<1x32xf32>
    %50 = arith.mulf %44, %48 : vector<1x32xf32>
    %51 = arith.addf %49, %50 : vector<1x32xf32>
    %52 = math.tanh %51 : vector<1x32xf32>
    %53 = arith.mulf %46, %52 : vector<1x32xf32>
    %54 = arith.index_cast %c1_i32 : i32 to index
    %c0_14 = arith.constant 0 : index
    %55 = vector.load %arg4[%54, %c0_14] : memref<8x32xf32, #tpu.memory_space<vmem>>, vector<1x32xf32>
    tpu.vector_store %arg4[%54, %c0_14], %53 {strides = array<i32>} : memref<8x32xf32, #tpu.memory_space<vmem>>, vector<1x32xf32>,
    %c2_i32 = arith.constant 2 : i32
    %56 = arith.index_cast %c2_i32 : i32 to index
    %c0_15 = arith.constant 0 : index
    %57 = vector.load %arg5[%56, %c0_15] : memref<8x128xf32, #tpu.memory_space<vmem>>, vector<1x128xf32>
    %cst_16 = arith.constant dense<0.000000e+00> : vector<1x128xf32>
    %58 = tpu.matmul %53, %0, %cst_16 {dimension_numbers = #tpu.dot_dimension_numbers<[1], [0], [0], [1], [0, 0, 1, 1], [], []>} : vector<1x32xf32>, vector<32x128xf32>, vector<1x128xf32> -> vector<1x128xf32>
    %59 = arith.addf %57, %58 : vector<1x128xf32>
    %60 = arith.negf %59 : vector<1x128xf32>
    %61 = math.exp %60 : vector<1x128xf32>
    %cst_17 = arith.constant 1.000000e+00 : f32
    %62 = vector.broadcast %cst_17 : f32 to vector<1x128xf32>
    %63 = arith.addf %62, %61 : vector<1x128xf32>
    %64 = arith.divf %62, %63 : vector<1x128xf32>
    %65 = vector.extract_strided_slice %64 {offsets = [0, 0], sizes = [1, 32], strides = [1, 1]} : vector<1x128xf32> to vector<1x32xf32>
    %66 = vector.extract_strided_slice %64 {offsets = [0, 32], sizes = [1, 32], strides = [1, 1]} : vector<1x128xf32> to vector<1x32xf32>
    %67 = vector.extract_strided_slice %64 {offsets = [0, 96], sizes = [1, 32], strides = [1, 1]} : vector<1x128xf32> to vector<1x32xf32>
    %68 = vector.extract_strided_slice %59 {offsets = [0, 64], sizes = [1, 32], strides = [1, 1]} : vector<1x128xf32> to vector<1x32xf32>
    %69 = math.tanh %68 : vector<1x32xf32>
    %70 = arith.mulf %66, %51 : vector<1x32xf32>
    %71 = arith.mulf %65, %69 : vector<1x32xf32>
    %72 = arith.addf %70, %71 : vector<1x32xf32>
    %73 = math.tanh %72 : vector<1x32xf32>
    %74 = arith.mulf %67, %73 : vector<1x32xf32>
    %75 = arith.index_cast %c2_i32 : i32 to index
    %c0_18 = arith.constant 0 : index
    %76 = vector.load %arg4[%75, %c0_18] : memref<8x32xf32, #tpu.memory_space<vmem>>, vector<1x32xf32>
    tpu.vector_store %arg4[%75, %c0_18], %74 {strides = array<i32>} : memref<8x32xf32, #tpu.memory_space<vmem>>, vector<1x32xf32>,
    %c3_i32 = arith.constant 3 : i32
    %77 = arith.index_cast %c3_i32 : i32 to index
    %c0_19 = arith.constant 0 : index
    %78 = vector.load %arg5[%77, %c0_19] : memref<8x128xf32, #tpu.memory_space<vmem>>, vector<1x128xf32>
    %cst_20 = arith.constant dense<0.000000e+00> : vector<1x128xf32>
    %79 = tpu.matmul %74, %0, %cst_20 {dimension_numbers = #tpu.dot_dimension_numbers<[1], [0], [0], [1], [0, 0, 1, 1], [], []>} : vector<1x32xf32>, vector<32x128xf32>, vector<1x128xf32> -> vector<1x128xf32>
    %80 = arith.addf %78, %79 : vector<1x128xf32>
    %81 = arith.negf %80 : vector<1x128xf32>
    %82 = math.exp %81 : vector<1x128xf32>
    %cst_21 = arith.constant 1.000000e+00 : f32
    %83 = vector.broadcast %cst_21 : f32 to vector<1x128xf32>
    %84 = arith.addf %83, %82 : vector<1x128xf32>
    %85 = arith.divf %83, %84 : vector<1x128xf32>
    %86 = vector.extract_strided_slice %85 {offsets = [0, 0], sizes = [1, 32], strides = [1, 1]} : vector<1x128xf32> to vector<1x32xf32>
    %87 = vector.extract_strided_slice %85 {offsets = [0, 32], sizes = [1, 32], strides = [1, 1]} : vector<1x128xf32> to vector<1x32xf32>
    %88 = vector.extract_strided_slice %85 {offsets = [0, 96], sizes = [1, 32], strides = [1, 1]} : vector<1x128xf32> to vector<1x32xf32>
    %89 = vector.extract_strided_slice %80 {offsets = [0, 64], sizes = [1, 32], strides = [1, 1]} : vector<1x128xf32> to vector<1x32xf32>
    %90 = math.tanh %89 : vector<1x32xf32>
    %91 = arith.mulf %87, %72 : vector<1x32xf32>
    %92 = arith.mulf %86, %90 : vector<1x32xf32>
    %93 = arith.addf %91, %92 : vector<1x32xf32>
    %94 = math.tanh %93 : vector<1x32xf32>
    %95 = arith.mulf %88, %94 : vector<1x32xf32>
    %96 = arith.index_cast %c3_i32 : i32 to index
    %c0_22 = arith.constant 0 : index
    %97 = vector.load %arg4[%96, %c0_22] : memref<8x32xf32, #tpu.memory_space<vmem>>, vector<1x32xf32>
    tpu.vector_store %arg4[%96, %c0_22], %95 {strides = array<i32>} : memref<8x32xf32, #tpu.memory_space<vmem>>, vector<1x32xf32>,
    %c4_i32 = arith.constant 4 : i32
    %98 = arith.index_cast %c4_i32 : i32 to index
    %c0_23 = arith.constant 0 : index
    %99 = vector.load %arg5[%98, %c0_23] : memref<8x128xf32, #tpu.memory_space<vmem>>, vector<1x128xf32>
    %cst_24 = arith.constant dense<0.000000e+00> : vector<1x128xf32>
    %100 = tpu.matmul %95, %0, %cst_24 {dimension_numbers = #tpu.dot_dimension_numbers<[1], [0], [0], [1], [0, 0, 1, 1], [], []>} : vector<1x32xf32>, vector<32x128xf32>, vector<1x128xf32> -> vector<1x128xf32>
    %101 = arith.addf %99, %100 : vector<1x128xf32>
    %102 = arith.negf %101 : vector<1x128xf32>
    %103 = math.exp %102 : vector<1x128xf32>
    %cst_25 = arith.constant 1.000000e+00 : f32
    %104 = vector.broadcast %cst_25 : f32 to vector<1x128xf32>
    %105 = arith.addf %104, %103 : vector<1x128xf32>
    %106 = arith.divf %104, %105 : vector<1x128xf32>
    %107 = vector.extract_strided_slice %106 {offsets = [0, 0], sizes = [1, 32], strides = [1, 1]} : vector<1x128xf32> to vector<1x32xf32>
    %108 = vector.extract_strided_slice %106 {offsets = [0, 32], sizes = [1, 32], strides = [1, 1]} : vector<1x128xf32> to vector<1x32xf32>
    %109 = vector.extract_strided_slice %106 {offsets = [0, 96], sizes = [1, 32], strides = [1, 1]} : vector<1x128xf32> to vector<1x32xf32>
    %110 = vector.extract_strided_slice %101 {offsets = [0, 64], sizes = [1, 32], strides = [1, 1]} : vector<1x128xf32> to vector<1x32xf32>
    %111 = math.tanh %110 : vector<1x32xf32>
    %112 = arith.mulf %108, %93 : vector<1x32xf32>
    %113 = arith.mulf %107, %111 : vector<1x32xf32>
    %114 = arith.addf %112, %113 : vector<1x32xf32>
    %115 = math.tanh %114 : vector<1x32xf32>
    %116 = arith.mulf %109, %115 : vector<1x32xf32>
    %117 = arith.index_cast %c4_i32 : i32 to index
    %c0_26 = arith.constant 0 : index
    %118 = vector.load %arg4[%117, %c0_26] : memref<8x32xf32, #tpu.memory_space<vmem>>, vector<1x32xf32>
    tpu.vector_store %arg4[%117, %c0_26], %116 {strides = array<i32>} : memref<8x32xf32, #tpu.memory_space<vmem>>, vector<1x32xf32>,
    %c5_i32 = arith.constant 5 : i32
    %119 = arith.index_cast %c5_i32 : i32 to index
    %c0_27 = arith.constant 0 : index
    %120 = vector.load %arg5[%119, %c0_27] : memref<8x128xf32, #tpu.memory_space<vmem>>, vector<1x128xf32>
    %cst_28 = arith.constant dense<0.000000e+00> : vector<1x128xf32>
    %121 = tpu.matmul %116, %0, %cst_28 {dimension_numbers = #tpu.dot_dimension_numbers<[1], [0], [0], [1], [0, 0, 1, 1], [], []>} : vector<1x32xf32>, vector<32x128xf32>, vector<1x128xf32> -> vector<1x128xf32>
    %122 = arith.addf %120, %121 : vector<1x128xf32>
    %123 = arith.negf %122 : vector<1x128xf32>
    %124 = math.exp %123 : vector<1x128xf32>
    %cst_29 = arith.constant 1.000000e+00 : f32
    %125 = vector.broadcast %cst_29 : f32 to vector<1x128xf32>
    %126 = arith.addf %125, %124 : vector<1x128xf32>
    %127 = arith.divf %125, %126 : vector<1x128xf32>
    %128 = vector.extract_strided_slice %127 {offsets = [0, 0], sizes = [1, 32], strides = [1, 1]} : vector<1x128xf32> to vector<1x32xf32>
    %129 = vector.extract_strided_slice %127 {offsets = [0, 32], sizes = [1, 32], strides = [1, 1]} : vector<1x128xf32> to vector<1x32xf32>
    %130 = vector.extract_strided_slice %127 {offsets = [0, 96], sizes = [1, 32], strides = [1, 1]} : vector<1x128xf32> to vector<1x32xf32>
    %131 = vector.extract_strided_slice %122 {offsets = [0, 64], sizes = [1, 32], strides = [1, 1]} : vector<1x128xf32> to vector<1x32xf32>
    %132 = math.tanh %131 : vector<1x32xf32>
    %133 = arith.mulf %129, %114 : vector<1x32xf32>
    %134 = arith.mulf %128, %132 : vector<1x32xf32>
    %135 = arith.addf %133, %134 : vector<1x32xf32>
    %136 = math.tanh %135 : vector<1x32xf32>
    %137 = arith.mulf %130, %136 : vector<1x32xf32>
    %138 = arith.index_cast %c5_i32 : i32 to index
    %c0_30 = arith.constant 0 : index
    %139 = vector.load %arg4[%138, %c0_30] : memref<8x32xf32, #tpu.memory_space<vmem>>, vector<1x32xf32>
    tpu.vector_store %arg4[%138, %c0_30], %137 {strides = array<i32>} : memref<8x32xf32, #tpu.memory_space<vmem>>, vector<1x32xf32>,
    %c6_i32 = arith.constant 6 : i32
    %140 = arith.index_cast %c6_i32 : i32 to index
    %c0_31 = arith.constant 0 : index
    %141 = vector.load %arg5[%140, %c0_31] : memref<8x128xf32, #tpu.memory_space<vmem>>, vector<1x128xf32>
    %cst_32 = arith.constant dense<0.000000e+00> : vector<1x128xf32>
    %142 = tpu.matmul %137, %0, %cst_32 {dimension_numbers = #tpu.dot_dimension_numbers<[1], [0], [0], [1], [0, 0, 1, 1], [], []>} : vector<1x32xf32>, vector<32x128xf32>, vector<1x128xf32> -> vector<1x128xf32>
    %143 = arith.addf %141, %142 : vector<1x128xf32>
    %144 = arith.negf %143 : vector<1x128xf32>
    %145 = math.exp %144 : vector<1x128xf32>
    %cst_33 = arith.constant 1.000000e+00 : f32
    %146 = vector.broadcast %cst_33 : f32 to vector<1x128xf32>
    %147 = arith.addf %146, %145 : vector<1x128xf32>
    %148 = arith.divf %146, %147 : vector<1x128xf32>
    %149 = vector.extract_strided_slice %148 {offsets = [0, 0], sizes = [1, 32], strides = [1, 1]} : vector<1x128xf32> to vector<1x32xf32>
    %150 = vector.extract_strided_slice %148 {offsets = [0, 32], sizes = [1, 32], strides = [1, 1]} : vector<1x128xf32> to vector<1x32xf32>
    %151 = vector.extract_strided_slice %148 {offsets = [0, 96], sizes = [1, 32], strides = [1, 1]} : vector<1x128xf32> to vector<1x32xf32>
    %152 = vector.extract_strided_slice %143 {offsets = [0, 64], sizes = [1, 32], strides = [1, 1]} : vector<1x128xf32> to vector<1x32xf32>
    %153 = math.tanh %152 : vector<1x32xf32>
    %154 = arith.mulf %150, %135 : vector<1x32xf32>
    %155 = arith.mulf %149, %153 : vector<1x32xf32>
    %156 = arith.addf %154, %155 : vector<1x32xf32>
    %157 = math.tanh %156 : vector<1x32xf32>
    %158 = arith.mulf %151, %157 : vector<1x32xf32>
    %159 = arith.index_cast %c6_i32 : i32 to index
    %c0_34 = arith.constant 0 : index
    %160 = vector.load %arg4[%159, %c0_34] : memref<8x32xf32, #tpu.memory_space<vmem>>, vector<1x32xf32>
    tpu.vector_store %arg4[%159, %c0_34], %158 {strides = array<i32>} : memref<8x32xf32, #tpu.memory_space<vmem>>, vector<1x32xf32>,
    %c7_i32 = arith.constant 7 : i32
    %161 = arith.index_cast %c7_i32 : i32 to index
    %c0_35 = arith.constant 0 : index
    %162 = vector.load %arg5[%161, %c0_35] : memref<8x128xf32, #tpu.memory_space<vmem>>, vector<1x128xf32>
    %cst_36 = arith.constant dense<0.000000e+00> : vector<1x128xf32>
    %163 = tpu.matmul %158, %0, %cst_36 {dimension_numbers = #tpu.dot_dimension_numbers<[1], [0], [0], [1], [0, 0, 1, 1], [], []>} : vector<1x32xf32>, vector<32x128xf32>, vector<1x128xf32> -> vector<1x128xf32>
    %164 = arith.addf %162, %163 : vector<1x128xf32>
    %165 = arith.negf %164 : vector<1x128xf32>
    %166 = math.exp %165 : vector<1x128xf32>
    %cst_37 = arith.constant 1.000000e+00 : f32
    %167 = vector.broadcast %cst_37 : f32 to vector<1x128xf32>
    %168 = arith.addf %167, %166 : vector<1x128xf32>
    %169 = arith.divf %167, %168 : vector<1x128xf32>
    %170 = vector.extract_strided_slice %169 {offsets = [0, 0], sizes = [1, 32], strides = [1, 1]} : vector<1x128xf32> to vector<1x32xf32>
    %171 = vector.extract_strided_slice %169 {offsets = [0, 32], sizes = [1, 32], strides = [1, 1]} : vector<1x128xf32> to vector<1x32xf32>
    %172 = vector.extract_strided_slice %169 {offsets = [0, 96], sizes = [1, 32], strides = [1, 1]} : vector<1x128xf32> to vector<1x32xf32>
    %173 = vector.extract_strided_slice %164 {offsets = [0, 64], sizes = [1, 32], strides = [1, 1]} : vector<1x128xf32> to vector<1x32xf32>
    %174 = math.tanh %173 : vector<1x32xf32>
    %175 = arith.mulf %171, %156 : vector<1x32xf32>
    %176 = arith.mulf %170, %174 : vector<1x32xf32>
    %177 = arith.addf %175, %176 : vector<1x32xf32>
    %178 = math.tanh %177 : vector<1x32xf32>
    %179 = arith.mulf %172, %178 : vector<1x32xf32>
    %180 = arith.index_cast %c7_i32 : i32 to index
    %c0_38 = arith.constant 0 : index
    %181 = vector.load %arg4[%180, %c0_38] : memref<8x32xf32, #tpu.memory_space<vmem>>, vector<1x32xf32>
    tpu.vector_store %arg4[%180, %c0_38], %179 {strides = array<i32>} : memref<8x32xf32, #tpu.memory_space<vmem>>, vector<1x32xf32>,
    %c8_i32 = arith.constant 8 : i32
    %c104 = arith.constant 104 : index
    %c0_39 = arith.constant 0 : index
    %182 = vector.load %arg1[%c104, %c0_39] : memref<288x128xf32, #tpu.memory_space<vmem>>, vector<32x128xf32>
    %c136 = arith.constant 136 : index
    %c0_40 = arith.constant 0 : index
    %183 = vector.load %arg1[%c136, %c0_40] : memref<288x128xf32, #tpu.memory_space<vmem>>, vector<1x128xf32>
    %c0_41 = arith.constant 0 : index
    %c0_42 = arith.constant 0 : index
    %184 = vector.load %arg4[%c0_41, %c0_42] : memref<8x32xf32, #tpu.memory_space<vmem>>, vector<8x32xf32>
    %c72 = arith.constant 72 : index
    %c0_43 = arith.constant 0 : index
    %185 = vector.load %arg1[%c72, %c0_43] : memref<288x128xf32, #tpu.memory_space<vmem>>, vector<32x128xf32>
    %cst_44 = arith.constant dense<0.000000e+00> : vector<8x128xf32>
    %186 = tpu.matmul %184, %185, %cst_44 {dimension_numbers = #tpu.dot_dimension_numbers<[1], [0], [0], [1], [0, 0, 1, 1], [], []>} : vector<8x32xf32>, vector<32x128xf32>, vector<8x128xf32> -> vector<8x128xf32>
    %187 = vector.shape_cast %183 : vector<1x128xf32> to vector<1x128xf32>
    %188 = vector.broadcast %187 : vector<1x128xf32> to vector<8x128xf32>
    %189 = arith.addf %186, %188 : vector<8x128xf32>
    %c0_45 = arith.constant 0 : index
    %c0_46 = arith.constant 0 : index
    %190 = vector.load %arg5[%c0_45, %c0_46] : memref<8x128xf32, #tpu.memory_space<vmem>>, vector<8x128xf32>
    tpu.vector_store %arg5[%c0_45, %c0_46], %189 {strides = array<i32>} : memref<8x128xf32, #tpu.memory_space<vmem>>, vector<8x128xf32>,
    %cst_47 = arith.constant 0.000000e+00 : f32
    %191 = vector.broadcast %cst_47 : f32 to vector<1x32xf32>
    %c0_i32_48 = arith.constant 0 : i32
    %192 = arith.index_cast %c0_i32_48 : i32 to index
    %c0_49 = arith.constant 0 : index
    %193 = vector.load %arg5[%192, %c0_49] : memref<8x128xf32, #tpu.memory_space<vmem>>, vector<1x128xf32>
    %cst_50 = arith.constant dense<0.000000e+00> : vector<1x128xf32>
    %194 = tpu.matmul %191, %182, %cst_50 {dimension_numbers = #tpu.dot_dimension_numbers<[1], [0], [0], [1], [0, 0, 1, 1], [], []>} : vector<1x32xf32>, vector<32x128xf32>, vector<1x128xf32> -> vector<1x128xf32>
    %195 = arith.addf %193, %194 : vector<1x128xf32>
    %196 = arith.negf %195 : vector<1x128xf32>
    %197 = math.exp %196 : vector<1x128xf32>
    %cst_51 = arith.constant 1.000000e+00 : f32
    %198 = vector.broadcast %cst_51 : f32 to vector<1x128xf32>
    %199 = arith.addf %198, %197 : vector<1x128xf32>
    %200 = arith.divf %198, %199 : vector<1x128xf32>
    %201 = vector.extract_strided_slice %200 {offsets = [0, 0], sizes = [1, 32], strides = [1, 1]} : vector<1x128xf32> to vector<1x32xf32>
    %202 = vector.extract_strided_slice %200 {offsets = [0, 32], sizes = [1, 32], strides = [1, 1]} : vector<1x128xf32> to vector<1x32xf32>
    %203 = vector.extract_strided_slice %200 {offsets = [0, 96], sizes = [1, 32], strides = [1, 1]} : vector<1x128xf32> to vector<1x32xf32>
    %204 = vector.extract_strided_slice %195 {offsets = [0, 64], sizes = [1, 32], strides = [1, 1]} : vector<1x128xf32> to vector<1x32xf32>
    %205 = math.tanh %204 : vector<1x32xf32>
    %206 = arith.mulf %202, %191 : vector<1x32xf32>
    %207 = arith.mulf %201, %205 : vector<1x32xf32>
    %208 = arith.addf %206, %207 : vector<1x32xf32>
    %209 = math.tanh %208 : vector<1x32xf32>
    %210 = arith.mulf %203, %209 : vector<1x32xf32>
    %211 = arith.index_cast %c0_i32_48 : i32 to index
    %c0_52 = arith.constant 0 : index
    %212 = vector.load %arg4[%211, %c0_52] : memref<8x32xf32, #tpu.memory_space<vmem>>, vector<1x32xf32>
    tpu.vector_store %arg4[%211, %c0_52], %210 {strides = array<i32>} : memref<8x32xf32, #tpu.memory_space<vmem>>, vector<1x32xf32>,
    %c1_i32_53 = arith.constant 1 : i32
    %213 = arith.index_cast %c1_i32_53 : i32 to index
    %c0_54 = arith.constant 0 : index
    %214 = vector.load %arg5[%213, %c0_54] : memref<8x128xf32, #tpu.memory_space<vmem>>, vector<1x128xf32>
    %cst_55 = arith.constant dense<0.000000e+00> : vector<1x128xf32>
    %215 = tpu.matmul %210, %182, %cst_55 {dimension_numbers = #tpu.dot_dimension_numbers<[1], [0], [0], [1], [0, 0, 1, 1], [], []>} : vector<1x32xf32>, vector<32x128xf32>, vector<1x128xf32> -> vector<1x128xf32>
    %216 = arith.addf %214, %215 : vector<1x128xf32>
    %217 = arith.negf %216 : vector<1x128xf32>
    %218 = math.exp %217 : vector<1x128xf32>
    %cst_56 = arith.constant 1.000000e+00 : f32
    %219 = vector.broadcast %cst_56 : f32 to vector<1x128xf32>
    %220 = arith.addf %219, %218 : vector<1x128xf32>
    %221 = arith.divf %219, %220 : vector<1x128xf32>
    %222 = vector.extract_strided_slice %221 {offsets = [0, 0], sizes = [1, 32], strides = [1, 1]} : vector<1x128xf32> to vector<1x32xf32>
    %223 = vector.extract_strided_slice %221 {offsets = [0, 32], sizes = [1, 32], strides = [1, 1]} : vector<1x128xf32> to vector<1x32xf32>
    %224 = vector.extract_strided_slice %221 {offsets = [0, 96], sizes = [1, 32], strides = [1, 1]} : vector<1x128xf32> to vector<1x32xf32>
    %225 = vector.extract_strided_slice %216 {offsets = [0, 64], sizes = [1, 32], strides = [1, 1]} : vector<1x128xf32> to vector<1x32xf32>
    %226 = math.tanh %225 : vector<1x32xf32>
    %227 = arith.mulf %223, %208 : vector<1x32xf32>
    %228 = arith.mulf %222, %226 : vector<1x32xf32>
    %229 = arith.addf %227, %228 : vector<1x32xf32>
    %230 = math.tanh %229 : vector<1x32xf32>
    %231 = arith.mulf %224, %230 : vector<1x32xf32>
    %232 = arith.index_cast %c1_i32_53 : i32 to index
    %c0_57 = arith.constant 0 : index
    %233 = vector.load %arg4[%232, %c0_57] : memref<8x32xf32, #tpu.memory_space<vmem>>, vector<1x32xf32>
    tpu.vector_store %arg4[%232, %c0_57], %231 {strides = array<i32>} : memref<8x32xf32, #tpu.memory_space<vmem>>, vector<1x32xf32>,
    %c2_i32_58 = arith.constant 2 : i32
    %234 = arith.index_cast %c2_i32_58 : i32 to index
    %c0_59 = arith.constant 0 : index
    %235 = vector.load %arg5[%234, %c0_59] : memref<8x128xf32, #tpu.memory_space<vmem>>, vector<1x128xf32>
    %cst_60 = arith.constant dense<0.000000e+00> : vector<1x128xf32>
    %236 = tpu.matmul %231, %182, %cst_60 {dimension_numbers = #tpu.dot_dimension_numbers<[1], [0], [0], [1], [0, 0, 1, 1], [], []>} : vector<1x32xf32>, vector<32x128xf32>, vector<1x128xf32> -> vector<1x128xf32>
    %237 = arith.addf %235, %236 : vector<1x128xf32>
    %238 = arith.negf %237 : vector<1x128xf32>
    %239 = math.exp %238 : vector<1x128xf32>
    %cst_61 = arith.constant 1.000000e+00 : f32
    %240 = vector.broadcast %cst_61 : f32 to vector<1x128xf32>
    %241 = arith.addf %240, %239 : vector<1x128xf32>
    %242 = arith.divf %240, %241 : vector<1x128xf32>
    %243 = vector.extract_strided_slice %242 {offsets = [0, 0], sizes = [1, 32], strides = [1, 1]} : vector<1x128xf32> to vector<1x32xf32>
    %244 = vector.extract_strided_slice %242 {offsets = [0, 32], sizes = [1, 32], strides = [1, 1]} : vector<1x128xf32> to vector<1x32xf32>
    %245 = vector.extract_strided_slice %242 {offsets = [0, 96], sizes = [1, 32], strides = [1, 1]} : vector<1x128xf32> to vector<1x32xf32>
    %246 = vector.extract_strided_slice %237 {offsets = [0, 64], sizes = [1, 32], strides = [1, 1]} : vector<1x128xf32> to vector<1x32xf32>
    %247 = math.tanh %246 : vector<1x32xf32>
    %248 = arith.mulf %244, %229 : vector<1x32xf32>
    %249 = arith.mulf %243, %247 : vector<1x32xf32>
    %250 = arith.addf %248, %249 : vector<1x32xf32>
    %251 = math.tanh %250 : vector<1x32xf32>
    %252 = arith.mulf %245, %251 : vector<1x32xf32>
    %253 = arith.index_cast %c2_i32_58 : i32 to index
    %c0_62 = arith.constant 0 : index
    %254 = vector.load %arg4[%253, %c0_62] : memref<8x32xf32, #tpu.memory_space<vmem>>, vector<1x32xf32>
    tpu.vector_store %arg4[%253, %c0_62], %252 {strides = array<i32>} : memref<8x32xf32, #tpu.memory_space<vmem>>, vector<1x32xf32>,
    %c3_i32_63 = arith.constant 3 : i32
    %255 = arith.index_cast %c3_i32_63 : i32 to index
    %c0_64 = arith.constant 0 : index
    %256 = vector.load %arg5[%255, %c0_64] : memref<8x128xf32, #tpu.memory_space<vmem>>, vector<1x128xf32>
    %cst_65 = arith.constant dense<0.000000e+00> : vector<1x128xf32>
    %257 = tpu.matmul %252, %182, %cst_65 {dimension_numbers = #tpu.dot_dimension_numbers<[1], [0], [0], [1], [0, 0, 1, 1], [], []>} : vector<1x32xf32>, vector<32x128xf32>, vector<1x128xf32> -> vector<1x128xf32>
    %258 = arith.addf %256, %257 : vector<1x128xf32>
    %259 = arith.negf %258 : vector<1x128xf32>
    %260 = math.exp %259 : vector<1x128xf32>
    %cst_66 = arith.constant 1.000000e+00 : f32
    %261 = vector.broadcast %cst_66 : f32 to vector<1x128xf32>
    %262 = arith.addf %261, %260 : vector<1x128xf32>
    %263 = arith.divf %261, %262 : vector<1x128xf32>
    %264 = vector.extract_strided_slice %263 {offsets = [0, 0], sizes = [1, 32], strides = [1, 1]} : vector<1x128xf32> to vector<1x32xf32>
    %265 = vector.extract_strided_slice %263 {offsets = [0, 32], sizes = [1, 32], strides = [1, 1]} : vector<1x128xf32> to vector<1x32xf32>
    %266 = vector.extract_strided_slice %263 {offsets = [0, 96], sizes = [1, 32], strides = [1, 1]} : vector<1x128xf32> to vector<1x32xf32>
    %267 = vector.extract_strided_slice %258 {offsets = [0, 64], sizes = [1, 32], strides = [1, 1]} : vector<1x128xf32> to vector<1x32xf32>
    %268 = math.tanh %267 : vector<1x32xf32>
    %269 = arith.mulf %265, %250 : vector<1x32xf32>
    %270 = arith.mulf %264, %268 : vector<1x32xf32>
    %271 = arith.addf %269, %270 : vector<1x32xf32>
    %272 = math.tanh %271 : vector<1x32xf32>
    %273 = arith.mulf %266, %272 : vector<1x32xf32>
    %274 = arith.index_cast %c3_i32_63 : i32 to index
    %c0_67 = arith.constant 0 : index
    %275 = vector.load %arg4[%274, %c0_67] : memref<8x32xf32, #tpu.memory_space<vmem>>, vector<1x32xf32>
    tpu.vector_store %arg4[%274, %c0_67], %273 {strides = array<i32>} : memref<8x32xf32, #tpu.memory_space<vmem>>, vector<1x32xf32>,
    %c4_i32_68 = arith.constant 4 : i32
    %276 = arith.index_cast %c4_i32_68 : i32 to index
    %c0_69 = arith.constant 0 : index
    %277 = vector.load %arg5[%276, %c0_69] : memref<8x128xf32, #tpu.memory_space<vmem>>, vector<1x128xf32>
    %cst_70 = arith.constant dense<0.000000e+00> : vector<1x128xf32>
    %278 = tpu.matmul %273, %182, %cst_70 {dimension_numbers = #tpu.dot_dimension_numbers<[1], [0], [0], [1], [0, 0, 1, 1], [], []>} : vector<1x32xf32>, vector<32x128xf32>, vector<1x128xf32> -> vector<1x128xf32>
    %279 = arith.addf %277, %278 : vector<1x128xf32>
    %280 = arith.negf %279 : vector<1x128xf32>
    %281 = math.exp %280 : vector<1x128xf32>
    %cst_71 = arith.constant 1.000000e+00 : f32
    %282 = vector.broadcast %cst_71 : f32 to vector<1x128xf32>
    %283 = arith.addf %282, %281 : vector<1x128xf32>
    %284 = arith.divf %282, %283 : vector<1x128xf32>
    %285 = vector.extract_strided_slice %284 {offsets = [0, 0], sizes = [1, 32], strides = [1, 1]} : vector<1x128xf32> to vector<1x32xf32>
    %286 = vector.extract_strided_slice %284 {offsets = [0, 32], sizes = [1, 32], strides = [1, 1]} : vector<1x128xf32> to vector<1x32xf32>
    %287 = vector.extract_strided_slice %284 {offsets = [0, 96], sizes = [1, 32], strides = [1, 1]} : vector<1x128xf32> to vector<1x32xf32>
    %288 = vector.extract_strided_slice %279 {offsets = [0, 64], sizes = [1, 32], strides = [1, 1]} : vector<1x128xf32> to vector<1x32xf32>
    %289 = math.tanh %288 : vector<1x32xf32>
    %290 = arith.mulf %286, %271 : vector<1x32xf32>
    %291 = arith.mulf %285, %289 : vector<1x32xf32>
    %292 = arith.addf %290, %291 : vector<1x32xf32>
    %293 = math.tanh %292 : vector<1x32xf32>
    %294 = arith.mulf %287, %293 : vector<1x32xf32>
    %295 = arith.index_cast %c4_i32_68 : i32 to index
    %c0_72 = arith.constant 0 : index
    %296 = vector.load %arg4[%295, %c0_72] : memref<8x32xf32, #tpu.memory_space<vmem>>, vector<1x32xf32>
    tpu.vector_store %arg4[%295, %c0_72], %294 {strides = array<i32>} : memref<8x32xf32, #tpu.memory_space<vmem>>, vector<1x32xf32>,
    %c5_i32_73 = arith.constant 5 : i32
    %297 = arith.index_cast %c5_i32_73 : i32 to index
    %c0_74 = arith.constant 0 : index
    %298 = vector.load %arg5[%297, %c0_74] : memref<8x128xf32, #tpu.memory_space<vmem>>, vector<1x128xf32>
    %cst_75 = arith.constant dense<0.000000e+00> : vector<1x128xf32>
    %299 = tpu.matmul %294, %182, %cst_75 {dimension_numbers = #tpu.dot_dimension_numbers<[1], [0], [0], [1], [0, 0, 1, 1], [], []>} : vector<1x32xf32>, vector<32x128xf32>, vector<1x128xf32> -> vector<1x128xf32>
    %300 = arith.addf %298, %299 : vector<1x128xf32>
    %301 = arith.negf %300 : vector<1x128xf32>
    %302 = math.exp %301 : vector<1x128xf32>
    %cst_76 = arith.constant 1.000000e+00 : f32
    %303 = vector.broadcast %cst_76 : f32 to vector<1x128xf32>
    %304 = arith.addf %303, %302 : vector<1x128xf32>
    %305 = arith.divf %303, %304 : vector<1x128xf32>
    %306 = vector.extract_strided_slice %305 {offsets = [0, 0], sizes = [1, 32], strides = [1, 1]} : vector<1x128xf32> to vector<1x32xf32>
    %307 = vector.extract_strided_slice %305 {offsets = [0, 32], sizes = [1, 32], strides = [1, 1]} : vector<1x128xf32> to vector<1x32xf32>
    %308 = vector.extract_strided_slice %305 {offsets = [0, 96], sizes = [1, 32], strides = [1, 1]} : vector<1x128xf32> to vector<1x32xf32>
    %309 = vector.extract_strided_slice %300 {offsets = [0, 64], sizes = [1, 32], strides = [1, 1]} : vector<1x128xf32> to vector<1x32xf32>
    %310 = math.tanh %309 : vector<1x32xf32>
    %311 = arith.mulf %307, %292 : vector<1x32xf32>
    %312 = arith.mulf %306, %310 : vector<1x32xf32>
    %313 = arith.addf %311, %312 : vector<1x32xf32>
    %314 = math.tanh %313 : vector<1x32xf32>
    %315 = arith.mulf %308, %314 : vector<1x32xf32>
    %316 = arith.index_cast %c5_i32_73 : i32 to index
    %c0_77 = arith.constant 0 : index
    %317 = vector.load %arg4[%316, %c0_77] : memref<8x32xf32, #tpu.memory_space<vmem>>, vector<1x32xf32>
    tpu.vector_store %arg4[%316, %c0_77], %315 {strides = array<i32>} : memref<8x32xf32, #tpu.memory_space<vmem>>, vector<1x32xf32>,
    %c6_i32_78 = arith.constant 6 : i32
    %318 = arith.index_cast %c6_i32_78 : i32 to index
    %c0_79 = arith.constant 0 : index
    %319 = vector.load %arg5[%318, %c0_79] : memref<8x128xf32, #tpu.memory_space<vmem>>, vector<1x128xf32>
    %cst_80 = arith.constant dense<0.000000e+00> : vector<1x128xf32>
    %320 = tpu.matmul %315, %182, %cst_80 {dimension_numbers = #tpu.dot_dimension_numbers<[1], [0], [0], [1], [0, 0, 1, 1], [], []>} : vector<1x32xf32>, vector<32x128xf32>, vector<1x128xf32> -> vector<1x128xf32>
    %321 = arith.addf %319, %320 : vector<1x128xf32>
    %322 = arith.negf %321 : vector<1x128xf32>
    %323 = math.exp %322 : vector<1x128xf32>
    %cst_81 = arith.constant 1.000000e+00 : f32
    %324 = vector.broadcast %cst_81 : f32 to vector<1x128xf32>
    %325 = arith.addf %324, %323 : vector<1x128xf32>
    %326 = arith.divf %324, %325 : vector<1x128xf32>
    %327 = vector.extract_strided_slice %326 {offsets = [0, 0], sizes = [1, 32], strides = [1, 1]} : vector<1x128xf32> to vector<1x32xf32>
    %328 = vector.extract_strided_slice %326 {offsets = [0, 32], sizes = [1, 32], strides = [1, 1]} : vector<1x128xf32> to vector<1x32xf32>
    %329 = vector.extract_strided_slice %326 {offsets = [0, 96], sizes = [1, 32], strides = [1, 1]} : vector<1x128xf32> to vector<1x32xf32>
    %330 = vector.extract_strided_slice %321 {offsets = [0, 64], sizes = [1, 32], strides = [1, 1]} : vector<1x128xf32> to vector<1x32xf32>
    %331 = math.tanh %330 : vector<1x32xf32>
    %332 = arith.mulf %328, %313 : vector<1x32xf32>
    %333 = arith.mulf %327, %331 : vector<1x32xf32>
    %334 = arith.addf %332, %333 : vector<1x32xf32>
    %335 = math.tanh %334 : vector<1x32xf32>
    %336 = arith.mulf %329, %335 : vector<1x32xf32>
    %337 = arith.index_cast %c6_i32_78 : i32 to index
    %c0_82 = arith.constant 0 : index
    %338 = vector.load %arg4[%337, %c0_82] : memref<8x32xf32, #tpu.memory_space<vmem>>, vector<1x32xf32>
    tpu.vector_store %arg4[%337, %c0_82], %336 {strides = array<i32>} : memref<8x32xf32, #tpu.memory_space<vmem>>, vector<1x32xf32>,
    %c7_i32_83 = arith.constant 7 : i32
    %339 = arith.index_cast %c7_i32_83 : i32 to index
    %c0_84 = arith.constant 0 : index
    %340 = vector.load %arg5[%339, %c0_84] : memref<8x128xf32, #tpu.memory_space<vmem>>, vector<1x128xf32>
    %cst_85 = arith.constant dense<0.000000e+00> : vector<1x128xf32>
    %341 = tpu.matmul %336, %182, %cst_85 {dimension_numbers = #tpu.dot_dimension_numbers<[1], [0], [0], [1], [0, 0, 1, 1], [], []>} : vector<1x32xf32>, vector<32x128xf32>, vector<1x128xf32> -> vector<1x128xf32>
    %342 = arith.addf %340, %341 : vector<1x128xf32>
    %343 = arith.negf %342 : vector<1x128xf32>
    %344 = math.exp %343 : vector<1x128xf32>
    %cst_86 = arith.constant 1.000000e+00 : f32
    %345 = vector.broadcast %cst_86 : f32 to vector<1x128xf32>
    %346 = arith.addf %345, %344 : vector<1x128xf32>
    %347 = arith.divf %345, %346 : vector<1x128xf32>
    %348 = vector.extract_strided_slice %347 {offsets = [0, 0], sizes = [1, 32], strides = [1, 1]} : vector<1x128xf32> to vector<1x32xf32>
    %349 = vector.extract_strided_slice %347 {offsets = [0, 32], sizes = [1, 32], strides = [1, 1]} : vector<1x128xf32> to vector<1x32xf32>
    %350 = vector.extract_strided_slice %347 {offsets = [0, 96], sizes = [1, 32], strides = [1, 1]} : vector<1x128xf32> to vector<1x32xf32>
    %351 = vector.extract_strided_slice %342 {offsets = [0, 64], sizes = [1, 32], strides = [1, 1]} : vector<1x128xf32> to vector<1x32xf32>
    %352 = math.tanh %351 : vector<1x32xf32>
    %353 = arith.mulf %349, %334 : vector<1x32xf32>
    %354 = arith.mulf %348, %352 : vector<1x32xf32>
    %355 = arith.addf %353, %354 : vector<1x32xf32>
    %356 = math.tanh %355 : vector<1x32xf32>
    %357 = arith.mulf %350, %356 : vector<1x32xf32>
    %358 = arith.index_cast %c7_i32_83 : i32 to index
    %c0_87 = arith.constant 0 : index
    %359 = vector.load %arg4[%358, %c0_87] : memref<8x32xf32, #tpu.memory_space<vmem>>, vector<1x32xf32>
    tpu.vector_store %arg4[%358, %c0_87], %357 {strides = array<i32>} : memref<8x32xf32, #tpu.memory_space<vmem>>, vector<1x32xf32>,
    %c8_i32_88 = arith.constant 8 : i32
    %c176 = arith.constant 176 : index
    %c0_89 = arith.constant 0 : index
    %360 = vector.load %arg1[%c176, %c0_89] : memref<288x128xf32, #tpu.memory_space<vmem>>, vector<32x128xf32>
    %c208 = arith.constant 208 : index
    %c0_90 = arith.constant 0 : index
    %361 = vector.load %arg1[%c208, %c0_90] : memref<288x128xf32, #tpu.memory_space<vmem>>, vector<1x128xf32>
    %c0_91 = arith.constant 0 : index
    %c0_92 = arith.constant 0 : index
    %362 = vector.load %arg4[%c0_91, %c0_92] : memref<8x32xf32, #tpu.memory_space<vmem>>, vector<8x32xf32>
    %c144 = arith.constant 144 : index
    %c0_93 = arith.constant 0 : index
    %363 = vector.load %arg1[%c144, %c0_93] : memref<288x128xf32, #tpu.memory_space<vmem>>, vector<32x128xf32>
    %cst_94 = arith.constant dense<0.000000e+00> : vector<8x128xf32>
    %364 = tpu.matmul %362, %363, %cst_94 {dimension_numbers = #tpu.dot_dimension_numbers<[1], [0], [0], [1], [0, 0, 1, 1], [], []>} : vector<8x32xf32>, vector<32x128xf32>, vector<8x128xf32> -> vector<8x128xf32>
    %365 = vector.shape_cast %361 : vector<1x128xf32> to vector<1x128xf32>
    %366 = vector.broadcast %365 : vector<1x128xf32> to vector<8x128xf32>
    %367 = arith.addf %364, %366 : vector<8x128xf32>
    %c0_95 = arith.constant 0 : index
    %c0_96 = arith.constant 0 : index
    %368 = vector.load %arg5[%c0_95, %c0_96] : memref<8x128xf32, #tpu.memory_space<vmem>>, vector<8x128xf32>
    tpu.vector_store %arg5[%c0_95, %c0_96], %367 {strides = array<i32>} : memref<8x128xf32, #tpu.memory_space<vmem>>, vector<8x128xf32>,
    %cst_97 = arith.constant 0.000000e+00 : f32
    %369 = vector.broadcast %cst_97 : f32 to vector<1x32xf32>
    %c0_i32_98 = arith.constant 0 : i32
    %370 = arith.index_cast %c0_i32_98 : i32 to index
    %c0_99 = arith.constant 0 : index
    %371 = vector.load %arg5[%370, %c0_99] : memref<8x128xf32, #tpu.memory_space<vmem>>, vector<1x128xf32>
    %cst_100 = arith.constant dense<0.000000e+00> : vector<1x128xf32>
    %372 = tpu.matmul %369, %360, %cst_100 {dimension_numbers = #tpu.dot_dimension_numbers<[1], [0], [0], [1], [0, 0, 1, 1], [], []>} : vector<1x32xf32>, vector<32x128xf32>, vector<1x128xf32> -> vector<1x128xf32>
    %373 = arith.addf %371, %372 : vector<1x128xf32>
    %374 = arith.negf %373 : vector<1x128xf32>
    %375 = math.exp %374 : vector<1x128xf32>
    %cst_101 = arith.constant 1.000000e+00 : f32
    %376 = vector.broadcast %cst_101 : f32 to vector<1x128xf32>
    %377 = arith.addf %376, %375 : vector<1x128xf32>
    %378 = arith.divf %376, %377 : vector<1x128xf32>
    %379 = vector.extract_strided_slice %378 {offsets = [0, 0], sizes = [1, 32], strides = [1, 1]} : vector<1x128xf32> to vector<1x32xf32>
    %380 = vector.extract_strided_slice %378 {offsets = [0, 32], sizes = [1, 32], strides = [1, 1]} : vector<1x128xf32> to vector<1x32xf32>
    %381 = vector.extract_strided_slice %378 {offsets = [0, 96], sizes = [1, 32], strides = [1, 1]} : vector<1x128xf32> to vector<1x32xf32>
    %382 = vector.extract_strided_slice %373 {offsets = [0, 64], sizes = [1, 32], strides = [1, 1]} : vector<1x128xf32> to vector<1x32xf32>
    %383 = math.tanh %382 : vector<1x32xf32>
    %384 = arith.mulf %380, %369 : vector<1x32xf32>
    %385 = arith.mulf %379, %383 : vector<1x32xf32>
    %386 = arith.addf %384, %385 : vector<1x32xf32>
    %387 = math.tanh %386 : vector<1x32xf32>
    %388 = arith.mulf %381, %387 : vector<1x32xf32>
    %389 = arith.index_cast %c0_i32_98 : i32 to index
    %c0_102 = arith.constant 0 : index
    %390 = vector.load %arg4[%389, %c0_102] : memref<8x32xf32, #tpu.memory_space<vmem>>, vector<1x32xf32>
    tpu.vector_store %arg4[%389, %c0_102], %388 {strides = array<i32>} : memref<8x32xf32, #tpu.memory_space<vmem>>, vector<1x32xf32>,
    %c1_i32_103 = arith.constant 1 : i32
    %391 = arith.index_cast %c1_i32_103 : i32 to index
    %c0_104 = arith.constant 0 : index
    %392 = vector.load %arg5[%391, %c0_104] : memref<8x128xf32, #tpu.memory_space<vmem>>, vector<1x128xf32>
    %cst_105 = arith.constant dense<0.000000e+00> : vector<1x128xf32>
    %393 = tpu.matmul %388, %360, %cst_105 {dimension_numbers = #tpu.dot_dimension_numbers<[1], [0], [0], [1], [0, 0, 1, 1], [], []>} : vector<1x32xf32>, vector<32x128xf32>, vector<1x128xf32> -> vector<1x128xf32>
    %394 = arith.addf %392, %393 : vector<1x128xf32>
    %395 = arith.negf %394 : vector<1x128xf32>
    %396 = math.exp %395 : vector<1x128xf32>
    %cst_106 = arith.constant 1.000000e+00 : f32
    %397 = vector.broadcast %cst_106 : f32 to vector<1x128xf32>
    %398 = arith.addf %397, %396 : vector<1x128xf32>
    %399 = arith.divf %397, %398 : vector<1x128xf32>
    %400 = vector.extract_strided_slice %399 {offsets = [0, 0], sizes = [1, 32], strides = [1, 1]} : vector<1x128xf32> to vector<1x32xf32>
    %401 = vector.extract_strided_slice %399 {offsets = [0, 32], sizes = [1, 32], strides = [1, 1]} : vector<1x128xf32> to vector<1x32xf32>
    %402 = vector.extract_strided_slice %399 {offsets = [0, 96], sizes = [1, 32], strides = [1, 1]} : vector<1x128xf32> to vector<1x32xf32>
    %403 = vector.extract_strided_slice %394 {offsets = [0, 64], sizes = [1, 32], strides = [1, 1]} : vector<1x128xf32> to vector<1x32xf32>
    %404 = math.tanh %403 : vector<1x32xf32>
    %405 = arith.mulf %401, %386 : vector<1x32xf32>
    %406 = arith.mulf %400, %404 : vector<1x32xf32>
    %407 = arith.addf %405, %406 : vector<1x32xf32>
    %408 = math.tanh %407 : vector<1x32xf32>
    %409 = arith.mulf %402, %408 : vector<1x32xf32>
    %410 = arith.index_cast %c1_i32_103 : i32 to index
    %c0_107 = arith.constant 0 : index
    %411 = vector.load %arg4[%410, %c0_107] : memref<8x32xf32, #tpu.memory_space<vmem>>, vector<1x32xf32>
    tpu.vector_store %arg4[%410, %c0_107], %409 {strides = array<i32>} : memref<8x32xf32, #tpu.memory_space<vmem>>, vector<1x32xf32>,
    %c2_i32_108 = arith.constant 2 : i32
    %412 = arith.index_cast %c2_i32_108 : i32 to index
    %c0_109 = arith.constant 0 : index
    %413 = vector.load %arg5[%412, %c0_109] : memref<8x128xf32, #tpu.memory_space<vmem>>, vector<1x128xf32>
    %cst_110 = arith.constant dense<0.000000e+00> : vector<1x128xf32>
    %414 = tpu.matmul %409, %360, %cst_110 {dimension_numbers = #tpu.dot_dimension_numbers<[1], [0], [0], [1], [0, 0, 1, 1], [], []>} : vector<1x32xf32>, vector<32x128xf32>, vector<1x128xf32> -> vector<1x128xf32>
    %415 = arith.addf %413, %414 : vector<1x128xf32>
    %416 = arith.negf %415 : vector<1x128xf32>
    %417 = math.exp %416 : vector<1x128xf32>
    %cst_111 = arith.constant 1.000000e+00 : f32
    %418 = vector.broadcast %cst_111 : f32 to vector<1x128xf32>
    %419 = arith.addf %418, %417 : vector<1x128xf32>
    %420 = arith.divf %418, %419 : vector<1x128xf32>
    %421 = vector.extract_strided_slice %420 {offsets = [0, 0], sizes = [1, 32], strides = [1, 1]} : vector<1x128xf32> to vector<1x32xf32>
    %422 = vector.extract_strided_slice %420 {offsets = [0, 32], sizes = [1, 32], strides = [1, 1]} : vector<1x128xf32> to vector<1x32xf32>
    %423 = vector.extract_strided_slice %420 {offsets = [0, 96], sizes = [1, 32], strides = [1, 1]} : vector<1x128xf32> to vector<1x32xf32>
    %424 = vector.extract_strided_slice %415 {offsets = [0, 64], sizes = [1, 32], strides = [1, 1]} : vector<1x128xf32> to vector<1x32xf32>
    %425 = math.tanh %424 : vector<1x32xf32>
    %426 = arith.mulf %422, %407 : vector<1x32xf32>
    %427 = arith.mulf %421, %425 : vector<1x32xf32>
    %428 = arith.addf %426, %427 : vector<1x32xf32>
    %429 = math.tanh %428 : vector<1x32xf32>
    %430 = arith.mulf %423, %429 : vector<1x32xf32>
    %431 = arith.index_cast %c2_i32_108 : i32 to index
    %c0_112 = arith.constant 0 : index
    %432 = vector.load %arg4[%431, %c0_112] : memref<8x32xf32, #tpu.memory_space<vmem>>, vector<1x32xf32>
    tpu.vector_store %arg4[%431, %c0_112], %430 {strides = array<i32>} : memref<8x32xf32, #tpu.memory_space<vmem>>, vector<1x32xf32>,
    %c3_i32_113 = arith.constant 3 : i32
    %433 = arith.index_cast %c3_i32_113 : i32 to index
    %c0_114 = arith.constant 0 : index
    %434 = vector.load %arg5[%433, %c0_114] : memref<8x128xf32, #tpu.memory_space<vmem>>, vector<1x128xf32>
    %cst_115 = arith.constant dense<0.000000e+00> : vector<1x128xf32>
    %435 = tpu.matmul %430, %360, %cst_115 {dimension_numbers = #tpu.dot_dimension_numbers<[1], [0], [0], [1], [0, 0, 1, 1], [], []>} : vector<1x32xf32>, vector<32x128xf32>, vector<1x128xf32> -> vector<1x128xf32>
    %436 = arith.addf %434, %435 : vector<1x128xf32>
    %437 = arith.negf %436 : vector<1x128xf32>
    %438 = math.exp %437 : vector<1x128xf32>
    %cst_116 = arith.constant 1.000000e+00 : f32
    %439 = vector.broadcast %cst_116 : f32 to vector<1x128xf32>
    %440 = arith.addf %439, %438 : vector<1x128xf32>
    %441 = arith.divf %439, %440 : vector<1x128xf32>
    %442 = vector.extract_strided_slice %441 {offsets = [0, 0], sizes = [1, 32], strides = [1, 1]} : vector<1x128xf32> to vector<1x32xf32>
    %443 = vector.extract_strided_slice %441 {offsets = [0, 32], sizes = [1, 32], strides = [1, 1]} : vector<1x128xf32> to vector<1x32xf32>
    %444 = vector.extract_strided_slice %441 {offsets = [0, 96], sizes = [1, 32], strides = [1, 1]} : vector<1x128xf32> to vector<1x32xf32>
    %445 = vector.extract_strided_slice %436 {offsets = [0, 64], sizes = [1, 32], strides = [1, 1]} : vector<1x128xf32> to vector<1x32xf32>
    %446 = math.tanh %445 : vector<1x32xf32>
    %447 = arith.mulf %443, %428 : vector<1x32xf32>
    %448 = arith.mulf %442, %446 : vector<1x32xf32>
    %449 = arith.addf %447, %448 : vector<1x32xf32>
    %450 = math.tanh %449 : vector<1x32xf32>
    %451 = arith.mulf %444, %450 : vector<1x32xf32>
    %452 = arith.index_cast %c3_i32_113 : i32 to index
    %c0_117 = arith.constant 0 : index
    %453 = vector.load %arg4[%452, %c0_117] : memref<8x32xf32, #tpu.memory_space<vmem>>, vector<1x32xf32>
    tpu.vector_store %arg4[%452, %c0_117], %451 {strides = array<i32>} : memref<8x32xf32, #tpu.memory_space<vmem>>, vector<1x32xf32>,
    %c4_i32_118 = arith.constant 4 : i32
    %454 = arith.index_cast %c4_i32_118 : i32 to index
    %c0_119 = arith.constant 0 : index
    %455 = vector.load %arg5[%454, %c0_119] : memref<8x128xf32, #tpu.memory_space<vmem>>, vector<1x128xf32>
    %cst_120 = arith.constant dense<0.000000e+00> : vector<1x128xf32>
    %456 = tpu.matmul %451, %360, %cst_120 {dimension_numbers = #tpu.dot_dimension_numbers<[1], [0], [0], [1], [0, 0, 1, 1], [], []>} : vector<1x32xf32>, vector<32x128xf32>, vector<1x128xf32> -> vector<1x128xf32>
    %457 = arith.addf %455, %456 : vector<1x128xf32>
    %458 = arith.negf %457 : vector<1x128xf32>
    %459 = math.exp %458 : vector<1x128xf32>
    %cst_121 = arith.constant 1.000000e+00 : f32
    %460 = vector.broadcast %cst_121 : f32 to vector<1x128xf32>
    %461 = arith.addf %460, %459 : vector<1x128xf32>
    %462 = arith.divf %460, %461 : vector<1x128xf32>
    %463 = vector.extract_strided_slice %462 {offsets = [0, 0], sizes = [1, 32], strides = [1, 1]} : vector<1x128xf32> to vector<1x32xf32>
    %464 = vector.extract_strided_slice %462 {offsets = [0, 32], sizes = [1, 32], strides = [1, 1]} : vector<1x128xf32> to vector<1x32xf32>
    %465 = vector.extract_strided_slice %462 {offsets = [0, 96], sizes = [1, 32], strides = [1, 1]} : vector<1x128xf32> to vector<1x32xf32>
    %466 = vector.extract_strided_slice %457 {offsets = [0, 64], sizes = [1, 32], strides = [1, 1]} : vector<1x128xf32> to vector<1x32xf32>
    %467 = math.tanh %466 : vector<1x32xf32>
    %468 = arith.mulf %464, %449 : vector<1x32xf32>
    %469 = arith.mulf %463, %467 : vector<1x32xf32>
    %470 = arith.addf %468, %469 : vector<1x32xf32>
    %471 = math.tanh %470 : vector<1x32xf32>
    %472 = arith.mulf %465, %471 : vector<1x32xf32>
    %473 = arith.index_cast %c4_i32_118 : i32 to index
    %c0_122 = arith.constant 0 : index
    %474 = vector.load %arg4[%473, %c0_122] : memref<8x32xf32, #tpu.memory_space<vmem>>, vector<1x32xf32>
    tpu.vector_store %arg4[%473, %c0_122], %472 {strides = array<i32>} : memref<8x32xf32, #tpu.memory_space<vmem>>, vector<1x32xf32>,
    %c5_i32_123 = arith.constant 5 : i32
    %475 = arith.index_cast %c5_i32_123 : i32 to index
    %c0_124 = arith.constant 0 : index
    %476 = vector.load %arg5[%475, %c0_124] : memref<8x128xf32, #tpu.memory_space<vmem>>, vector<1x128xf32>
    %cst_125 = arith.constant dense<0.000000e+00> : vector<1x128xf32>
    %477 = tpu.matmul %472, %360, %cst_125 {dimension_numbers = #tpu.dot_dimension_numbers<[1], [0], [0], [1], [0, 0, 1, 1], [], []>} : vector<1x32xf32>, vector<32x128xf32>, vector<1x128xf32> -> vector<1x128xf32>
    %478 = arith.addf %476, %477 : vector<1x128xf32>
    %479 = arith.negf %478 : vector<1x128xf32>
    %480 = math.exp %479 : vector<1x128xf32>
    %cst_126 = arith.constant 1.000000e+00 : f32
    %481 = vector.broadcast %cst_126 : f32 to vector<1x128xf32>
    %482 = arith.addf %481, %480 : vector<1x128xf32>
    %483 = arith.divf %481, %482 : vector<1x128xf32>
    %484 = vector.extract_strided_slice %483 {offsets = [0, 0], sizes = [1, 32], strides = [1, 1]} : vector<1x128xf32> to vector<1x32xf32>
    %485 = vector.extract_strided_slice %483 {offsets = [0, 32], sizes = [1, 32], strides = [1, 1]} : vector<1x128xf32> to vector<1x32xf32>
    %486 = vector.extract_strided_slice %483 {offsets = [0, 96], sizes = [1, 32], strides = [1, 1]} : vector<1x128xf32> to vector<1x32xf32>
    %487 = vector.extract_strided_slice %478 {offsets = [0, 64], sizes = [1, 32], strides = [1, 1]} : vector<1x128xf32> to vector<1x32xf32>
    %488 = math.tanh %487 : vector<1x32xf32>
    %489 = arith.mulf %485, %470 : vector<1x32xf32>
    %490 = arith.mulf %484, %488 : vector<1x32xf32>
    %491 = arith.addf %489, %490 : vector<1x32xf32>
    %492 = math.tanh %491 : vector<1x32xf32>
    %493 = arith.mulf %486, %492 : vector<1x32xf32>
    %494 = arith.index_cast %c5_i32_123 : i32 to index
    %c0_127 = arith.constant 0 : index
    %495 = vector.load %arg4[%494, %c0_127] : memref<8x32xf32, #tpu.memory_space<vmem>>, vector<1x32xf32>
    tpu.vector_store %arg4[%494, %c0_127], %493 {strides = array<i32>} : memref<8x32xf32, #tpu.memory_space<vmem>>, vector<1x32xf32>,
    %c6_i32_128 = arith.constant 6 : i32
    %496 = arith.index_cast %c6_i32_128 : i32 to index
    %c0_129 = arith.constant 0 : index
    %497 = vector.load %arg5[%496, %c0_129] : memref<8x128xf32, #tpu.memory_space<vmem>>, vector<1x128xf32>
    %cst_130 = arith.constant dense<0.000000e+00> : vector<1x128xf32>
    %498 = tpu.matmul %493, %360, %cst_130 {dimension_numbers = #tpu.dot_dimension_numbers<[1], [0], [0], [1], [0, 0, 1, 1], [], []>} : vector<1x32xf32>, vector<32x128xf32>, vector<1x128xf32> -> vector<1x128xf32>
    %499 = arith.addf %497, %498 : vector<1x128xf32>
    %500 = arith.negf %499 : vector<1x128xf32>
    %501 = math.exp %500 : vector<1x128xf32>
    %cst_131 = arith.constant 1.000000e+00 : f32
    %502 = vector.broadcast %cst_131 : f32 to vector<1x128xf32>
    %503 = arith.addf %502, %501 : vector<1x128xf32>
    %504 = arith.divf %502, %503 : vector<1x128xf32>
    %505 = vector.extract_strided_slice %504 {offsets = [0, 0], sizes = [1, 32], strides = [1, 1]} : vector<1x128xf32> to vector<1x32xf32>
    %506 = vector.extract_strided_slice %504 {offsets = [0, 32], sizes = [1, 32], strides = [1, 1]} : vector<1x128xf32> to vector<1x32xf32>
    %507 = vector.extract_strided_slice %504 {offsets = [0, 96], sizes = [1, 32], strides = [1, 1]} : vector<1x128xf32> to vector<1x32xf32>
    %508 = vector.extract_strided_slice %499 {offsets = [0, 64], sizes = [1, 32], strides = [1, 1]} : vector<1x128xf32> to vector<1x32xf32>
    %509 = math.tanh %508 : vector<1x32xf32>
    %510 = arith.mulf %506, %491 : vector<1x32xf32>
    %511 = arith.mulf %505, %509 : vector<1x32xf32>
    %512 = arith.addf %510, %511 : vector<1x32xf32>
    %513 = math.tanh %512 : vector<1x32xf32>
    %514 = arith.mulf %507, %513 : vector<1x32xf32>
    %515 = arith.index_cast %c6_i32_128 : i32 to index
    %c0_132 = arith.constant 0 : index
    %516 = vector.load %arg4[%515, %c0_132] : memref<8x32xf32, #tpu.memory_space<vmem>>, vector<1x32xf32>
    tpu.vector_store %arg4[%515, %c0_132], %514 {strides = array<i32>} : memref<8x32xf32, #tpu.memory_space<vmem>>, vector<1x32xf32>,
    %c7_i32_133 = arith.constant 7 : i32
    %517 = arith.index_cast %c7_i32_133 : i32 to index
    %c0_134 = arith.constant 0 : index
    %518 = vector.load %arg5[%517, %c0_134] : memref<8x128xf32, #tpu.memory_space<vmem>>, vector<1x128xf32>
    %cst_135 = arith.constant dense<0.000000e+00> : vector<1x128xf32>
    %519 = tpu.matmul %514, %360, %cst_135 {dimension_numbers = #tpu.dot_dimension_numbers<[1], [0], [0], [1], [0, 0, 1, 1], [], []>} : vector<1x32xf32>, vector<32x128xf32>, vector<1x128xf32> -> vector<1x128xf32>
    %520 = arith.addf %518, %519 : vector<1x128xf32>
    %521 = arith.negf %520 : vector<1x128xf32>
    %522 = math.exp %521 : vector<1x128xf32>
    %cst_136 = arith.constant 1.000000e+00 : f32
    %523 = vector.broadcast %cst_136 : f32 to vector<1x128xf32>
    %524 = arith.addf %523, %522 : vector<1x128xf32>
    %525 = arith.divf %523, %524 : vector<1x128xf32>
    %526 = vector.extract_strided_slice %525 {offsets = [0, 0], sizes = [1, 32], strides = [1, 1]} : vector<1x128xf32> to vector<1x32xf32>
    %527 = vector.extract_strided_slice %525 {offsets = [0, 32], sizes = [1, 32], strides = [1, 1]} : vector<1x128xf32> to vector<1x32xf32>
    %528 = vector.extract_strided_slice %525 {offsets = [0, 96], sizes = [1, 32], strides = [1, 1]} : vector<1x128xf32> to vector<1x32xf32>
    %529 = vector.extract_strided_slice %520 {offsets = [0, 64], sizes = [1, 32], strides = [1, 1]} : vector<1x128xf32> to vector<1x32xf32>
    %530 = math.tanh %529 : vector<1x32xf32>
    %531 = arith.mulf %527, %512 : vector<1x32xf32>
    %532 = arith.mulf %526, %530 : vector<1x32xf32>
    %533 = arith.addf %531, %532 : vector<1x32xf32>
    %534 = math.tanh %533 : vector<1x32xf32>
    %535 = arith.mulf %528, %534 : vector<1x32xf32>
    %536 = arith.index_cast %c7_i32_133 : i32 to index
    %c0_137 = arith.constant 0 : index
    %537 = vector.load %arg4[%536, %c0_137] : memref<8x32xf32, #tpu.memory_space<vmem>>, vector<1x32xf32>
    tpu.vector_store %arg4[%536, %c0_137], %535 {strides = array<i32>} : memref<8x32xf32, #tpu.memory_space<vmem>>, vector<1x32xf32>,
    %c8_i32_138 = arith.constant 8 : i32
    %c248 = arith.constant 248 : index
    %c0_139 = arith.constant 0 : index
    %538 = vector.load %arg1[%c248, %c0_139] : memref<288x128xf32, #tpu.memory_space<vmem>>, vector<32x128xf32>
    %c280 = arith.constant 280 : index
    %c0_140 = arith.constant 0 : index
    %539 = vector.load %arg1[%c280, %c0_140] : memref<288x128xf32, #tpu.memory_space<vmem>>, vector<1x128xf32>
    %c0_141 = arith.constant 0 : index
    %c0_142 = arith.constant 0 : index
    %540 = vector.load %arg4[%c0_141, %c0_142] : memref<8x32xf32, #tpu.memory_space<vmem>>, vector<8x32xf32>
    %c216 = arith.constant 216 : index
    %c0_143 = arith.constant 0 : index
    %541 = vector.load %arg1[%c216, %c0_143] : memref<288x128xf32, #tpu.memory_space<vmem>>, vector<32x128xf32>
    %cst_144 = arith.constant dense<0.000000e+00> : vector<8x128xf32>
    %542 = tpu.matmul %540, %541, %cst_144 {dimension_numbers = #tpu.dot_dimension_numbers<[1], [0], [0], [1], [0, 0, 1, 1], [], []>} : vector<8x32xf32>, vector<32x128xf32>, vector<8x128xf32> -> vector<8x128xf32>
    %543 = vector.shape_cast %539 : vector<1x128xf32> to vector<1x128xf32>
    %544 = vector.broadcast %543 : vector<1x128xf32> to vector<8x128xf32>
    %545 = arith.addf %542, %544 : vector<8x128xf32>
    %c0_145 = arith.constant 0 : index
    %c0_146 = arith.constant 0 : index
    %546 = vector.load %arg5[%c0_145, %c0_146] : memref<8x128xf32, #tpu.memory_space<vmem>>, vector<8x128xf32>
    tpu.vector_store %arg5[%c0_145, %c0_146], %545 {strides = array<i32>} : memref<8x128xf32, #tpu.memory_space<vmem>>, vector<8x128xf32>,
    %cst_147 = arith.constant 0.000000e+00 : f32
    %547 = vector.broadcast %cst_147 : f32 to vector<1x32xf32>
    %c0_i32_148 = arith.constant 0 : i32
    %548 = arith.index_cast %c0_i32_148 : i32 to index
    %c0_149 = arith.constant 0 : index
    %549 = vector.load %arg5[%548, %c0_149] : memref<8x128xf32, #tpu.memory_space<vmem>>, vector<1x128xf32>
    %cst_150 = arith.constant dense<0.000000e+00> : vector<1x128xf32>
    %550 = tpu.matmul %547, %538, %cst_150 {dimension_numbers = #tpu.dot_dimension_numbers<[1], [0], [0], [1], [0, 0, 1, 1], [], []>} : vector<1x32xf32>, vector<32x128xf32>, vector<1x128xf32> -> vector<1x128xf32>
    %551 = arith.addf %549, %550 : vector<1x128xf32>
    %552 = arith.negf %551 : vector<1x128xf32>
    %553 = math.exp %552 : vector<1x128xf32>
    %cst_151 = arith.constant 1.000000e+00 : f32
    %554 = vector.broadcast %cst_151 : f32 to vector<1x128xf32>
    %555 = arith.addf %554, %553 : vector<1x128xf32>
    %556 = arith.divf %554, %555 : vector<1x128xf32>
    %557 = vector.extract_strided_slice %556 {offsets = [0, 0], sizes = [1, 32], strides = [1, 1]} : vector<1x128xf32> to vector<1x32xf32>
    %558 = vector.extract_strided_slice %556 {offsets = [0, 32], sizes = [1, 32], strides = [1, 1]} : vector<1x128xf32> to vector<1x32xf32>
    %559 = vector.extract_strided_slice %556 {offsets = [0, 96], sizes = [1, 32], strides = [1, 1]} : vector<1x128xf32> to vector<1x32xf32>
    %560 = vector.extract_strided_slice %551 {offsets = [0, 64], sizes = [1, 32], strides = [1, 1]} : vector<1x128xf32> to vector<1x32xf32>
    %561 = math.tanh %560 : vector<1x32xf32>
    %562 = arith.mulf %558, %547 : vector<1x32xf32>
    %563 = arith.mulf %557, %561 : vector<1x32xf32>
    %564 = arith.addf %562, %563 : vector<1x32xf32>
    %565 = math.tanh %564 : vector<1x32xf32>
    %566 = arith.mulf %559, %565 : vector<1x32xf32>
    %567 = arith.index_cast %c0_i32_148 : i32 to index
    %c0_152 = arith.constant 0 : index
    %568 = vector.load %arg4[%567, %c0_152] : memref<8x32xf32, #tpu.memory_space<vmem>>, vector<1x32xf32>
    tpu.vector_store %arg4[%567, %c0_152], %566 {strides = array<i32>} : memref<8x32xf32, #tpu.memory_space<vmem>>, vector<1x32xf32>,
    %c1_i32_153 = arith.constant 1 : i32
    %569 = arith.index_cast %c1_i32_153 : i32 to index
    %c0_154 = arith.constant 0 : index
    %570 = vector.load %arg5[%569, %c0_154] : memref<8x128xf32, #tpu.memory_space<vmem>>, vector<1x128xf32>
    %cst_155 = arith.constant dense<0.000000e+00> : vector<1x128xf32>
    %571 = tpu.matmul %566, %538, %cst_155 {dimension_numbers = #tpu.dot_dimension_numbers<[1], [0], [0], [1], [0, 0, 1, 1], [], []>} : vector<1x32xf32>, vector<32x128xf32>, vector<1x128xf32> -> vector<1x128xf32>
    %572 = arith.addf %570, %571 : vector<1x128xf32>
    %573 = arith.negf %572 : vector<1x128xf32>
    %574 = math.exp %573 : vector<1x128xf32>
    %cst_156 = arith.constant 1.000000e+00 : f32
    %575 = vector.broadcast %cst_156 : f32 to vector<1x128xf32>
    %576 = arith.addf %575, %574 : vector<1x128xf32>
    %577 = arith.divf %575, %576 : vector<1x128xf32>
    %578 = vector.extract_strided_slice %577 {offsets = [0, 0], sizes = [1, 32], strides = [1, 1]} : vector<1x128xf32> to vector<1x32xf32>
    %579 = vector.extract_strided_slice %577 {offsets = [0, 32], sizes = [1, 32], strides = [1, 1]} : vector<1x128xf32> to vector<1x32xf32>
    %580 = vector.extract_strided_slice %577 {offsets = [0, 96], sizes = [1, 32], strides = [1, 1]} : vector<1x128xf32> to vector<1x32xf32>
    %581 = vector.extract_strided_slice %572 {offsets = [0, 64], sizes = [1, 32], strides = [1, 1]} : vector<1x128xf32> to vector<1x32xf32>
    %582 = math.tanh %581 : vector<1x32xf32>
    %583 = arith.mulf %579, %564 : vector<1x32xf32>
    %584 = arith.mulf %578, %582 : vector<1x32xf32>
    %585 = arith.addf %583, %584 : vector<1x32xf32>
    %586 = math.tanh %585 : vector<1x32xf32>
    %587 = arith.mulf %580, %586 : vector<1x32xf32>
    %588 = arith.index_cast %c1_i32_153 : i32 to index
    %c0_157 = arith.constant 0 : index
    %589 = vector.load %arg4[%588, %c0_157] : memref<8x32xf32, #tpu.memory_space<vmem>>, vector<1x32xf32>
    tpu.vector_store %arg4[%588, %c0_157], %587 {strides = array<i32>} : memref<8x32xf32, #tpu.memory_space<vmem>>, vector<1x32xf32>,
    %c2_i32_158 = arith.constant 2 : i32
    %590 = arith.index_cast %c2_i32_158 : i32 to index
    %c0_159 = arith.constant 0 : index
    %591 = vector.load %arg5[%590, %c0_159] : memref<8x128xf32, #tpu.memory_space<vmem>>, vector<1x128xf32>
    %cst_160 = arith.constant dense<0.000000e+00> : vector<1x128xf32>
    %592 = tpu.matmul %587, %538, %cst_160 {dimension_numbers = #tpu.dot_dimension_numbers<[1], [0], [0], [1], [0, 0, 1, 1], [], []>} : vector<1x32xf32>, vector<32x128xf32>, vector<1x128xf32> -> vector<1x128xf32>
    %593 = arith.addf %591, %592 : vector<1x128xf32>
    %594 = arith.negf %593 : vector<1x128xf32>
    %595 = math.exp %594 : vector<1x128xf32>
    %cst_161 = arith.constant 1.000000e+00 : f32
    %596 = vector.broadcast %cst_161 : f32 to vector<1x128xf32>
    %597 = arith.addf %596, %595 : vector<1x128xf32>
    %598 = arith.divf %596, %597 : vector<1x128xf32>
    %599 = vector.extract_strided_slice %598 {offsets = [0, 0], sizes = [1, 32], strides = [1, 1]} : vector<1x128xf32> to vector<1x32xf32>
    %600 = vector.extract_strided_slice %598 {offsets = [0, 32], sizes = [1, 32], strides = [1, 1]} : vector<1x128xf32> to vector<1x32xf32>
    %601 = vector.extract_strided_slice %598 {offsets = [0, 96], sizes = [1, 32], strides = [1, 1]} : vector<1x128xf32> to vector<1x32xf32>
    %602 = vector.extract_strided_slice %593 {offsets = [0, 64], sizes = [1, 32], strides = [1, 1]} : vector<1x128xf32> to vector<1x32xf32>
    %603 = math.tanh %602 : vector<1x32xf32>
    %604 = arith.mulf %600, %585 : vector<1x32xf32>
    %605 = arith.mulf %599, %603 : vector<1x32xf32>
    %606 = arith.addf %604, %605 : vector<1x32xf32>
    %607 = math.tanh %606 : vector<1x32xf32>
    %608 = arith.mulf %601, %607 : vector<1x32xf32>
    %609 = arith.index_cast %c2_i32_158 : i32 to index
    %c0_162 = arith.constant 0 : index
    %610 = vector.load %arg4[%609, %c0_162] : memref<8x32xf32, #tpu.memory_space<vmem>>, vector<1x32xf32>
    tpu.vector_store %arg4[%609, %c0_162], %608 {strides = array<i32>} : memref<8x32xf32, #tpu.memory_space<vmem>>, vector<1x32xf32>,
    %c3_i32_163 = arith.constant 3 : i32
    %611 = arith.index_cast %c3_i32_163 : i32 to index
    %c0_164 = arith.constant 0 : index
    %612 = vector.load %arg5[%611, %c0_164] : memref<8x128xf32, #tpu.memory_space<vmem>>, vector<1x128xf32>
    %cst_165 = arith.constant dense<0.000000e+00> : vector<1x128xf32>
    %613 = tpu.matmul %608, %538, %cst_165 {dimension_numbers = #tpu.dot_dimension_numbers<[1], [0], [0], [1], [0, 0, 1, 1], [], []>} : vector<1x32xf32>, vector<32x128xf32>, vector<1x128xf32> -> vector<1x128xf32>
    %614 = arith.addf %612, %613 : vector<1x128xf32>
    %615 = arith.negf %614 : vector<1x128xf32>
    %616 = math.exp %615 : vector<1x128xf32>
    %cst_166 = arith.constant 1.000000e+00 : f32
    %617 = vector.broadcast %cst_166 : f32 to vector<1x128xf32>
    %618 = arith.addf %617, %616 : vector<1x128xf32>
    %619 = arith.divf %617, %618 : vector<1x128xf32>
    %620 = vector.extract_strided_slice %619 {offsets = [0, 0], sizes = [1, 32], strides = [1, 1]} : vector<1x128xf32> to vector<1x32xf32>
    %621 = vector.extract_strided_slice %619 {offsets = [0, 32], sizes = [1, 32], strides = [1, 1]} : vector<1x128xf32> to vector<1x32xf32>
    %622 = vector.extract_strided_slice %619 {offsets = [0, 96], sizes = [1, 32], strides = [1, 1]} : vector<1x128xf32> to vector<1x32xf32>
    %623 = vector.extract_strided_slice %614 {offsets = [0, 64], sizes = [1, 32], strides = [1, 1]} : vector<1x128xf32> to vector<1x32xf32>
    %624 = math.tanh %623 : vector<1x32xf32>
    %625 = arith.mulf %621, %606 : vector<1x32xf32>
    %626 = arith.mulf %620, %624 : vector<1x32xf32>
    %627 = arith.addf %625, %626 : vector<1x32xf32>
    %628 = math.tanh %627 : vector<1x32xf32>
    %629 = arith.mulf %622, %628 : vector<1x32xf32>
    %630 = arith.index_cast %c3_i32_163 : i32 to index
    %c0_167 = arith.constant 0 : index
    %631 = vector.load %arg4[%630, %c0_167] : memref<8x32xf32, #tpu.memory_space<vmem>>, vector<1x32xf32>
    tpu.vector_store %arg4[%630, %c0_167], %629 {strides = array<i32>} : memref<8x32xf32, #tpu.memory_space<vmem>>, vector<1x32xf32>,
    %c4_i32_168 = arith.constant 4 : i32
    %632 = arith.index_cast %c4_i32_168 : i32 to index
    %c0_169 = arith.constant 0 : index
    %633 = vector.load %arg5[%632, %c0_169] : memref<8x128xf32, #tpu.memory_space<vmem>>, vector<1x128xf32>
    %cst_170 = arith.constant dense<0.000000e+00> : vector<1x128xf32>
    %634 = tpu.matmul %629, %538, %cst_170 {dimension_numbers = #tpu.dot_dimension_numbers<[1], [0], [0], [1], [0, 0, 1, 1], [], []>} : vector<1x32xf32>, vector<32x128xf32>, vector<1x128xf32> -> vector<1x128xf32>
    %635 = arith.addf %633, %634 : vector<1x128xf32>
    %636 = arith.negf %635 : vector<1x128xf32>
    %637 = math.exp %636 : vector<1x128xf32>
    %cst_171 = arith.constant 1.000000e+00 : f32
    %638 = vector.broadcast %cst_171 : f32 to vector<1x128xf32>
    %639 = arith.addf %638, %637 : vector<1x128xf32>
    %640 = arith.divf %638, %639 : vector<1x128xf32>
    %641 = vector.extract_strided_slice %640 {offsets = [0, 0], sizes = [1, 32], strides = [1, 1]} : vector<1x128xf32> to vector<1x32xf32>
    %642 = vector.extract_strided_slice %640 {offsets = [0, 32], sizes = [1, 32], strides = [1, 1]} : vector<1x128xf32> to vector<1x32xf32>
    %643 = vector.extract_strided_slice %640 {offsets = [0, 96], sizes = [1, 32], strides = [1, 1]} : vector<1x128xf32> to vector<1x32xf32>
    %644 = vector.extract_strided_slice %635 {offsets = [0, 64], sizes = [1, 32], strides = [1, 1]} : vector<1x128xf32> to vector<1x32xf32>
    %645 = math.tanh %644 : vector<1x32xf32>
    %646 = arith.mulf %642, %627 : vector<1x32xf32>
    %647 = arith.mulf %641, %645 : vector<1x32xf32>
    %648 = arith.addf %646, %647 : vector<1x32xf32>
    %649 = math.tanh %648 : vector<1x32xf32>
    %650 = arith.mulf %643, %649 : vector<1x32xf32>
    %651 = arith.index_cast %c4_i32_168 : i32 to index
    %c0_172 = arith.constant 0 : index
    %652 = vector.load %arg4[%651, %c0_172] : memref<8x32xf32, #tpu.memory_space<vmem>>, vector<1x32xf32>
    tpu.vector_store %arg4[%651, %c0_172], %650 {strides = array<i32>} : memref<8x32xf32, #tpu.memory_space<vmem>>, vector<1x32xf32>,
    %c5_i32_173 = arith.constant 5 : i32
    %653 = arith.index_cast %c5_i32_173 : i32 to index
    %c0_174 = arith.constant 0 : index
    %654 = vector.load %arg5[%653, %c0_174] : memref<8x128xf32, #tpu.memory_space<vmem>>, vector<1x128xf32>
    %cst_175 = arith.constant dense<0.000000e+00> : vector<1x128xf32>
    %655 = tpu.matmul %650, %538, %cst_175 {dimension_numbers = #tpu.dot_dimension_numbers<[1], [0], [0], [1], [0, 0, 1, 1], [], []>} : vector<1x32xf32>, vector<32x128xf32>, vector<1x128xf32> -> vector<1x128xf32>
    %656 = arith.addf %654, %655 : vector<1x128xf32>
    %657 = arith.negf %656 : vector<1x128xf32>
    %658 = math.exp %657 : vector<1x128xf32>
    %cst_176 = arith.constant 1.000000e+00 : f32
    %659 = vector.broadcast %cst_176 : f32 to vector<1x128xf32>
    %660 = arith.addf %659, %658 : vector<1x128xf32>
    %661 = arith.divf %659, %660 : vector<1x128xf32>
    %662 = vector.extract_strided_slice %661 {offsets = [0, 0], sizes = [1, 32], strides = [1, 1]} : vector<1x128xf32> to vector<1x32xf32>
    %663 = vector.extract_strided_slice %661 {offsets = [0, 32], sizes = [1, 32], strides = [1, 1]} : vector<1x128xf32> to vector<1x32xf32>
    %664 = vector.extract_strided_slice %661 {offsets = [0, 96], sizes = [1, 32], strides = [1, 1]} : vector<1x128xf32> to vector<1x32xf32>
    %665 = vector.extract_strided_slice %656 {offsets = [0, 64], sizes = [1, 32], strides = [1, 1]} : vector<1x128xf32> to vector<1x32xf32>
    %666 = math.tanh %665 : vector<1x32xf32>
    %667 = arith.mulf %663, %648 : vector<1x32xf32>
    %668 = arith.mulf %662, %666 : vector<1x32xf32>
    %669 = arith.addf %667, %668 : vector<1x32xf32>
    %670 = math.tanh %669 : vector<1x32xf32>
    %671 = arith.mulf %664, %670 : vector<1x32xf32>
    %672 = arith.index_cast %c5_i32_173 : i32 to index
    %c0_177 = arith.constant 0 : index
    %673 = vector.load %arg4[%672, %c0_177] : memref<8x32xf32, #tpu.memory_space<vmem>>, vector<1x32xf32>
    tpu.vector_store %arg4[%672, %c0_177], %671 {strides = array<i32>} : memref<8x32xf32, #tpu.memory_space<vmem>>, vector<1x32xf32>,
    %c6_i32_178 = arith.constant 6 : i32
    %674 = arith.index_cast %c6_i32_178 : i32 to index
    %c0_179 = arith.constant 0 : index
    %675 = vector.load %arg5[%674, %c0_179] : memref<8x128xf32, #tpu.memory_space<vmem>>, vector<1x128xf32>
    %cst_180 = arith.constant dense<0.000000e+00> : vector<1x128xf32>
    %676 = tpu.matmul %671, %538, %cst_180 {dimension_numbers = #tpu.dot_dimension_numbers<[1], [0], [0], [1], [0, 0, 1, 1], [], []>} : vector<1x32xf32>, vector<32x128xf32>, vector<1x128xf32> -> vector<1x128xf32>
    %677 = arith.addf %675, %676 : vector<1x128xf32>
    %678 = arith.negf %677 : vector<1x128xf32>
    %679 = math.exp %678 : vector<1x128xf32>
    %cst_181 = arith.constant 1.000000e+00 : f32
    %680 = vector.broadcast %cst_181 : f32 to vector<1x128xf32>
    %681 = arith.addf %680, %679 : vector<1x128xf32>
    %682 = arith.divf %680, %681 : vector<1x128xf32>
    %683 = vector.extract_strided_slice %682 {offsets = [0, 0], sizes = [1, 32], strides = [1, 1]} : vector<1x128xf32> to vector<1x32xf32>
    %684 = vector.extract_strided_slice %682 {offsets = [0, 32], sizes = [1, 32], strides = [1, 1]} : vector<1x128xf32> to vector<1x32xf32>
    %685 = vector.extract_strided_slice %682 {offsets = [0, 96], sizes = [1, 32], strides = [1, 1]} : vector<1x128xf32> to vector<1x32xf32>
    %686 = vector.extract_strided_slice %677 {offsets = [0, 64], sizes = [1, 32], strides = [1, 1]} : vector<1x128xf32> to vector<1x32xf32>
    %687 = math.tanh %686 : vector<1x32xf32>
    %688 = arith.mulf %684, %669 : vector<1x32xf32>
    %689 = arith.mulf %683, %687 : vector<1x32xf32>
    %690 = arith.addf %688, %689 : vector<1x32xf32>
    %691 = math.tanh %690 : vector<1x32xf32>
    %692 = arith.mulf %685, %691 : vector<1x32xf32>
    %693 = arith.index_cast %c6_i32_178 : i32 to index
    %c0_182 = arith.constant 0 : index
    %694 = vector.load %arg4[%693, %c0_182] : memref<8x32xf32, #tpu.memory_space<vmem>>, vector<1x32xf32>
    tpu.vector_store %arg4[%693, %c0_182], %692 {strides = array<i32>} : memref<8x32xf32, #tpu.memory_space<vmem>>, vector<1x32xf32>,
    %c7_i32_183 = arith.constant 7 : i32
    %695 = arith.index_cast %c7_i32_183 : i32 to index
    %c0_184 = arith.constant 0 : index
    %696 = vector.load %arg5[%695, %c0_184] : memref<8x128xf32, #tpu.memory_space<vmem>>, vector<1x128xf32>
    %cst_185 = arith.constant dense<0.000000e+00> : vector<1x128xf32>
    %697 = tpu.matmul %692, %538, %cst_185 {dimension_numbers = #tpu.dot_dimension_numbers<[1], [0], [0], [1], [0, 0, 1, 1], [], []>} : vector<1x32xf32>, vector<32x128xf32>, vector<1x128xf32> -> vector<1x128xf32>
    %698 = arith.addf %696, %697 : vector<1x128xf32>
    %699 = arith.negf %698 : vector<1x128xf32>
    %700 = math.exp %699 : vector<1x128xf32>
    %cst_186 = arith.constant 1.000000e+00 : f32
    %701 = vector.broadcast %cst_186 : f32 to vector<1x128xf32>
    %702 = arith.addf %701, %700 : vector<1x128xf32>
    %703 = arith.divf %701, %702 : vector<1x128xf32>
    %704 = vector.extract_strided_slice %703 {offsets = [0, 0], sizes = [1, 32], strides = [1, 1]} : vector<1x128xf32> to vector<1x32xf32>
    %705 = vector.extract_strided_slice %703 {offsets = [0, 32], sizes = [1, 32], strides = [1, 1]} : vector<1x128xf32> to vector<1x32xf32>
    %706 = vector.extract_strided_slice %703 {offsets = [0, 96], sizes = [1, 32], strides = [1, 1]} : vector<1x128xf32> to vector<1x32xf32>
    %707 = vector.extract_strided_slice %698 {offsets = [0, 64], sizes = [1, 32], strides = [1, 1]} : vector<1x128xf32> to vector<1x32xf32>
    %708 = math.tanh %707 : vector<1x32xf32>
    %709 = arith.mulf %705, %690 : vector<1x32xf32>
    %710 = arith.mulf %704, %708 : vector<1x32xf32>
    %711 = arith.addf %709, %710 : vector<1x32xf32>
    %712 = math.tanh %711 : vector<1x32xf32>
    %713 = arith.mulf %706, %712 : vector<1x32xf32>
    %714 = arith.index_cast %c7_i32_183 : i32 to index
    %c0_187 = arith.constant 0 : index
    %715 = vector.load %arg4[%714, %c0_187] : memref<8x32xf32, #tpu.memory_space<vmem>>, vector<1x32xf32>
    tpu.vector_store %arg4[%714, %c0_187], %713 {strides = array<i32>} : memref<8x32xf32, #tpu.memory_space<vmem>>, vector<1x32xf32>,
    %c8_i32_188 = arith.constant 8 : i32
    %c0_189 = arith.constant 0 : index
    %c0_190 = arith.constant 0 : index
    %716 = vector.load %arg2[%c0_189, %c0_190] : memref<33x1xf32, #tpu.memory_space<vmem>>, vector<32x1xf32>
    %c32_191 = arith.constant 32 : index
    %c0_192 = arith.constant 0 : index
    %717 = vector.load %arg2[%c32_191, %c0_192] : memref<33x1xf32, #tpu.memory_space<vmem>>, vector<1x1xf32>
    %c0_193 = arith.constant 0 : index
    %c0_194 = arith.constant 0 : index
    %718 = vector.load %arg4[%c0_193, %c0_194] : memref<8x32xf32, #tpu.memory_space<vmem>>, vector<8x32xf32>
    %cst_195 = arith.constant dense<0.000000e+00> : vector<8x1xf32>
    %719 = tpu.matmul %718, %716, %cst_195 {dimension_numbers = #tpu.dot_dimension_numbers<[1], [0], [0], [1], [0, 0, 1, 1], [], []>} : vector<8x32xf32>, vector<32x1xf32>, vector<8x1xf32> -> vector<8x1xf32>
    %720 = vector.shape_cast %717 : vector<1x1xf32> to vector<1x1xf32>
    %721 = vector.broadcast %720 : vector<1x1xf32> to vector<8x1xf32>
    %722 = arith.addf %719, %721 : vector<8x1xf32>
    %c0_196 = arith.constant 0 : index
    %c0_197 = arith.constant 0 : index
    %723 = vector.load %arg3[%c0_196, %c0_197] : memref<8x1xf32, #tpu.memory_space<vmem>>, vector<8x1xf32>
    tpu.vector_store %arg3[%c0_196, %c0_197], %722 {strides = array<i32>} : memref<8x1xf32, #tpu.memory_space<vmem>>, vector<8x1xf32>,
    return
  }
}

</mosaic_0001>

<llo_original>
// kernel: lstm_forward.1
$region0: #{lstm_forward.1}
  #allocation0 [shape = 'u32[]', space=smem, size = 0x4, offset = 0x4, fixed_abs, tag = 'smem constant byte address 0x4 - core index']
  #allocation1 [shape = 'u32[144,128]{1,0:T(1,128)}', space=vmem, size = 0x12000, scoped, tag = 'internal scratch']
  #allocation2 [shape = 'f32[8,32]{1,0:T(8,128)}', space=vmem, size = 0x1000, scoped, tag = 'scratch operand']
  #allocation3 [shape = 'f32[8,128]{1,0:T(8,128)}', space=vmem, size = 0x1000, scoped, tag = 'scratch operand']
  %s0 = inlined_call_operand.vmem [shape: f32[8,1], index: 0, kind: input, shape index: {}]
  %s1 = inlined_call_operand.hbm [shape: f32[288,128], index: 1, kind: input, shape index: {}]
  %s2 = inlined_call_operand.vmem [shape: f32[33,1], index: 2, kind: input, shape index: {}]
  %s3 = inlined_call_operand.vmem [shape: f32[8,1], index: 3, kind: output, shape index: {}]
  %s4 = sld [smem:[#allocation0]]
  $region26: #{lstm_forward.1} parent=0
    _
  %s6 = ssub.s32 1, %s4
  %s7 = scalar_select 0, %s6, %s4
  $region1: #{lstm_forward.1} parent=0
    #allocation4 [shape = 'u8[147456]{0}', space=vmem, size = 0x24000, scoped, tag = 'input window, operand 1, single buffered']
    #allocation5 [shape = 's32[1]{0}', space=sflag, size = 0x4, scoped, tag = 'scoped memory for lstm_forward.1']
    %8 = vsyncpa [#allocation5], 0
    // Predicated region
    $region2: #{lstm_forward.1} parent=1 // pred_check
      _
    $region3: #{lstm_forward.1} parent=1 // pred_check_branch
      %10 = sbr.rel (0) target = $region5
    $region4: #{lstm_forward.1} parent=1 // pred_region
      _
    $region5: #{lstm_forward.1} parent=1 // pred_fallthru
      _
    // Predicated region
    $region6: #{lstm_forward.1} parent=1 // pred_check
      _
    $region7: #{lstm_forward.1} parent=1 // pred_check_branch
      %12 = sbr.rel (0) target = $region9
    $region8: #{lstm_forward.1} parent=1 // pred_region
      %s14 = ssub.s32 4608, 4608
      %15 = vsyncadd [#allocation5], %s14
      %s16 = sshll.u32 [#allocation4], 4
      %s17 = int_to_ptr.vmem [resolvable:$true] %s16
      %22 = dma.hbm_to_vmem [thread:$0]  %s1, 4608, %s17, [#allocation5], 128, 128, 8
    $region9: #{lstm_forward.1} parent=1 // pred_fallthru
      _
    // Predicated region
    $region10: #{lstm_forward.1} parent=1 // pred_check
      _
    $region11: #{lstm_forward.1} parent=1 // pred_check_branch
      %24 = sbr.rel (0) target = $region13
    $region12: #{lstm_forward.1} parent=1 // pred_region
      _
    $region13: #{lstm_forward.1} parent=1 // pred_fallthru
      _
    // Predicated region
    $region14: #{lstm_forward.1} parent=1 // pred_check
      _
    $region15: #{lstm_forward.1} parent=1 // pred_check_branch
      %26 = sbr.rel (0) target = $region17
    $region16: #{lstm_forward.1} parent=1 // pred_region
      %27 = dma.done [#allocation5], 4608
    $region17: #{lstm_forward.1} parent=1 // pred_fallthru
      _
    %v28 = vld [vmem:[#allocation4 + $0x20] sm:$0xff]
    %v29 = vld [vmem:[#allocation4 + $0x28] sm:$0xff]
    %v30 = vld [vmem:[#allocation4 + $0x30] sm:$0xff]
    %v31 = vld [vmem:[#allocation4 + $0x38] sm:$0xff]
    %v32 = vld [vmem:[#allocation4 + $0x40] sm:$0x1]
    %v33 = vld [vmem:[%s0] sm:$0xff]
    %35 = vset.pattern.permute.xlu0 0
    %36 = vperm.xlu0 %35, %v33
    %v37 = vpop.permute.xlu0 %36
    %v39 = vld [vmem:[#allocation4] sm:$0x1]
    %v40 = vlaneseq
    %v41 = vshrl.u32 %v40, 7
    %v42 = vsub.s32 0, %v41
    %v43 = vrot.slane %v39, %v42
    %v44 = vmul.f32 %v37, %v43
    %v45 = vlaneseq
    %v46 = vshrl.u32 %v45, 7
    %v47 = vsub.s32 0, %v46
    %v48 = vrot.slane %v32, %v47
    %v49 = vadd.f32 %v44, %v48
    %50 = vst [vmem:[#allocation3] sm:$0xff] %v49
    %v51 = vld [vmem:[#allocation3] sm:$0x1]
    %vm52 = vcmask 261120
    %v54 = vsel %vm52, 0.0, 0
    %56 = vmatprep.subr.mxu0 0.0
    %57 = vmatpush1.msra.mxu0 %v28
    %58 = vmatprep.subr.mxu0 0.0
    %59 = vmatpush1.msra.mxu0 %v29
    %60 = vmatprep.subr.mxu0 0.0
    %61 = vmatpush1.msra.mxu0 %v30
    %62 = vmatprep.subr.mxu0 0.0
    %63 = vmatpush1.msra.mxu0 %v31
    %64 = vmatprep.subr.mxu0 0.0
    %65 = vmatpush1.msra.mxu0 0.0
    %66 = vmatprep.subr.mxu0 0.0
    %67 = vmatpush1.msra.mxu0 0.0
    %68 = vmatprep.subr.mxu0 0.0
    %69 = vmatpush1.msra.mxu0 0.0
    %70 = vmatprep.subr.mxu0 0.0
    %71 = vmatpush1.msra.mxu0 0.0
    %72 = vmatprep.subr.mxu0 0.0
    %73 = vmatpush1.msra.mxu0 0.0
    %74 = vmatprep.subr.mxu0 0.0
    %75 = vmatpush1.msra.mxu0 0.0
    %76 = vmatprep.subr.mxu0 0.0
    %77 = vmatpush1.msra.mxu0 0.0
    %78 = vmatprep.subr.mxu0 0.0
    %79 = vmatpush1.msra.mxu0 0.0
    %80 = vmatprep.subr.mxu0 0.0
    %81 = vmatpush1.msra.mxu0 0.0
    %82 = vmatprep.subr.mxu0 0.0
    %83 = vmatpush1.msra.mxu0 0.0
    %84 = vmatprep.subr.mxu0 0.0
    %85 = vmatpush1.msra.mxu0 0.0
    %86 = vmatprep.subr.mxu0 0.0
    %87 = vmatpush1.msra.mxu0 0.0
    %88 = vmatprep.subr.mxu0 0.0
    %89 = vmatpush1.msra.mxu0 0.0
    %90 = vmatprep.subr.mxu0 0.0
    %91 = vmatpush1.msra.mxu0 0.0
    %92 = vmatprep.subr.mxu0 0.0
    %93 = vmatpush1.msra.mxu0 0.0
    %94 = vmatprep.subr.mxu0 0.0
    %95 = vmatpush1.msra.mxu0 0.0
    %96 = vmatprep.subr.mxu0 0.0
    %97 = vmatpush1.msra.mxu0 0.0
    %98 = vmatprep.subr.mxu0 0.0
    %99 = vmatpush1.msra.mxu0 0.0
    %100 = vmatprep.subr.mxu0 0.0
    %101 = vmatpush1.msra.mxu0 0.0
    %102 = vmatprep.subr.mxu0 0.0
    %103 = vmatpush1.msra.mxu0 0.0
    %104 = vmatprep.subr.mxu0 0.0
    %105 = vmatpush1.msra.mxu0 0.0
    %106 = vmatprep.subr.mxu0 0.0
    %107 = vmatpush1.msra.mxu0 0.0
    %108 = vmatprep.subr.mxu0 0.0
    %109 = vmatpush1.msra.mxu0 0.0
    %110 = vmatprep.subr.mxu0 0.0
    %111 = vmatpush1.msra.mxu0 0.0
    %112 = vmatprep.subr.mxu0 0.0
    %113 = vmatpush1.msra.mxu0 0.0
    %114 = vmatprep.subr.mxu0 0.0
    %115 = vmatpush1.msra.mxu0 0.0
    %116 = vmatprep.subr.mxu0 0.0
    %117 = vmatpush1.msra.mxu0 0.0
    %118 = vmatprep.subr.mxu0 0.0
    %119 = vmatpush1.msra.mxu0 0.0
    %120 = vmatprep.mubr.f32.mxu0 0.0
    %121 = vmatmul.mubr.f32.gmra.mrb[0].mxu0 %v54
    %v122 = vpop.f32.mrb[0].mxu0
    %v123 = vadd.f32 0.0, %v122
    %v124 = vpop.f32.mrb[0].mxu0
    %125 = vdwg.mxu0
    %v126 = vadd.f32 %v51, %v123
    %v127 = vxor.u32 %v126, 2147483648
    %v128 = vmul.f32 %v127, 1.442695
    %v129 = vpow.pop %v128
    %v130 = vadd.f32 %v129, 1.0
    %v131 = vrcp.pop %v130
    %v132 = vmul.f32 1.0, %v131
    %v133 = vtanh.pop %v126
    %v134 = vmul.f32 %v132, 0.0
    %136 = vrot.lane.b32.xlu0 %v133, 64
    %v137 = vpop.permute.xlu0 %136
    %v139 = vmul.f32 %v132, %v137
    %141 = vrot.lane.b32.xlu0 %v139, 32
    %v142 = vpop.permute.xlu0 %141
    %v144 = vadd.f32 %v134, %v142
    %v145 = vtanh.pop %v144
    %147 = vrot.lane.b32.xlu0 %v145, 64
    %v148 = vpop.permute.xlu0 %147
    %v150 = vmul.f32 %v132, %v148
    %152 = vrot.lane.b32.xlu0 %v150, 32
    %v153 = vpop.permute.xlu0 %152
    %vm155 = vcmask 253952
    %156 = vst.msk [vmem:[#allocation2] sm:$0x1] %vm155, %v153
    %v157 = vld [vmem:[#allocation3 + $0x1] sm:$0x1]
    %v158 = vsel %vm52, %v153, 0
    %160 = vmatprep.subr.mxu0 0.0
    %161 = vmatpush1.msra.mxu0 %v28
    %162 = vmatprep.subr.mxu0 0.0
    %163 = vmatpush1.msra.mxu0 %v29
    %164 = vmatprep.subr.mxu0 0.0
    %165 = vmatpush1.msra.mxu0 %v30
    %166 = vmatprep.subr.mxu0 0.0
    %167 = vmatpush1.msra.mxu0 %v31
    %168 = vmatprep.subr.mxu0 0.0
    %169 = vmatpush1.msra.mxu0 0.0
    %170 = vmatprep.subr.mxu0 0.0
    %171 = vmatpush1.msra.mxu0 0.0
    %172 = vmatprep.subr.mxu0 0.0
    %173 = vmatpush1.msra.mxu0 0.0
    %174 = vmatprep.subr.mxu0 0.0
    %175 = vmatpush1.msra.mxu0 0.0
    %176 = vmatprep.subr.mxu0 0.0
    %177 = vmatpush1.msra.mxu0 0.0
    %178 = vmatprep.subr.mxu0 0.0
    %179 = vmatpush1.msra.mxu0 0.0
    %180 = vmatprep.subr.mxu0 0.0
    %181 = vmatpush1.msra.mxu0 0.0
    %182 = vmatprep.subr.mxu0 0.0
    %183 = vmatpush1.msra.mxu0 0.0
    %184 = vmatprep.subr.mxu0 0.0
    %185 = vmatpush1.msra.mxu0 0.0
    %186 = vmatprep.subr.mxu0 0.0
    %187 = vmatpush1.msra.mxu0 0.0
    %188 = vmatprep.subr.mxu0 0.0
    %189 = vmatpush1.msra.mxu0 0.0
    %190 = vmatprep.subr.mxu0 0.0
    %191 = vmatpush1.msra.mxu0 0.0
    %192 = vmatprep.subr.mxu0 0.0
    %193 = vmatpush1.msra.mxu0 0.0
    %194 = vmatprep.subr.mxu0 0.0
    %195 = vmatpush1.msra.mxu0 0.0
    %196 = vmatprep.subr.mxu0 0.0
    %197 = vmatpush1.msra.mxu0 0.0
    %198 = vmatprep.subr.mxu0 0.0
    %199 = vmatpush1.msra.mxu0 0.0
    %200 = vmatprep.subr.mxu0 0.0
    %201 = vmatpush1.msra.mxu0 0.0
    %202 = vmatprep.subr.mxu0 0.0
    %203 = vmatpush1.msra.mxu0 0.0
    %204 = vmatprep.subr.mxu0 0.0
    %205 = vmatpush1.msra.mxu0 0.0
    %206 = vmatprep.subr.mxu0 0.0
    %207 = vmatpush1.msra.mxu0 0.0
    %208 = vmatprep.subr.mxu0 0.0
    %209 = vmatpush1.msra.mxu0 0.0
    %210 = vmatprep.subr.mxu0 0.0
    %211 = vmatpush1.msra.mxu0 0.0
    %212 = vmatprep.subr.mxu0 0.0
    %213 = vmatpush1.msra.mxu0 0.0
    %214 = vmatprep.subr.mxu0 0.0
    %215 = vmatpush1.msra.mxu0 0.0
    %216 = vmatprep.subr.mxu0 0.0
    %217 = vmatpush1.msra.mxu0 0.0
    %218 = vmatprep.subr.mxu0 0.0
    %219 = vmatpush1.msra.mxu0 0.0
    %220 = vmatprep.subr.mxu0 0.0
    %221 = vmatpush1.msra.mxu0 0.0
    %222 = vmatprep.subr.mxu0 0.0
    %223 = vmatpush1.msra.mxu0 0.0
    %224 = vmatprep.mubr.f32.mxu0 0.0
    %225 = vmatmul.mubr.f32.gmra.mrb[0].mxu0 %v158
    %v226 = vpop.f32.mrb[0].mxu0
    %v227 = vadd.f32 0.0, %v226
    %v228 = vpop.f32.mrb[0].mxu0
    %229 = vdwg.mxu0
    %v230 = vadd.f32 %v157, %v227
    %v231 = vxor.u32 %v230, 2147483648
    %v232 = vmul.f32 %v231, 1.442695
    %v233 = vpow.pop %v232
    %v234 = vadd.f32 %v233, 1.0
    %v235 = vrcp.pop %v234
    %v236 = vmul.f32 1.0, %v235
    %v237 = vtanh.pop %v230
    %v238 = vmul.f32 %v236, %v144
    %240 = vrot.lane.b32.xlu0 %v237, 64
    %v241 = vpop.permute.xlu0 %240
    %v243 = vmul.f32 %v236, %v241
    %245 = vrot.lane.b32.xlu0 %v243, 32
    %v246 = vpop.permute.xlu0 %245
    %v248 = vadd.f32 %v238, %v246
    %v249 = vtanh.pop %v248
    %251 = vrot.lane.b32.xlu0 %v249, 64
    %v252 = vpop.permute.xlu0 %251
    %v254 = vmul.f32 %v236, %v252
    %256 = vrot.lane.b32.xlu0 %v254, 32
    %v257 = vpop.permute.xlu0 %256
    %259 = vst.msk [vmem:[#allocation2 + $0x1] sm:$0x1] %vm155, %v257
    %v260 = vld [vmem:[#allocation3 + $0x2] sm:$0x1]
    %v261 = vsel %vm52, %v257, 0
    %263 = vmatprep.subr.mxu0 0.0
    %264 = vmatpush1.msra.mxu0 %v28
    %265 = vmatprep.subr.mxu0 0.0
    %266 = vmatpush1.msra.mxu0 %v29
    %267 = vmatprep.subr.mxu0 0.0
    %268 = vmatpush1.msra.mxu0 %v30
    %269 = vmatprep.subr.mxu0 0.0
    %270 = vmatpush1.msra.mxu0 %v31
    %271 = vmatprep.subr.mxu0 0.0
    %272 = vmatpush1.msra.mxu0 0.0
    %273 = vmatprep.subr.mxu0 0.0
    %274 = vmatpush1.msra.mxu0 0.0
    %275 = vmatprep.subr.mxu0 0.0
    %276 = vmatpush1.msra.mxu0 0.0
    %277 = vmatprep.subr.mxu0 0.0
    %278 = vmatpush1.msra.mxu0 0.0
    %279 = vmatprep.subr.mxu0 0.0
    %280 = vmatpush1.msra.mxu0 0.0
    %281 = vmatprep.subr.mxu0 0.0
    %282 = vmatpush1.msra.mxu0 0.0
    %283 = vmatprep.subr.mxu0 0.0
    %284 = vmatpush1.msra.mxu0 0.0
    %285 = vmatprep.subr.mxu0 0.0
    %286 = vmatpush1.msra.mxu0 0.0
    %287 = vmatprep.subr.mxu0 0.0
    %288 = vmatpush1.msra.mxu0 0.0
    %289 = vmatprep.subr.mxu0 0.0
    %290 = vmatpush1.msra.mxu0 0.0
    %291 = vmatprep.subr.mxu0 0.0
    %292 = vmatpush1.msra.mxu0 0.0
    %293 = vmatprep.subr.mxu0 0.0
    %294 = vmatpush1.msra.mxu0 0.0
    %295 = vmatprep.subr.mxu0 0.0
    %296 = vmatpush1.msra.mxu0 0.0
    %297 = vmatprep.subr.mxu0 0.0
    %298 = vmatpush1.msra.mxu0 0.0
    %299 = vmatprep.subr.mxu0 0.0
    %300 = vmatpush1.msra.mxu0 0.0
    %301 = vmatprep.subr.mxu0 0.0
    %302 = vmatpush1.msra.mxu0 0.0
    %303 = vmatprep.subr.mxu0 0.0
    %304 = vmatpush1.msra.mxu0 0.0
    %305 = vmatprep.subr.mxu0 0.0
    %306 = vmatpush1.msra.mxu0 0.0
    %307 = vmatprep.subr.mxu0 0.0
    %308 = vmatpush1.msra.mxu0 0.0
    %309 = vmatprep.subr.mxu0 0.0
    %310 = vmatpush1.msra.mxu0 0.0
    %311 = vmatprep.subr.mxu0 0.0
    %312 = vmatpush1.msra.mxu0 0.0
    %313 = vmatprep.subr.mxu0 0.0
    %314 = vmatpush1.msra.mxu0 0.0
    %315 = vmatprep.subr.mxu0 0.0
    %316 = vmatpush1.msra.mxu0 0.0
    %317 = vmatprep.subr.mxu0 0.0
    %318 = vmatpush1.msra.mxu0 0.0
    %319 = vmatprep.subr.mxu0 0.0
    %320 = vmatpush1.msra.mxu0 0.0
    %321 = vmatprep.subr.mxu0 0.0
    %322 = vmatpush1.msra.mxu0 0.0
    %323 = vmatprep.subr.mxu0 0.0
    %324 = vmatpush1.msra.mxu0 0.0
    %325 = vmatprep.subr.mxu0 0.0
    %326 = vmatpush1.msra.mxu0 0.0
    %327 = vmatprep.mubr.f32.mxu0 0.0
    %328 = vmatmul.mubr.f32.gmra.mrb[0].mxu0 %v261
    %v329 = vpop.f32.mrb[0].mxu0
    %v330 = vadd.f32 0.0, %v329
    %v331 = vpop.f32.mrb[0].mxu0
    %332 = vdwg.mxu0
    %v333 = vadd.f32 %v260, %v330
    %v334 = vxor.u32 %v333, 2147483648
    %v335 = vmul.f32 %v334, 1.442695
    %v336 = vpow.pop %v335
    %v337 = vadd.f32 %v336, 1.0
    %v338 = vrcp.pop %v337
    %v339 = vmul.f32 1.0, %v338
    %v340 = vtanh.pop %v333
    %v341 = vmul.f32 %v339, %v248
    %343 = vrot.lane.b32.xlu0 %v340, 64
    %v344 = vpop.permute.xlu0 %343
    %v346 = vmul.f32 %v339, %v344
    %348 = vrot.lane.b32.xlu0 %v346, 32
    %v349 = vpop.permute.xlu0 %348
    %v351 = vadd.f32 %v341, %v349
    %v352 = vtanh.pop %v351
    %354 = vrot.lane.b32.xlu0 %v352, 64
    %v355 = vpop.permute.xlu0 %354
    %v357 = vmul.f32 %v339, %v355
    %359 = vrot.lane.b32.xlu0 %v357, 32
    %v360 = vpop.permute.xlu0 %359
    %362 = vst.msk [vmem:[#allocation2 + $0x2] sm:$0x1] %vm155, %v360
    %v363 = vld [vmem:[#allocation3 + $0x3] sm:$0x1]
    %v364 = vsel %vm52, %v360, 0
    %366 = vmatprep.subr.mxu0 0.0
    %367 = vmatpush1.msra.mxu0 %v28
    %368 = vmatprep.subr.mxu0 0.0
    %369 = vmatpush1.msra.mxu0 %v29
    %370 = vmatprep.subr.mxu0 0.0
    %371 = vmatpush1.msra.mxu0 %v30
    %372 = vmatprep.subr.mxu0 0.0
    %373 = vmatpush1.msra.mxu0 %v31
    %374 = vmatprep.subr.mxu0 0.0
    %375 = vmatpush1.msra.mxu0 0.0
    %376 = vmatprep.subr.mxu0 0.0
    %377 = vmatpush1.msra.mxu0 0.0
    %378 = vmatprep.subr.mxu0 0.0
    %379 = vmatpush1.msra.mxu0 0.0
    %380 = vmatprep.subr.mxu0 0.0
    %381 = vmatpush1.msra.mxu0 0.0
    %382 = vmatprep.subr.mxu0 0.0
    %383 = vmatpush1.msra.mxu0 0.0
    %384 = vmatprep.subr.mxu0 0.0
    %385 = vmatpush1.msra.mxu0 0.0
    %386 = vmatprep.subr.mxu0 0.0
    %387 = vmatpush1.msra.mxu0 0.0
    %388 = vmatprep.subr.mxu0 0.0
    %389 = vmatpush1.msra.mxu0 0.0
    %390 = vmatprep.subr.mxu0 0.0
    %391 = vmatpush1.msra.mxu0 0.0
    %392 = vmatprep.subr.mxu0 0.0
    %393 = vmatpush1.msra.mxu0 0.0
    %394 = vmatprep.subr.mxu0 0.0
    %395 = vmatpush1.msra.mxu0 0.0
    %396 = vmatprep.subr.mxu0 0.0
    %397 = vmatpush1.msra.mxu0 0.0
    %398 = vmatprep.subr.mxu0 0.0
    %399 = vmatpush1.msra.mxu0 0.0
    %400 = vmatprep.subr.mxu0 0.0
    %401 = vmatpush1.msra.mxu0 0.0
    %402 = vmatprep.subr.mxu0 0.0
    %403 = vmatpush1.msra.mxu0 0.0
    %404 = vmatprep.subr.mxu0 0.0
    %405 = vmatpush1.msra.mxu0 0.0
    %406 = vmatprep.subr.mxu0 0.0
    %407 = vmatpush1.msra.mxu0 0.0
    %408 = vmatprep.subr.mxu0 0.0
    %409 = vmatpush1.msra.mxu0 0.0
    %410 = vmatprep.subr.mxu0 0.0
    %411 = vmatpush1.msra.mxu0 0.0
    %412 = vmatprep.subr.mxu0 0.0
    %413 = vmatpush1.msra.mxu0 0.0
    %414 = vmatprep.subr.mxu0 0.0
    %415 = vmatpush1.msra.mxu0 0.0
    %416 = vmatprep.subr.mxu0 0.0
    %417 = vmatpush1.msra.mxu0 0.0
    %418 = vmatprep.subr.mxu0 0.0
    %419 = vmatpush1.msra.mxu0 0.0
    %420 = vmatprep.subr.mxu0 0.0
    %421 = vmatpush1.msra.mxu0 0.0
    %422 = vmatprep.subr.mxu0 0.0
    %423 = vmatpush1.msra.mxu0 0.0
    %424 = vmatprep.subr.mxu0 0.0
    %425 = vmatpush1.msra.mxu0 0.0
    %426 = vmatprep.subr.mxu0 0.0
    %427 = vmatpush1.msra.mxu0 0.0
    %428 = vmatprep.subr.mxu0 0.0
    %429 = vmatpush1.msra.mxu0 0.0
    %430 = vmatprep.mubr.f32.mxu0 0.0
    %431 = vmatmul.mubr.f32.gmra.mrb[0].mxu0 %v364
    %v432 = vpop.f32.mrb[0].mxu0
    %v433 = vadd.f32 0.0, %v432
    %v434 = vpop.f32.mrb[0].mxu0
    %435 = vdwg.mxu0
    %v436 = vadd.f32 %v363, %v433
    %v437 = vxor.u32 %v436, 2147483648
    %v438 = vmul.f32 %v437, 1.442695
    %v439 = vpow.pop %v438
    %v440 = vadd.f32 %v439, 1.0
    %v441 = vrcp.pop %v440
    %v442 = vmul.f32 1.0, %v441
    %v443 = vtanh.pop %v436
    %v444 = vmul.f32 %v442, %v351
    %446 = vrot.lane.b32.xlu0 %v443, 64
    %v447 = vpop.permute.xlu0 %446
    %v449 = vmul.f32 %v442, %v447
    %451 = vrot.lane.b32.xlu0 %v449, 32
    %v452 = vpop.permute.xlu0 %451
    %v454 = vadd.f32 %v444, %v452
    %v455 = vtanh.pop %v454
    %457 = vrot.lane.b32.xlu0 %v455, 64
    %v458 = vpop.permute.xlu0 %457
    %v460 = vmul.f32 %v442, %v458
    %462 = vrot.lane.b32.xlu0 %v460, 32
    %v463 = vpop.permute.xlu0 %462
    %465 = vst.msk [vmem:[#allocation2 + $0x3] sm:$0x1] %vm155, %v463
    %v466 = vld [vmem:[#allocation3 + $0x4] sm:$0x1]
    %v467 = vsel %vm52, %v463, 0
    %469 = vmatprep.subr.mxu0 0.0
    %470 = vmatpush1.msra.mxu0 %v28
    %471 = vmatprep.subr.mxu0 0.0
    %472 = vmatpush1.msra.mxu0 %v29
    %473 = vmatprep.subr.mxu0 0.0
    %474 = vmatpush1.msra.mxu0 %v30
    %475 = vmatprep.subr.mxu0 0.0
    %476 = vmatpush1.msra.mxu0 %v31
    %477 = vmatprep.subr.mxu0 0.0
    %478 = vmatpush1.msra.mxu0 0.0
    %479 = vmatprep.subr.mxu0 0.0
    %480 = vmatpush1.msra.mxu0 0.0
    %481 = vmatprep.subr.mxu0 0.0
    %482 = vmatpush1.msra.mxu0 0.0
    %483 = vmatprep.subr.mxu0 0.0
    %484 = vmatpush1.msra.mxu0 0.0
    %485 = vmatprep.subr.mxu0 0.0
    %486 = vmatpush1.msra.mxu0 0.0
    %487 = vmatprep.subr.mxu0 0.0
    %488 = vmatpush1.msra.mxu0 0.0
    %489 = vmatprep.subr.mxu0 0.0
    %490 = vmatpush1.msra.mxu0 0.0
    %491 = vmatprep.subr.mxu0 0.0
    %492 = vmatpush1.msra.mxu0 0.0
    %493 = vmatprep.subr.mxu0 0.0
    %494 = vmatpush1.msra.mxu0 0.0
    %495 = vmatprep.subr.mxu0 0.0
    %496 = vmatpush1.msra.mxu0 0.0
    %497 = vmatprep.subr.mxu0 0.0
    %498 = vmatpush1.msra.mxu0 0.0
    %499 = vmatprep.subr.mxu0 0.0
    %500 = vmatpush1.msra.mxu0 0.0
    %501 = vmatprep.subr.mxu0 0.0
    %502 = vmatpush1.msra.mxu0 0.0
    %503 = vmatprep.subr.mxu0 0.0
    %504 = vmatpush1.msra.mxu0 0.0
    %505 = vmatprep.subr.mxu0 0.0
    %506 = vmatpush1.msra.mxu0 0.0
    %507 = vmatprep.subr.mxu0 0.0
    %508 = vmatpush1.msra.mxu0 0.0
    %509 = vmatprep.subr.mxu0 0.0
    %510 = vmatpush1.msra.mxu0 0.0
    %511 = vmatprep.subr.mxu0 0.0
    %512 = vmatpush1.msra.mxu0 0.0
    %513 = vmatprep.subr.mxu0 0.0
    %514 = vmatpush1.msra.mxu0 0.0
    %515 = vmatprep.subr.mxu0 0.0
    %516 = vmatpush1.msra.mxu0 0.0
    %517 = vmatprep.subr.mxu0 0.0
    %518 = vmatpush1.msra.mxu0 0.0
    %519 = vmatprep.subr.mxu0 0.0
    %520 = vmatpush1.msra.mxu0 0.0
    %521 = vmatprep.subr.mxu0 0.0
    %522 = vmatpush1.msra.mxu0 0.0
    %523 = vmatprep.subr.mxu0 0.0
    %524 = vmatpush1.msra.mxu0 0.0
    %525 = vmatprep.subr.mxu0 0.0
    %526 = vmatpush1.msra.mxu0 0.0
    %527 = vmatprep.subr.mxu0 0.0
    %528 = vmatpush1.msra.mxu0 0.0
    %529 = vmatprep.subr.mxu0 0.0
    %530 = vmatpush1.msra.mxu0 0.0
    %531 = vmatprep.subr.mxu0 0.0
    %532 = vmatpush1.msra.mxu0 0.0
    %533 = vmatprep.mubr.f32.mxu0 0.0
    %534 = vmatmul.mubr.f32.gmra.mrb[0].mxu0 %v467
    %v535 = vpop.f32.mrb[0].mxu0
    %v536 = vadd.f32 0.0, %v535
    %v537 = vpop.f32.mrb[0].mxu0
    %538 = vdwg.mxu0
    %v539 = vadd.f32 %v466, %v536
    %v540 = vxor.u32 %v539, 2147483648
    %v541 = vmul.f32 %v540, 1.442695
    %v542 = vpow.pop %v541
    %v543 = vadd.f32 %v542, 1.0
    %v544 = vrcp.pop %v543
    %v545 = vmul.f32 1.0, %v544
    %v546 = vtanh.pop %v539
    %v547 = vmul.f32 %v545, %v454
    %549 = vrot.lane.b32.xlu0 %v546, 64
    %v550 = vpop.permute.xlu0 %549
    %v552 = vmul.f32 %v545, %v550
    %554 = vrot.lane.b32.xlu0 %v552, 32
    %v555 = vpop.permute.xlu0 %554
    %v557 = vadd.f32 %v547, %v555
    %v558 = vtanh.pop %v557
    %560 = vrot.lane.b32.xlu0 %v558, 64
    %v561 = vpop.permute.xlu0 %560
    %v563 = vmul.f32 %v545, %v561
    %565 = vrot.lane.b32.xlu0 %v563, 32
    %v566 = vpop.permute.xlu0 %565
    %568 = vst.msk [vmem:[#allocation2 + $0x4] sm:$0x1] %vm155, %v566
    %v569 = vld [vmem:[#allocation3 + $0x5] sm:$0x1]
    %v570 = vsel %vm52, %v566, 0
    %572 = vmatprep.subr.mxu0 0.0
    %573 = vmatpush1.msra.mxu0 %v28
    %574 = vmatprep.subr.mxu0 0.0
    %575 = vmatpush1.msra.mxu0 %v29
    %576 = vmatprep.subr.mxu0 0.0
    %577 = vmatpush1.msra.mxu0 %v30
    %578 = vmatprep.subr.mxu0 0.0
    %579 = vmatpush1.msra.mxu0 %v31
    %580 = vmatprep.subr.mxu0 0.0
    %581 = vmatpush1.msra.mxu0 0.0
    %582 = vmatprep.subr.mxu0 0.0
    %583 = vmatpush1.msra.mxu0 0.0
    %584 = vmatprep.subr.mxu0 0.0
    %585 = vmatpush1.msra.mxu0 0.0
    %586 = vmatprep.subr.mxu0 0.0
    %587 = vmatpush1.msra.mxu0 0.0
    %588 = vmatprep.subr.mxu0 0.0
    %589 = vmatpush1.msra.mxu0 0.0
    %590 = vmatprep.subr.mxu0 0.0
    %591 = vmatpush1.msra.mxu0 0.0
    %592 = vmatprep.subr.mxu0 0.0
    %593 = vmatpush1.msra.mxu0 0.0
    %594 = vmatprep.subr.mxu0 0.0
    %595 = vmatpush1.msra.mxu0 0.0
    %596 = vmatprep.subr.mxu0 0.0
    %597 = vmatpush1.msra.mxu0 0.0
    %598 = vmatprep.subr.mxu0 0.0
    %599 = vmatpush1.msra.mxu0 0.0
    %600 = vmatprep.subr.mxu0 0.0
    %601 = vmatpush1.msra.mxu0 0.0
    %602 = vmatprep.subr.mxu0 0.0
    %603 = vmatpush1.msra.mxu0 0.0
    %604 = vmatprep.subr.mxu0 0.0
    %605 = vmatpush1.msra.mxu0 0.0
    %606 = vmatprep.subr.mxu0 0.0
    %607 = vmatpush1.msra.mxu0 0.0
    %608 = vmatprep.subr.mxu0 0.0
    %609 = vmatpush1.msra.mxu0 0.0
    %610 = vmatprep.subr.mxu0 0.0
    %611 = vmatpush1.msra.mxu0 0.0
    %612 = vmatprep.subr.mxu0 0.0
    %613 = vmatpush1.msra.mxu0 0.0
    %614 = vmatprep.subr.mxu0 0.0
    %615 = vmatpush1.msra.mxu0 0.0
    %616 = vmatprep.subr.mxu0 0.0
    %617 = vmatpush1.msra.mxu0 0.0
    %618 = vmatprep.subr.mxu0 0.0
    %619 = vmatpush1.msra.mxu0 0.0
    %620 = vmatprep.subr.mxu0 0.0
    %621 = vmatpush1.msra.mxu0 0.0
    %622 = vmatprep.subr.mxu0 0.0
    %623 = vmatpush1.msra.mxu0 0.0
    %624 = vmatprep.subr.mxu0 0.0
    %625 = vmatpush1.msra.mxu0 0.0
    %626 = vmatprep.subr.mxu0 0.0
    %627 = vmatpush1.msra.mxu0 0.0
    %628 = vmatprep.subr.mxu0 0.0
    %629 = vmatpush1.msra.mxu0 0.0
    %630 = vmatprep.subr.mxu0 0.0
    %631 = vmatpush1.msra.mxu0 0.0
    %632 = vmatprep.subr.mxu0 0.0
    %633 = vmatpush1.msra.mxu0 0.0
    %634 = vmatprep.subr.mxu0 0.0
    %635 = vmatpush1.msra.mxu0 0.0
    %636 = vmatprep.mubr.f32.mxu0 0.0
    %637 = vmatmul.mubr.f32.gmra.mrb[0].mxu0 %v570
    %v638 = vpop.f32.mrb[0].mxu0
    %v639 = vadd.f32 0.0, %v638
    %v640 = vpop.f32.mrb[0].mxu0
    %641 = vdwg.mxu0
    %v642 = vadd.f32 %v569, %v639
    %v643 = vxor.u32 %v642, 2147483648
    %v644 = vmul.f32 %v643, 1.442695
    %v645 = vpow.pop %v644
    %v646 = vadd.f32 %v645, 1.0
    %v647 = vrcp.pop %v646
    %v648 = vmul.f32 1.0, %v647
    %v649 = vtanh.pop %v642
    %v650 = vmul.f32 %v648, %v557
    %652 = vrot.lane.b32.xlu0 %v649, 64
    %v653 = vpop.permute.xlu0 %652
    %v655 = vmul.f32 %v648, %v653
    %657 = vrot.lane.b32.xlu0 %v655, 32
    %v658 = vpop.permute.xlu0 %657
    %v660 = vadd.f32 %v650, %v658
    %v661 = vtanh.pop %v660
    %663 = vrot.lane.b32.xlu0 %v661, 64
    %v664 = vpop.permute.xlu0 %663
    %v666 = vmul.f32 %v648, %v664
    %668 = vrot.lane.b32.xlu0 %v666, 32
    %v669 = vpop.permute.xlu0 %668
    %671 = vst.msk [vmem:[#allocation2 + $0x5] sm:$0x1] %vm155, %v669
    %v672 = vld [vmem:[#allocation3 + $0x6] sm:$0x1]
    %v673 = vsel %vm52, %v669, 0
    %675 = vmatprep.subr.mxu0 0.0
    %676 = vmatpush1.msra.mxu0 %v28
    %677 = vmatprep.subr.mxu0 0.0
    %678 = vmatpush1.msra.mxu0 %v29
    %679 = vmatprep.subr.mxu0 0.0
    %680 = vmatpush1.msra.mxu0 %v30
    %681 = vmatprep.subr.mxu0 0.0
    %682 = vmatpush1.msra.mxu0 %v31
    %683 = vmatprep.subr.mxu0 0.0
    %684 = vmatpush1.msra.mxu0 0.0
    %685 = vmatprep.subr.mxu0 0.0
    %686 = vmatpush1.msra.mxu0 0.0
    %687 = vmatprep.subr.mxu0 0.0
    %688 = vmatpush1.msra.mxu0 0.0
    %689 = vmatprep.subr.mxu0 0.0
    %690 = vmatpush1.msra.mxu0 0.0
    %691 = vmatprep.subr.mxu0 0.0
    %692 = vmatpush1.msra.mxu0 0.0
    %693 = vmatprep.subr.mxu0 0.0
    %694 = vmatpush1.msra.mxu0 0.0
    %695 = vmatprep.subr.mxu0 0.0
    %696 = vmatpush1.msra.mxu0 0.0
    %697 = vmatprep.subr.mxu0 0.0
    %698 = vmatpush1.msra.mxu0 0.0
    %699 = vmatprep.subr.mxu0 0.0
    %700 = vmatpush1.msra.mxu0 0.0
    %701 = vmatprep.subr.mxu0 0.0
    %702 = vmatpush1.msra.mxu0 0.0
    %703 = vmatprep.subr.mxu0 0.0
    %704 = vmatpush1.msra.mxu0 0.0
    %705 = vmatprep.subr.mxu0 0.0
    %706 = vmatpush1.msra.mxu0 0.0
    %707 = vmatprep.subr.mxu0 0.0
    %708 = vmatpush1.msra.mxu0 0.0
    %709 = vmatprep.subr.mxu0 0.0
    %710 = vmatpush1.msra.mxu0 0.0
    %711 = vmatprep.subr.mxu0 0.0
    %712 = vmatpush1.msra.mxu0 0.0
    %713 = vmatprep.subr.mxu0 0.0
    %714 = vmatpush1.msra.mxu0 0.0
    %715 = vmatprep.subr.mxu0 0.0
    %716 = vmatpush1.msra.mxu0 0.0
    %717 = vmatprep.subr.mxu0 0.0
    %718 = vmatpush1.msra.mxu0 0.0
    %719 = vmatprep.subr.mxu0 0.0
    %720 = vmatpush1.msra.mxu0 0.0
    %721 = vmatprep.subr.mxu0 0.0
    %722 = vmatpush1.msra.mxu0 0.0
    %723 = vmatprep.subr.mxu0 0.0
    %724 = vmatpush1.msra.mxu0 0.0
    %725 = vmatprep.subr.mxu0 0.0
    %726 = vmatpush1.msra.mxu0 0.0
    %727 = vmatprep.subr.mxu0 0.0
    %728 = vmatpush1.msra.mxu0 0.0
    %729 = vmatprep.subr.mxu0 0.0
    %730 = vmatpush1.msra.mxu0 0.0
    %731 = vmatprep.subr.mxu0 0.0
    %732 = vmatpush1.msra.mxu0 0.0
    %733 = vmatprep.subr.mxu0 0.0
    %734 = vmatpush1.msra.mxu0 0.0
    %735 = vmatprep.subr.mxu0 0.0
    %736 = vmatpush1.msra.mxu0 0.0
    %737 = vmatprep.subr.mxu0 0.0
    %738 = vmatpush1.msra.mxu0 0.0
    %739 = vmatprep.mubr.f32.mxu0 0.0
    %740 = vmatmul.mubr.f32.gmra.mrb[0].mxu0 %v673
    %v741 = vpop.f32.mrb[0].mxu0
    %v742 = vadd.f32 0.0, %v741
    %v743 = vpop.f32.mrb[0].mxu0
    %744 = vdwg.mxu0
    %v745 = vadd.f32 %v672, %v742
    %v746 = vxor.u32 %v745, 2147483648
    %v747 = vmul.f32 %v746, 1.442695
    %v748 = vpow.pop %v747
    %v749 = vadd.f32 %v748, 1.0
    %v750 = vrcp.pop %v749
    %v751 = vmul.f32 1.0, %v750
    %v752 = vtanh.pop %v745
    %v753 = vmul.f32 %v751, %v660
    %755 = vrot.lane.b32.xlu0 %v752, 64
    %v756 = vpop.permute.xlu0 %755
    %v758 = vmul.f32 %v751, %v756
    %760 = vrot.lane.b32.xlu0 %v758, 32
    %v761 = vpop.permute.xlu0 %760
    %v763 = vadd.f32 %v753, %v761
    %v764 = vtanh.pop %v763
    %766 = vrot.lane.b32.xlu0 %v764, 64
    %v767 = vpop.permute.xlu0 %766
    %v769 = vmul.f32 %v751, %v767
    %771 = vrot.lane.b32.xlu0 %v769, 32
    %v772 = vpop.permute.xlu0 %771
    %774 = vst.msk [vmem:[#allocation2 + $0x6] sm:$0x1] %vm155, %v772
    %v775 = vld [vmem:[#allocation3 + $0x7] sm:$0x1]
    %v776 = vsel %vm52, %v772, 0
    %778 = vmatprep.subr.mxu0 0.0
    %779 = vmatpush1.msra.mxu0 %v28
    %780 = vmatprep.subr.mxu0 0.0
    %781 = vmatpush1.msra.mxu0 %v29
    %782 = vmatprep.subr.mxu0 0.0
    %783 = vmatpush1.msra.mxu0 %v30
    %784 = vmatprep.subr.mxu0 0.0
    %785 = vmatpush1.msra.mxu0 %v31
    %786 = vmatprep.subr.mxu0 0.0
    %787 = vmatpush1.msra.mxu0 0.0
    %788 = vmatprep.subr.mxu0 0.0
    %789 = vmatpush1.msra.mxu0 0.0
    %790 = vmatprep.subr.mxu0 0.0
    %791 = vmatpush1.msra.mxu0 0.0
    %792 = vmatprep.subr.mxu0 0.0
    %793 = vmatpush1.msra.mxu0 0.0
    %794 = vmatprep.subr.mxu0 0.0
    %795 = vmatpush1.msra.mxu0 0.0
    %796 = vmatprep.subr.mxu0 0.0
    %797 = vmatpush1.msra.mxu0 0.0
    %798 = vmatprep.subr.mxu0 0.0
    %799 = vmatpush1.msra.mxu0 0.0
    %800 = vmatprep.subr.mxu0 0.0
    %801 = vmatpush1.msra.mxu0 0.0
    %802 = vmatprep.subr.mxu0 0.0
    %803 = vmatpush1.msra.mxu0 0.0
    %804 = vmatprep.subr.mxu0 0.0
    %805 = vmatpush1.msra.mxu0 0.0
    %806 = vmatprep.subr.mxu0 0.0
    %807 = vmatpush1.msra.mxu0 0.0
    %808 = vmatprep.subr.mxu0 0.0
    %809 = vmatpush1.msra.mxu0 0.0
    %810 = vmatprep.subr.mxu0 0.0
    %811 = vmatpush1.msra.mxu0 0.0
    %812 = vmatprep.subr.mxu0 0.0
    %813 = vmatpush1.msra.mxu0 0.0
    %814 = vmatprep.subr.mxu0 0.0
    %815 = vmatpush1.msra.mxu0 0.0
    %816 = vmatprep.subr.mxu0 0.0
    %817 = vmatpush1.msra.mxu0 0.0
    %818 = vmatprep.subr.mxu0 0.0
    %819 = vmatpush1.msra.mxu0 0.0
    %820 = vmatprep.subr.mxu0 0.0
    %821 = vmatpush1.msra.mxu0 0.0
    %822 = vmatprep.subr.mxu0 0.0
    %823 = vmatpush1.msra.mxu0 0.0
    %824 = vmatprep.subr.mxu0 0.0
    %825 = vmatpush1.msra.mxu0 0.0
    %826 = vmatprep.subr.mxu0 0.0
    %827 = vmatpush1.msra.mxu0 0.0
    %828 = vmatprep.subr.mxu0 0.0
    %829 = vmatpush1.msra.mxu0 0.0
    %830 = vmatprep.subr.mxu0 0.0
    %831 = vmatpush1.msra.mxu0 0.0
    %832 = vmatprep.subr.mxu0 0.0
    %833 = vmatpush1.msra.mxu0 0.0
    %834 = vmatprep.subr.mxu0 0.0
    %835 = vmatpush1.msra.mxu0 0.0
    %836 = vmatprep.subr.mxu0 0.0
    %837 = vmatpush1.msra.mxu0 0.0
    %838 = vmatprep.subr.mxu0 0.0
    %839 = vmatpush1.msra.mxu0 0.0
    %840 = vmatprep.subr.mxu0 0.0
    %841 = vmatpush1.msra.mxu0 0.0
    %842 = vmatprep.mubr.f32.mxu0 0.0
    %843 = vmatmul.mubr.f32.gmra.mrb[0].mxu0 %v776
    %v844 = vpop.f32.mrb[0].mxu0
    %v845 = vadd.f32 0.0, %v844
    %v846 = vpop.f32.mrb[0].mxu0
    %847 = vdwg.mxu0
    %v848 = vadd.f32 %v775, %v845
    %v849 = vxor.u32 %v848, 2147483648
    %v850 = vmul.f32 %v849, 1.442695
    %v851 = vpow.pop %v850
    %v852 = vadd.f32 %v851, 1.0
    %v853 = vrcp.pop %v852
    %v854 = vmul.f32 1.0, %v853
    %v855 = vtanh.pop %v848
    %v856 = vmul.f32 %v854, %v763
    %858 = vrot.lane.b32.xlu0 %v855, 64
    %v859 = vpop.permute.xlu0 %858
    %v861 = vmul.f32 %v854, %v859
    %863 = vrot.lane.b32.xlu0 %v861, 32
    %v864 = vpop.permute.xlu0 %863
    %v866 = vadd.f32 %v856, %v864
    %v867 = vtanh.pop %v866
    %869 = vrot.lane.b32.xlu0 %v867, 64
    %v870 = vpop.permute.xlu0 %869
    %v872 = vmul.f32 %v854, %v870
    %874 = vrot.lane.b32.xlu0 %v872, 32
    %v875 = vpop.permute.xlu0 %874
    %877 = vst.msk [vmem:[#allocation2 + $0x7] sm:$0x1] %vm155, %v875
    %v878 = vld [vmem:[#allocation4 + $0x68] sm:$0xff]
    %v879 = vld [vmem:[#allocation4 + $0x70] sm:$0xff]
    %v880 = vld [vmem:[#allocation4 + $0x78] sm:$0xff]
    %v881 = vld [vmem:[#allocation4 + $0x80] sm:$0xff]
    %v882 = vld [vmem:[#allocation4 + $0x88] sm:$0x1]
    %v883 = vld [vmem:[#allocation2] sm:$0xff]
    %v884 = vld [vmem:[#allocation4 + $0x48] sm:$0xff]
    %v885 = vld [vmem:[#allocation4 + $0x50] sm:$0xff]
    %v886 = vld [vmem:[#allocation4 + $0x58] sm:$0xff]
    %v887 = vld [vmem:[#allocation4 + $0x60] sm:$0xff]
    %v888 = vlaneseq
    %v889 = vshrl.u32 %v888, 7
    %v890 = vsub.s32 0, %v889
    %v891 = vrot.slane %v882, %v890
    %v893 = vsel %vm52, %v883, 0
    %895 = vmatprep.subr.mxu0 0.0
    %896 = vmatpush1.msra.mxu0 %v884
    %897 = vmatprep.subr.mxu0 0.0
    %898 = vmatpush1.msra.mxu0 %v885
    %899 = vmatprep.subr.mxu0 0.0
    %900 = vmatpush1.msra.mxu0 %v886
    %901 = vmatprep.subr.mxu0 0.0
    %902 = vmatpush1.msra.mxu0 %v887
    %903 = vmatprep.subr.mxu0 0.0
    %904 = vmatpush1.msra.mxu0 0.0
    %905 = vmatprep.subr.mxu0 0.0
    %906 = vmatpush1.msra.mxu0 0.0
    %907 = vmatprep.subr.mxu0 0.0
    %908 = vmatpush1.msra.mxu0 0.0
    %909 = vmatprep.subr.mxu0 0.0
    %910 = vmatpush1.msra.mxu0 0.0
    %911 = vmatprep.subr.mxu0 0.0
    %912 = vmatpush1.msra.mxu0 0.0
    %913 = vmatprep.subr.mxu0 0.0
    %914 = vmatpush1.msra.mxu0 0.0
    %915 = vmatprep.subr.mxu0 0.0
    %916 = vmatpush1.msra.mxu0 0.0
    %917 = vmatprep.subr.mxu0 0.0
    %918 = vmatpush1.msra.mxu0 0.0
    %919 = vmatprep.subr.mxu0 0.0
    %920 = vmatpush1.msra.mxu0 0.0
    %921 = vmatprep.subr.mxu0 0.0
    %922 = vmatpush1.msra.mxu0 0.0
    %923 = vmatprep.subr.mxu0 0.0
    %924 = vmatpush1.msra.mxu0 0.0
    %925 = vmatprep.subr.mxu0 0.0
    %926 = vmatpush1.msra.mxu0 0.0
    %927 = vmatprep.subr.mxu0 0.0
    %928 = vmatpush1.msra.mxu0 0.0
    %929 = vmatprep.subr.mxu0 0.0
    %930 = vmatpush1.msra.mxu0 0.0
    %931 = vmatprep.subr.mxu0 0.0
    %932 = vmatpush1.msra.mxu0 0.0
    %933 = vmatprep.subr.mxu0 0.0
    %934 = vmatpush1.msra.mxu0 0.0
    %935 = vmatprep.subr.mxu0 0.0
    %936 = vmatpush1.msra.mxu0 0.0
    %937 = vmatprep.subr.mxu0 0.0
    %938 = vmatpush1.msra.mxu0 0.0
    %939 = vmatprep.subr.mxu0 0.0
    %940 = vmatpush1.msra.mxu0 0.0
    %941 = vmatprep.subr.mxu0 0.0
    %942 = vmatpush1.msra.mxu0 0.0
    %943 = vmatprep.subr.mxu0 0.0
    %944 = vmatpush1.msra.mxu0 0.0
    %945 = vmatprep.subr.mxu0 0.0
    %946 = vmatpush1.msra.mxu0 0.0
    %947 = vmatprep.subr.mxu0 0.0
    %948 = vmatpush1.msra.mxu0 0.0
    %949 = vmatprep.subr.mxu0 0.0
    %950 = vmatpush1.msra.mxu0 0.0
    %951 = vmatprep.subr.mxu0 0.0
    %952 = vmatpush1.msra.mxu0 0.0
    %953 = vmatprep.subr.mxu0 0.0
    %954 = vmatpush1.msra.mxu0 0.0
    %955 = vmatprep.subr.mxu0 0.0
    %956 = vmatpush1.msra.mxu0 0.0
    %957 = vmatprep.subr.mxu0 0.0
    %958 = vmatpush1.msra.mxu0 0.0
    %959 = vmatprep.mubr.f32.mxu0 0.0
    %960 = vmatmul.mubr.f32.gmra.mrb[0].mxu0 %v893
    %v961 = vpop.f32.mrb[0].mxu0
    %v962 = vadd.f32 %v891, %v961
    %v963 = vpop.f32.mrb[0].mxu0
    %964 = vdwg.mxu0
    %965 = vst [vmem:[#allocation3] sm:$0xff] %v962
    %v966 = vld [vmem:[#allocation3] sm:$0x1]
    %967 = vmatprep.subr.mxu0 0.0
    %968 = vmatpush1.msra.mxu0 %v878
    %969 = vmatprep.subr.mxu0 0.0
    %970 = vmatpush1.msra.mxu0 %v879
    %971 = vmatprep.subr.mxu0 0.0
    %972 = vmatpush1.msra.mxu0 %v880
    %973 = vmatprep.subr.mxu0 0.0
    %974 = vmatpush1.msra.mxu0 %v881
    %975 = vmatprep.subr.mxu0 0.0
    %976 = vmatpush1.msra.mxu0 0.0
    %977 = vmatprep.subr.mxu0 0.0
    %978 = vmatpush1.msra.mxu0 0.0
    %979 = vmatprep.subr.mxu0 0.0
    %980 = vmatpush1.msra.mxu0 0.0
    %981 = vmatprep.subr.mxu0 0.0
    %982 = vmatpush1.msra.mxu0 0.0
    %983 = vmatprep.subr.mxu0 0.0
    %984 = vmatpush1.msra.mxu0 0.0
    %985 = vmatprep.subr.mxu0 0.0
    %986 = vmatpush1.msra.mxu0 0.0
    %987 = vmatprep.subr.mxu0 0.0
    %988 = vmatpush1.msra.mxu0 0.0
    %989 = vmatprep.subr.mxu0 0.0
    %990 = vmatpush1.msra.mxu0 0.0
    %991 = vmatprep.subr.mxu0 0.0
    %992 = vmatpush1.msra.mxu0 0.0
    %993 = vmatprep.subr.mxu0 0.0
    %994 = vmatpush1.msra.mxu0 0.0
    %995 = vmatprep.subr.mxu0 0.0
    %996 = vmatpush1.msra.mxu0 0.0
    %997 = vmatprep.subr.mxu0 0.0
    %998 = vmatpush1.msra.mxu0 0.0
    %999 = vmatprep.subr.mxu0 0.0
    %1000 = vmatpush1.msra.mxu0 0.0
    %1001 = vmatprep.subr.mxu0 0.0
    %1002 = vmatpush1.msra.mxu0 0.0
    %1003 = vmatprep.subr.mxu0 0.0
    %1004 = vmatpush1.msra.mxu0 0.0
    %1005 = vmatprep.subr.mxu0 0.0
    %1006 = vmatpush1.msra.mxu0 0.0
    %1007 = vmatprep.subr.mxu0 0.0
    %1008 = vmatpush1.msra.mxu0 0.0
    %1009 = vmatprep.subr.mxu0 0.0
    %1010 = vmatpush1.msra.mxu0 0.0
    %1011 = vmatprep.subr.mxu0 0.0
    %1012 = vmatpush1.msra.mxu0 0.0
    %1013 = vmatprep.subr.mxu0 0.0
    %1014 = vmatpush1.msra.mxu0 0.0
    %1015 = vmatprep.subr.mxu0 0.0
    %1016 = vmatpush1.msra.mxu0 0.0
    %1017 = vmatprep.subr.mxu0 0.0
    %1018 = vmatpush1.msra.mxu0 0.0
    %1019 = vmatprep.subr.mxu0 0.0
    %1020 = vmatpush1.msra.mxu0 0.0
    %1021 = vmatprep.subr.mxu0 0.0
    %1022 = vmatpush1.msra.mxu0 0.0
    %1023 = vmatprep.subr.mxu0 0.0
    %1024 = vmatpush1.msra.mxu0 0.0
    %1025 = vmatprep.subr.mxu0 0.0
    %1026 = vmatpush1.msra.mxu0 0.0
    %1027 = vmatprep.subr.mxu0 0.0
    %1028 = vmatpush1.msra.mxu0 0.0
    %1029 = vmatprep.subr.mxu0 0.0
    %1030 = vmatpush1.msra.mxu0 0.0
    %1031 = vmatprep.mubr.f32.mxu0 0.0
    %1032 = vmatmul.mubr.f32.gmra.mrb[0].mxu0 %v54
    %v1033 = vpop.f32.mrb[0].mxu0
    %v1034 = vadd.f32 0.0, %v1033
    %v1035 = vpop.f32.mrb[0].mxu0
    %1036 = vdwg.mxu0
    %v1037 = vadd.f32 %v966, %v1034
    %v1038 = vxor.u32 %v1037, 2147483648
    %v1039 = vmul.f32 %v1038, 1.442695
    %v1040 = vpow.pop %v1039
    %v1041 = vadd.f32 %v1040, 1.0
    %v1042 = vrcp.pop %v1041
    %v1043 = vmul.f32 1.0, %v1042
    %v1044 = vtanh.pop %v1037
    %v1045 = vmul.f32 %v1043, 0.0
    %1047 = vrot.lane.b32.xlu0 %v1044, 64
    %v1048 = vpop.permute.xlu0 %1047
    %v1050 = vmul.f32 %v1043, %v1048
    %1052 = vrot.lane.b32.xlu0 %v1050, 32
    %v1053 = vpop.permute.xlu0 %1052
    %v1055 = vadd.f32 %v1045, %v1053
    %v1056 = vtanh.pop %v1055
    %1058 = vrot.lane.b32.xlu0 %v1056, 64
    %v1059 = vpop.permute.xlu0 %1058
    %v1061 = vmul.f32 %v1043, %v1059
    %1063 = vrot.lane.b32.xlu0 %v1061, 32
    %v1064 = vpop.permute.xlu0 %1063
    %1066 = vst.msk [vmem:[#allocation2] sm:$0x1] %vm155, %v1064
    %v1067 = vld [vmem:[#allocation3 + $0x1] sm:$0x1]
    %v1068 = vsel %vm52, %v1064, 0
    %1070 = vmatprep.subr.mxu0 0.0
    %1071 = vmatpush1.msra.mxu0 %v878
    %1072 = vmatprep.subr.mxu0 0.0
    %1073 = vmatpush1.msra.mxu0 %v879
    %1074 = vmatprep.subr.mxu0 0.0
    %1075 = vmatpush1.msra.mxu0 %v880
    %1076 = vmatprep.subr.mxu0 0.0
    %1077 = vmatpush1.msra.mxu0 %v881
    %1078 = vmatprep.subr.mxu0 0.0
    %1079 = vmatpush1.msra.mxu0 0.0
    %1080 = vmatprep.subr.mxu0 0.0
    %1081 = vmatpush1.msra.mxu0 0.0
    %1082 = vmatprep.subr.mxu0 0.0
    %1083 = vmatpush1.msra.mxu0 0.0
    %1084 = vmatprep.subr.mxu0 0.0
    %1085 = vmatpush1.msra.mxu0 0.0
    %1086 = vmatprep.subr.mxu0 0.0
    %1087 = vmatpush1.msra.mxu0 0.0
    %1088 = vmatprep.subr.mxu0 0.0
    %1089 = vmatpush1.msra.mxu0 0.0
    %1090 = vmatprep.subr.mxu0 0.0
    %1091 = vmatpush1.msra.mxu0 0.0
    %1092 = vmatprep.subr.mxu0 0.0
    %1093 = vmatpush1.msra.mxu0 0.0
    %1094 = vmatprep.subr.mxu0 0.0
    %1095 = vmatpush1.msra.mxu0 0.0
    %1096 = vmatprep.subr.mxu0 0.0
    %1097 = vmatpush1.msra.mxu0 0.0
    %1098 = vmatprep.subr.mxu0 0.0
    %1099 = vmatpush1.msra.mxu0 0.0
    %1100 = vmatprep.subr.mxu0 0.0
    %1101 = vmatpush1.msra.mxu0 0.0
    %1102 = vmatprep.subr.mxu0 0.0
    %1103 = vmatpush1.msra.mxu0 0.0
    %1104 = vmatprep.subr.mxu0 0.0
    %1105 = vmatpush1.msra.mxu0 0.0
    %1106 = vmatprep.subr.mxu0 0.0
    %1107 = vmatpush1.msra.mxu0 0.0
    %1108 = vmatprep.subr.mxu0 0.0
    %1109 = vmatpush1.msra.mxu0 0.0
    %1110 = vmatprep.subr.mxu0 0.0
    %1111 = vmatpush1.msra.mxu0 0.0
    %1112 = vmatprep.subr.mxu0 0.0
    %1113 = vmatpush1.msra.mxu0 0.0
    %1114 = vmatprep.subr.mxu0 0.0
    %1115 = vmatpush1.msra.mxu0 0.0
    %1116 = vmatprep.subr.mxu0 0.0
    %1117 = vmatpush1.msra.mxu0 0.0
    %1118 = vmatprep.subr.mxu0 0.0
    %1119 = vmatpush1.msra.mxu0 0.0
    %1120 = vmatprep.subr.mxu0 0.0
    %1121 = vmatpush1.msra.mxu0 0.0
    %1122 = vmatprep.subr.mxu0 0.0
    %1123 = vmatpush1.msra.mxu0 0.0
    %1124 = vmatprep.subr.mxu0 0.0
    %1125 = vmatpush1.msra.mxu0 0.0
    %1126 = vmatprep.subr.mxu0 0.0
    %1127 = vmatpush1.msra.mxu0 0.0
    %1128 = vmatprep.subr.mxu0 0.0
    %1129 = vmatpush1.msra.mxu0 0.0
    %1130 = vmatprep.subr.mxu0 0.0
    %1131 = vmatpush1.msra.mxu0 0.0
    %1132 = vmatprep.subr.mxu0 0.0
    %1133 = vmatpush1.msra.mxu0 0.0
    %1134 = vmatprep.mubr.f32.mxu0 0.0
    %1135 = vmatmul.mubr.f32.gmra.mrb[0].mxu0 %v1068
    %v1136 = vpop.f32.mrb[0].mxu0
    %v1137 = vadd.f32 0.0, %v1136
    %v1138 = vpop.f32.mrb[0].mxu0
    %1139 = vdwg.mxu0
    %v1140 = vadd.f32 %v1067, %v1137
    %v1141 = vxor.u32 %v1140, 2147483648
    %v1142 = vmul.f32 %v1141, 1.442695
    %v1143 = vpow.pop %v1142
    %v1144 = vadd.f32 %v1143, 1.0
    %v1145 = vrcp.pop %v1144
    %v1146 = vmul.f32 1.0, %v1145
    %v1147 = vtanh.pop %v1140
    %v1148 = vmul.f32 %v1146, %v1055
    %1150 = vrot.lane.b32.xlu0 %v1147, 64
    %v1151 = vpop.permute.xlu0 %1150
    %v1153 = vmul.f32 %v1146, %v1151
    %1155 = vrot.lane.b32.xlu0 %v1153, 32
    %v1156 = vpop.permute.xlu0 %1155
    %v1158 = vadd.f32 %v1148, %v1156
    %v1159 = vtanh.pop %v1158
    %1161 = vrot.lane.b32.xlu0 %v1159, 64
    %v1162 = vpop.permute.xlu0 %1161
    %v1164 = vmul.f32 %v1146, %v1162
    %1166 = vrot.lane.b32.xlu0 %v1164, 32
    %v1167 = vpop.permute.xlu0 %1166
    %1169 = vst.msk [vmem:[#allocation2 + $0x1] sm:$0x1] %vm155, %v1167
    %v1170 = vld [vmem:[#allocation3 + $0x2] sm:$0x1]
    %v1171 = vsel %vm52, %v1167, 0
    %1173 = vmatprep.subr.mxu0 0.0
    %1174 = vmatpush1.msra.mxu0 %v878
    %1175 = vmatprep.subr.mxu0 0.0
    %1176 = vmatpush1.msra.mxu0 %v879
    %1177 = vmatprep.subr.mxu0 0.0
    %1178 = vmatpush1.msra.mxu0 %v880
    %1179 = vmatprep.subr.mxu0 0.0
    %1180 = vmatpush1.msra.mxu0 %v881
    %1181 = vmatprep.subr.mxu0 0.0
    %1182 = vmatpush1.msra.mxu0 0.0
    %1183 = vmatprep.subr.mxu0 0.0
    %1184 = vmatpush1.msra.mxu0 0.0
    %1185 = vmatprep.subr.mxu0 0.0
    %1186 = vmatpush1.msra.mxu0 0.0
    %1187 = vmatprep.subr.mxu0 0.0
    %1188 = vmatpush1.msra.mxu0 0.0
    %1189 = vmatprep.subr.mxu0 0.0
    %1190 = vmatpush1.msra.mxu0 0.0
    %1191 = vmatprep.subr.mxu0 0.0
    %1192 = vmatpush1.msra.mxu0 0.0
    %1193 = vmatprep.subr.mxu0 0.0
    %1194 = vmatpush1.msra.mxu0 0.0
    %1195 = vmatprep.subr.mxu0 0.0
    %1196 = vmatpush1.msra.mxu0 0.0
    %1197 = vmatprep.subr.mxu0 0.0
    %1198 = vmatpush1.msra.mxu0 0.0
    %1199 = vmatprep.subr.mxu0 0.0
    %1200 = vmatpush1.msra.mxu0 0.0
    %1201 = vmatprep.subr.mxu0 0.0
    %1202 = vmatpush1.msra.mxu0 0.0
    %1203 = vmatprep.subr.mxu0 0.0
    %1204 = vmatpush1.msra.mxu0 0.0
    %1205 = vmatprep.subr.mxu0 0.0
    %1206 = vmatpush1.msra.mxu0 0.0
    %1207 = vmatprep.subr.mxu0 0.0
    %1208 = vmatpush1.msra.mxu0 0.0
    %1209 = vmatprep.subr.mxu0 0.0
    %1210 = vmatpush1.msra.mxu0 0.0
    %1211 = vmatprep.subr.mxu0 0.0
    %1212 = vmatpush1.msra.mxu0 0.0
    %1213 = vmatprep.subr.mxu0 0.0
    %1214 = vmatpush1.msra.mxu0 0.0
    %1215 = vmatprep.subr.mxu0 0.0
    %1216 = vmatpush1.msra.mxu0 0.0
    %1217 = vmatprep.subr.mxu0 0.0
    %1218 = vmatpush1.msra.mxu0 0.0
    %1219 = vmatprep.subr.mxu0 0.0
    %1220 = vmatpush1.msra.mxu0 0.0
    %1221 = vmatprep.subr.mxu0 0.0
    %1222 = vmatpush1.msra.mxu0 0.0
    %1223 = vmatprep.subr.mxu0 0.0
    %1224 = vmatpush1.msra.mxu0 0.0
    %1225 = vmatprep.subr.mxu0 0.0
    %1226 = vmatpush1.msra.mxu0 0.0
    %1227 = vmatprep.subr.mxu0 0.0
    %1228 = vmatpush1.msra.mxu0 0.0
    %1229 = vmatprep.subr.mxu0 0.0
    %1230 = vmatpush1.msra.mxu0 0.0
    %1231 = vmatprep.subr.mxu0 0.0
    %1232 = vmatpush1.msra.mxu0 0.0
    %1233 = vmatprep.subr.mxu0 0.0
    %1234 = vmatpush1.msra.mxu0 0.0
    %1235 = vmatprep.subr.mxu0 0.0
    %1236 = vmatpush1.msra.mxu0 0.0
    %1237 = vmatprep.mubr.f32.mxu0 0.0
    %1238 = vmatmul.mubr.f32.gmra.mrb[0].mxu0 %v1171
    %v1239 = vpop.f32.mrb[0].mxu0
    %v1240 = vadd.f32 0.0, %v1239
    %v1241 = vpop.f32.mrb[0].mxu0
    %1242 = vdwg.mxu0
    %v1243 = vadd.f32 %v1170, %v1240
    %v1244 = vxor.u32 %v1243, 2147483648
    %v1245 = vmul.f32 %v1244, 1.442695
    %v1246 = vpow.pop %v1245
    %v1247 = vadd.f32 %v1246, 1.0
    %v1248 = vrcp.pop %v1247
    %v1249 = vmul.f32 1.0, %v1248
    %v1250 = vtanh.pop %v1243
    %v1251 = vmul.f32 %v1249, %v1158
    %1253 = vrot.lane.b32.xlu0 %v1250, 64
    %v1254 = vpop.permute.xlu0 %1253
    %v1256 = vmul.f32 %v1249, %v1254
    %1258 = vrot.lane.b32.xlu0 %v1256, 32
    %v1259 = vpop.permute.xlu0 %1258
    %v1261 = vadd.f32 %v1251, %v1259
    %v1262 = vtanh.pop %v1261
    %1264 = vrot.lane.b32.xlu0 %v1262, 64
    %v1265 = vpop.permute.xlu0 %1264
    %v1267 = vmul.f32 %v1249, %v1265
    %1269 = vrot.lane.b32.xlu0 %v1267, 32
    %v1270 = vpop.permute.xlu0 %1269
    %1272 = vst.msk [vmem:[#allocation2 + $0x2] sm:$0x1] %vm155, %v1270
    %v1273 = vld [vmem:[#allocation3 + $0x3] sm:$0x1]
    %v1274 = vsel %vm52, %v1270, 0
    %1276 = vmatprep.subr.mxu0 0.0
    %1277 = vmatpush1.msra.mxu0 %v878
    %1278 = vmatprep.subr.mxu0 0.0
    %1279 = vmatpush1.msra.mxu0 %v879
    %1280 = vmatprep.subr.mxu0 0.0
    %1281 = vmatpush1.msra.mxu0 %v880
    %1282 = vmatprep.subr.mxu0 0.0
    %1283 = vmatpush1.msra.mxu0 %v881
    %1284 = vmatprep.subr.mxu0 0.0
    %1285 = vmatpush1.msra.mxu0 0.0
    %1286 = vmatprep.subr.mxu0 0.0
    %1287 = vmatpush1.msra.mxu0 0.0
    %1288 = vmatprep.subr.mxu0 0.0
    %1289 = vmatpush1.msra.mxu0 0.0
    %1290 = vmatprep.subr.mxu0 0.0
    %1291 = vmatpush1.msra.mxu0 0.0
    %1292 = vmatprep.subr.mxu0 0.0
    %1293 = vmatpush1.msra.mxu0 0.0
    %1294 = vmatprep.subr.mxu0 0.0
    %1295 = vmatpush1.msra.mxu0 0.0
    %1296 = vmatprep.subr.mxu0 0.0
    %1297 = vmatpush1.msra.mxu0 0.0
    %1298 = vmatprep.subr.mxu0 0.0
    %1299 = vmatpush1.msra.mxu0 0.0
    %1300 = vmatprep.subr.mxu0 0.0
    %1301 = vmatpush1.msra.mxu0 0.0
    %1302 = vmatprep.subr.mxu0 0.0
    %1303 = vmatpush1.msra.mxu0 0.0
    %1304 = vmatprep.subr.mxu0 0.0
    %1305 = vmatpush1.msra.mxu0 0.0
    %1306 = vmatprep.subr.mxu0 0.0
    %1307 = vmatpush1.msra.mxu0 0.0
    %1308 = vmatprep.subr.mxu0 0.0
    %1309 = vmatpush1.msra.mxu0 0.0
    %1310 = vmatprep.subr.mxu0 0.0
    %1311 = vmatpush1.msra.mxu0 0.0
    %1312 = vmatprep.subr.mxu0 0.0
    %1313 = vmatpush1.msra.mxu0 0.0
    %1314 = vmatprep.subr.mxu0 0.0
    %1315 = vmatpush1.msra.mxu0 0.0
    %1316 = vmatprep.subr.mxu0 0.0
    %1317 = vmatpush1.msra.mxu0 0.0
    %1318 = vmatprep.subr.mxu0 0.0
    %1319 = vmatpush1.msra.mxu0 0.0
    %1320 = vmatprep.subr.mxu0 0.0
    %1321 = vmatpush1.msra.mxu0 0.0
    %1322 = vmatprep.subr.mxu0 0.0
    %1323 = vmatpush1.msra.mxu0 0.0
    %1324 = vmatprep.subr.mxu0 0.0
    %1325 = vmatpush1.msra.mxu0 0.0
    %1326 = vmatprep.subr.mxu0 0.0
    %1327 = vmatpush1.msra.mxu0 0.0
    %1328 = vmatprep.subr.mxu0 0.0
    %1329 = vmatpush1.msra.mxu0 0.0
    %1330 = vmatprep.subr.mxu0 0.0
    %1331 = vmatpush1.msra.mxu0 0.0
    %1332 = vmatprep.subr.mxu0 0.0
    %1333 = vmatpush1.msra.mxu0 0.0
    %1334 = vmatprep.subr.mxu0 0.0
    %1335 = vmatpush1.msra.mxu0 0.0
    %1336 = vmatprep.subr.mxu0 0.0
    %1337 = vmatpush1.msra.mxu0 0.0
    %1338 = vmatprep.subr.mxu0 0.0
    %1339 = vmatpush1.msra.mxu0 0.0
    %1340 = vmatprep.mubr.f32.mxu0 0.0
    %1341 = vmatmul.mubr.f32.gmra.mrb[0].mxu0 %v1274
    %v1342 = vpop.f32.mrb[0].mxu0
    %v1343 = vadd.f32 0.0, %v1342
    %v1344 = vpop.f32.mrb[0].mxu0
    %1345 = vdwg.mxu0
    %v1346 = vadd.f32 %v1273, %v1343
    %v1347 = vxor.u32 %v1346, 2147483648
    %v1348 = vmul.f32 %v1347, 1.442695
    %v1349 = vpow.pop %v1348
    %v1350 = vadd.f32 %v1349, 1.0
    %v1351 = vrcp.pop %v1350
    %v1352 = vmul.f32 1.0, %v1351
    %v1353 = vtanh.pop %v1346
    %v1354 = vmul.f32 %v1352, %v1261
    %1356 = vrot.lane.b32.xlu0 %v1353, 64
    %v1357 = vpop.permute.xlu0 %1356
    %v1359 = vmul.f32 %v1352, %v1357
    %1361 = vrot.lane.b32.xlu0 %v1359, 32
    %v1362 = vpop.permute.xlu0 %1361
    %v1364 = vadd.f32 %v1354, %v1362
    %v1365 = vtanh.pop %v1364
    %1367 = vrot.lane.b32.xlu0 %v1365, 64
    %v1368 = vpop.permute.xlu0 %1367
    %v1370 = vmul.f32 %v1352, %v1368
    %1372 = vrot.lane.b32.xlu0 %v1370, 32
    %v1373 = vpop.permute.xlu0 %1372
    %1375 = vst.msk [vmem:[#allocation2 + $0x3] sm:$0x1] %vm155, %v1373
    %v1376 = vld [vmem:[#allocation3 + $0x4] sm:$0x1]
    %v1377 = vsel %vm52, %v1373, 0
    %1379 = vmatprep.subr.mxu0 0.0
    %1380 = vmatpush1.msra.mxu0 %v878
    %1381 = vmatprep.subr.mxu0 0.0
    %1382 = vmatpush1.msra.mxu0 %v879
    %1383 = vmatprep.subr.mxu0 0.0
    %1384 = vmatpush1.msra.mxu0 %v880
    %1385 = vmatprep.subr.mxu0 0.0
    %1386 = vmatpush1.msra.mxu0 %v881
    %1387 = vmatprep.subr.mxu0 0.0
    %1388 = vmatpush1.msra.mxu0 0.0
    %1389 = vmatprep.subr.mxu0 0.0
    %1390 = vmatpush1.msra.mxu0 0.0
    %1391 = vmatprep.subr.mxu0 0.0
    %1392 = vmatpush1.msra.mxu0 0.0
    %1393 = vmatprep.subr.mxu0 0.0
    %1394 = vmatpush1.msra.mxu0 0.0
    %1395 = vmatprep.subr.mxu0 0.0
    %1396 = vmatpush1.msra.mxu0 0.0
    %1397 = vmatprep.subr.mxu0 0.0
    %1398 = vmatpush1.msra.mxu0 0.0
    %1399 = vmatprep.subr.mxu0 0.0
    %1400 = vmatpush1.msra.mxu0 0.0
    %1401 = vmatprep.subr.mxu0 0.0
    %1402 = vmatpush1.msra.mxu0 0.0
    %1403 = vmatprep.subr.mxu0 0.0
    %1404 = vmatpush1.msra.mxu0 0.0
    %1405 = vmatprep.subr.mxu0 0.0
    %1406 = vmatpush1.msra.mxu0 0.0
    %1407 = vmatprep.subr.mxu0 0.0
    %1408 = vmatpush1.msra.mxu0 0.0
    %1409 = vmatprep.subr.mxu0 0.0
    %1410 = vmatpush1.msra.mxu0 0.0
    %1411 = vmatprep.subr.mxu0 0.0
    %1412 = vmatpush1.msra.mxu0 0.0
    %1413 = vmatprep.subr.mxu0 0.0
    %1414 = vmatpush1.msra.mxu0 0.0
    %1415 = vmatprep.subr.mxu0 0.0
    %1416 = vmatpush1.msra.mxu0 0.0
    %1417 = vmatprep.subr.mxu0 0.0
    %1418 = vmatpush1.msra.mxu0 0.0
    %1419 = vmatprep.subr.mxu0 0.0
    %1420 = vmatpush1.msra.mxu0 0.0
    %1421 = vmatprep.subr.mxu0 0.0
    %1422 = vmatpush1.msra.mxu0 0.0
    %1423 = vmatprep.subr.mxu0 0.0
    %1424 = vmatpush1.msra.mxu0 0.0
    %1425 = vmatprep.subr.mxu0 0.0
    %1426 = vmatpush1.msra.mxu0 0.0
    %1427 = vmatprep.subr.mxu0 0.0
    %1428 = vmatpush1.msra.mxu0 0.0
    %1429 = vmatprep.subr.mxu0 0.0
    %1430 = vmatpush1.msra.mxu0 0.0
    %1431 = vmatprep.subr.mxu0 0.0
    %1432 = vmatpush1.msra.mxu0 0.0
    %1433 = vmatprep.subr.mxu0 0.0
    %1434 = vmatpush1.msra.mxu0 0.0
    %1435 = vmatprep.subr.mxu0 0.0
    %1436 = vmatpush1.msra.mxu0 0.0
    %1437 = vmatprep.subr.mxu0 0.0
    %1438 = vmatpush1.msra.mxu0 0.0
    %1439 = vmatprep.subr.mxu0 0.0
    %1440 = vmatpush1.msra.mxu0 0.0
    %1441 = vmatprep.subr.mxu0 0.0
    %1442 = vmatpush1.msra.mxu0 0.0
    %1443 = vmatprep.mubr.f32.mxu0 0.0
    %1444 = vmatmul.mubr.f32.gmra.mrb[0].mxu0 %v1377
    %v1445 = vpop.f32.mrb[0].mxu0
    %v1446 = vadd.f32 0.0, %v1445
    %v1447 = vpop.f32.mrb[0].mxu0
    %1448 = vdwg.mxu0
    %v1449 = vadd.f32 %v1376, %v1446
    %v1450 = vxor.u32 %v1449, 2147483648
    %v1451 = vmul.f32 %v1450, 1.442695
    %v1452 = vpow.pop %v1451
    %v1453 = vadd.f32 %v1452, 1.0
    %v1454 = vrcp.pop %v1453
    %v1455 = vmul.f32 1.0, %v1454
    %v1456 = vtanh.pop %v1449
    %v1457 = vmul.f32 %v1455, %v1364
    %1459 = vrot.lane.b32.xlu0 %v1456, 64
    %v1460 = vpop.permute.xlu0 %1459
    %v1462 = vmul.f32 %v1455, %v1460
    %1464 = vrot.lane.b32.xlu0 %v1462, 32
    %v1465 = vpop.permute.xlu0 %1464
    %v1467 = vadd.f32 %v1457, %v1465
    %v1468 = vtanh.pop %v1467
    %1470 = vrot.lane.b32.xlu0 %v1468, 64
    %v1471 = vpop.permute.xlu0 %1470
    %v1473 = vmul.f32 %v1455, %v1471
    %1475 = vrot.lane.b32.xlu0 %v1473, 32
    %v1476 = vpop.permute.xlu0 %1475
    %1478 = vst.msk [vmem:[#allocation2 + $0x4] sm:$0x1] %vm155, %v1476
    %v1479 = vld [vmem:[#allocation3 + $0x5] sm:$0x1]
    %v1480 = vsel %vm52, %v1476, 0
    %1482 = vmatprep.subr.mxu0 0.0
    %1483 = vmatpush1.msra.mxu0 %v878
    %1484 = vmatprep.subr.mxu0 0.0
    %1485 = vmatpush1.msra.mxu0 %v879
    %1486 = vmatprep.subr.mxu0 0.0
    %1487 = vmatpush1.msra.mxu0 %v880
    %1488 = vmatprep.subr.mxu0 0.0
    %1489 = vmatpush1.msra.mxu0 %v881
    %1490 = vmatprep.subr.mxu0 0.0
    %1491 = vmatpush1.msra.mxu0 0.0
    %1492 = vmatprep.subr.mxu0 0.0
    %1493 = vmatpush1.msra.mxu0 0.0
    %1494 = vmatprep.subr.mxu0 0.0
    %1495 = vmatpush1.msra.mxu0 0.0
    %1496 = vmatprep.subr.mxu0 0.0
    %1497 = vmatpush1.msra.mxu0 0.0
    %1498 = vmatprep.subr.mxu0 0.0
    %1499 = vmatpush1.msra.mxu0 0.0
    %1500 = vmatprep.subr.mxu0 0.0
    %1501 = vmatpush1.msra.mxu0 0.0
    %1502 = vmatprep.subr.mxu0 0.0
    %1503 = vmatpush1.msra.mxu0 0.0
    %1504 = vmatprep.subr.mxu0 0.0
    %1505 = vmatpush1.msra.mxu0 0.0
    %1506 = vmatprep.subr.mxu0 0.0
    %1507 = vmatpush1.msra.mxu0 0.0
    %1508 = vmatprep.subr.mxu0 0.0
    %1509 = vmatpush1.msra.mxu0 0.0
    %1510 = vmatprep.subr.mxu0 0.0
    %1511 = vmatpush1.msra.mxu0 0.0
    %1512 = vmatprep.subr.mxu0 0.0
    %1513 = vmatpush1.msra.mxu0 0.0
    %1514 = vmatprep.subr.mxu0 0.0
    %1515 = vmatpush1.msra.mxu0 0.0
    %1516 = vmatprep.subr.mxu0 0.0
    %1517 = vmatpush1.msra.mxu0 0.0
    %1518 = vmatprep.subr.mxu0 0.0
    %1519 = vmatpush1.msra.mxu0 0.0
    %1520 = vmatprep.subr.mxu0 0.0
    %1521 = vmatpush1.msra.mxu0 0.0
    %1522 = vmatprep.subr.mxu0 0.0
    %1523 = vmatpush1.msra.mxu0 0.0
    %1524 = vmatprep.subr.mxu0 0.0
    %1525 = vmatpush1.msra.mxu0 0.0
    %1526 = vmatprep.subr.mxu0 0.0
    %1527 = vmatpush1.msra.mxu0 0.0
    %1528 = vmatprep.subr.mxu0 0.0
    %1529 = vmatpush1.msra.mxu0 0.0
    %1530 = vmatprep.subr.mxu0 0.0
    %1531 = vmatpush1.msra.mxu0 0.0
    %1532 = vmatprep.subr.mxu0 0.0
    %1533 = vmatpush1.msra.mxu0 0.0
    %1534 = vmatprep.subr.mxu0 0.0
    %1535 = vmatpush1.msra.mxu0 0.0
    %1536 = vmatprep.subr.mxu0 0.0
    %1537 = vmatpush1.msra.mxu0 0.0
    %1538 = vmatprep.subr.mxu0 0.0
    %1539 = vmatpush1.msra.mxu0 0.0
    %1540 = vmatprep.subr.mxu0 0.0
    %1541 = vmatpush1.msra.mxu0 0.0
    %1542 = vmatprep.subr.mxu0 0.0
    %1543 = vmatpush1.msra.mxu0 0.0
    %1544 = vmatprep.subr.mxu0 0.0
    %1545 = vmatpush1.msra.mxu0 0.0
    %1546 = vmatprep.mubr.f32.mxu0 0.0
    %1547 = vmatmul.mubr.f32.gmra.mrb[0].mxu0 %v1480
    %v1548 = vpop.f32.mrb[0].mxu0
    %v1549 = vadd.f32 0.0, %v1548
    %v1550 = vpop.f32.mrb[0].mxu0
    %1551 = vdwg.mxu0
    %v1552 = vadd.f32 %v1479, %v1549
    %v1553 = vxor.u32 %v1552, 2147483648
    %v1554 = vmul.f32 %v1553, 1.442695
    %v1555 = vpow.pop %v1554
    %v1556 = vadd.f32 %v1555, 1.0
    %v1557 = vrcp.pop %v1556
    %v1558 = vmul.f32 1.0, %v1557
    %v1559 = vtanh.pop %v1552
    %v1560 = vmul.f32 %v1558, %v1467
    %1562 = vrot.lane.b32.xlu0 %v1559, 64
    %v1563 = vpop.permute.xlu0 %1562
    %v1565 = vmul.f32 %v1558, %v1563
    %1567 = vrot.lane.b32.xlu0 %v1565, 32
    %v1568 = vpop.permute.xlu0 %1567
    %v1570 = vadd.f32 %v1560, %v1568
    %v1571 = vtanh.pop %v1570
    %1573 = vrot.lane.b32.xlu0 %v1571, 64
    %v1574 = vpop.permute.xlu0 %1573
    %v1576 = vmul.f32 %v1558, %v1574
    %1578 = vrot.lane.b32.xlu0 %v1576, 32
    %v1579 = vpop.permute.xlu0 %1578
    %1581 = vst.msk [vmem:[#allocation2 + $0x5] sm:$0x1] %vm155, %v1579
    %v1582 = vld [vmem:[#allocation3 + $0x6] sm:$0x1]
    %v1583 = vsel %vm52, %v1579, 0
    %1585 = vmatprep.subr.mxu0 0.0
    %1586 = vmatpush1.msra.mxu0 %v878
    %1587 = vmatprep.subr.mxu0 0.0
    %1588 = vmatpush1.msra.mxu0 %v879
    %1589 = vmatprep.subr.mxu0 0.0
    %1590 = vmatpush1.msra.mxu0 %v880
    %1591 = vmatprep.subr.mxu0 0.0
    %1592 = vmatpush1.msra.mxu0 %v881
    %1593 = vmatprep.subr.mxu0 0.0
    %1594 = vmatpush1.msra.mxu0 0.0
    %1595 = vmatprep.subr.mxu0 0.0
    %1596 = vmatpush1.msra.mxu0 0.0
    %1597 = vmatprep.subr.mxu0 0.0
    %1598 = vmatpush1.msra.mxu0 0.0
    %1599 = vmatprep.subr.mxu0 0.0
    %1600 = vmatpush1.msra.mxu0 0.0
    %1601 = vmatprep.subr.mxu0 0.0
    %1602 = vmatpush1.msra.mxu0 0.0
    %1603 = vmatprep.subr.mxu0 0.0
    %1604 = vmatpush1.msra.mxu0 0.0
    %1605 = vmatprep.subr.mxu0 0.0
    %1606 = vmatpush1.msra.mxu0 0.0
    %1607 = vmatprep.subr.mxu0 0.0
    %1608 = vmatpush1.msra.mxu0 0.0
    %1609 = vmatprep.subr.mxu0 0.0
    %1610 = vmatpush1.msra.mxu0 0.0
    %1611 = vmatprep.subr.mxu0 0.0
    %1612 = vmatpush1.msra.mxu0 0.0
    %1613 = vmatprep.subr.mxu0 0.0
    %1614 = vmatpush1.msra.mxu0 0.0
    %1615 = vmatprep.subr.mxu0 0.0
    %1616 = vmatpush1.msra.mxu0 0.0
    %1617 = vmatprep.subr.mxu0 0.0
    %1618 = vmatpush1.msra.mxu0 0.0
    %1619 = vmatprep.subr.mxu0 0.0
    %1620 = vmatpush1.msra.mxu0 0.0
    %1621 = vmatprep.subr.mxu0 0.0
    %1622 = vmatpush1.msra.mxu0 0.0
    %1623 = vmatprep.subr.mxu0 0.0
    %1624 = vmatpush1.msra.mxu0 0.0
    %1625 = vmatprep.subr.mxu0 0.0
    %1626 = vmatpush1.msra.mxu0 0.0
    %1627 = vmatprep.subr.mxu0 0.0
    %1628 = vmatpush1.msra.mxu0 0.0
    %1629 = vmatprep.subr.mxu0 0.0
    %1630 = vmatpush1.msra.mxu0 0.0
    %1631 = vmatprep.subr.mxu0 0.0
    %1632 = vmatpush1.msra.mxu0 0.0
    %1633 = vmatprep.subr.mxu0 0.0
    %1634 = vmatpush1.msra.mxu0 0.0
    %1635 = vmatprep.subr.mxu0 0.0
    %1636 = vmatpush1.msra.mxu0 0.0
    %1637 = vmatprep.subr.mxu0 0.0
    %1638 = vmatpush1.msra.mxu0 0.0
    %1639 = vmatprep.subr.mxu0 0.0
    %1640 = vmatpush1.msra.mxu0 0.0
    %1641 = vmatprep.subr.mxu0 0.0
    %1642 = vmatpush1.msra.mxu0 0.0
    %1643 = vmatprep.subr.mxu0 0.0
    %1644 = vmatpush1.msra.mxu0 0.0
    %1645 = vmatprep.subr.mxu0 0.0
    %1646 = vmatpush1.msra.mxu0 0.0
    %1647 = vmatprep.subr.mxu0 0.0
    %1648 = vmatpush1.msra.mxu0 0.0
    %1649 = vmatprep.mubr.f32.mxu0 0.0
    %1650 = vmatmul.mubr.f32.gmra.mrb[0].mxu0 %v1583
    %v1651 = vpop.f32.mrb[0].mxu0
    %v1652 = vadd.f32 0.0, %v1651
    %v1653 = vpop.f32.mrb[0].mxu0
    %1654 = vdwg.mxu0
    %v1655 = vadd.f32 %v1582, %v1652
    %v1656 = vxor.u32 %v1655, 2147483648
    %v1657 = vmul.f32 %v1656, 1.442695
    %v1658 = vpow.pop %v1657
    %v1659 = vadd.f32 %v1658, 1.0
    %v1660 = vrcp.pop %v1659
    %v1661 = vmul.f32 1.0, %v1660
    %v1662 = vtanh.pop %v1655
    %v1663 = vmul.f32 %v1661, %v1570
    %1665 = vrot.lane.b32.xlu0 %v1662, 64
    %v1666 = vpop.permute.xlu0 %1665
    %v1668 = vmul.f32 %v1661, %v1666
    %1670 = vrot.lane.b32.xlu0 %v1668, 32
    %v1671 = vpop.permute.xlu0 %1670
    %v1673 = vadd.f32 %v1663, %v1671
    %v1674 = vtanh.pop %v1673
    %1676 = vrot.lane.b32.xlu0 %v1674, 64
    %v1677 = vpop.permute.xlu0 %1676
    %v1679 = vmul.f32 %v1661, %v1677
    %1681 = vrot.lane.b32.xlu0 %v1679, 32
    %v1682 = vpop.permute.xlu0 %1681
    %1684 = vst.msk [vmem:[#allocation2 + $0x6] sm:$0x1] %vm155, %v1682
    %v1685 = vld [vmem:[#allocation3 + $0x7] sm:$0x1]
    %v1686 = vsel %vm52, %v1682, 0
    %1688 = vmatprep.subr.mxu0 0.0
    %1689 = vmatpush1.msra.mxu0 %v878
    %1690 = vmatprep.subr.mxu0 0.0
    %1691 = vmatpush1.msra.mxu0 %v879
    %1692 = vmatprep.subr.mxu0 0.0
    %1693 = vmatpush1.msra.mxu0 %v880
    %1694 = vmatprep.subr.mxu0 0.0
    %1695 = vmatpush1.msra.mxu0 %v881
    %1696 = vmatprep.subr.mxu0 0.0
    %1697 = vmatpush1.msra.mxu0 0.0
    %1698 = vmatprep.subr.mxu0 0.0
    %1699 = vmatpush1.msra.mxu0 0.0
    %1700 = vmatprep.subr.mxu0 0.0
    %1701 = vmatpush1.msra.mxu0 0.0
    %1702 = vmatprep.subr.mxu0 0.0
    %1703 = vmatpush1.msra.mxu0 0.0
    %1704 = vmatprep.subr.mxu0 0.0
    %1705 = vmatpush1.msra.mxu0 0.0
    %1706 = vmatprep.subr.mxu0 0.0
    %1707 = vmatpush1.msra.mxu0 0.0
    %1708 = vmatprep.subr.mxu0 0.0
    %1709 = vmatpush1.msra.mxu0 0.0
    %1710 = vmatprep.subr.mxu0 0.0
    %1711 = vmatpush1.msra.mxu0 0.0
    %1712 = vmatprep.subr.mxu0 0.0
    %1713 = vmatpush1.msra.mxu0 0.0
    %1714 = vmatprep.subr.mxu0 0.0
    %1715 = vmatpush1.msra.mxu0 0.0
    %1716 = vmatprep.subr.mxu0 0.0
    %1717 = vmatpush1.msra.mxu0 0.0
    %1718 = vmatprep.subr.mxu0 0.0
    %1719 = vmatpush1.msra.mxu0 0.0
    %1720 = vmatprep.subr.mxu0 0.0
    %1721 = vmatpush1.msra.mxu0 0.0
    %1722 = vmatprep.subr.mxu0 0.0
    %1723 = vmatpush1.msra.mxu0 0.0
    %1724 = vmatprep.subr.mxu0 0.0
    %1725 = vmatpush1.msra.mxu0 0.0
    %1726 = vmatprep.subr.mxu0 0.0
    %1727 = vmatpush1.msra.mxu0 0.0
    %1728 = vmatprep.subr.mxu0 0.0
    %1729 = vmatpush1.msra.mxu0 0.0
    %1730 = vmatprep.subr.mxu0 0.0
    %1731 = vmatpush1.msra.mxu0 0.0
    %1732 = vmatprep.subr.mxu0 0.0
    %1733 = vmatpush1.msra.mxu0 0.0
    %1734 = vmatprep.subr.mxu0 0.0
    %1735 = vmatpush1.msra.mxu0 0.0
    %1736 = vmatprep.subr.mxu0 0.0
    %1737 = vmatpush1.msra.mxu0 0.0
    %1738 = vmatprep.subr.mxu0 0.0
    %1739 = vmatpush1.msra.mxu0 0.0
    %1740 = vmatprep.subr.mxu0 0.0
    %1741 = vmatpush1.msra.mxu0 0.0
    %1742 = vmatprep.subr.mxu0 0.0
    %1743 = vmatpush1.msra.mxu0 0.0
    %1744 = vmatprep.subr.mxu0 0.0
    %1745 = vmatpush1.msra.mxu0 0.0
    %1746 = vmatprep.subr.mxu0 0.0
    %1747 = vmatpush1.msra.mxu0 0.0
    %1748 = vmatprep.subr.mxu0 0.0
    %1749 = vmatpush1.msra.mxu0 0.0
    %1750 = vmatprep.subr.mxu0 0.0
    %1751 = vmatpush1.msra.mxu0 0.0
    %1752 = vmatprep.mubr.f32.mxu0 0.0
    %1753 = vmatmul.mubr.f32.gmra.mrb[0].mxu0 %v1686
    %v1754 = vpop.f32.mrb[0].mxu0
    %v1755 = vadd.f32 0.0, %v1754
    %v1756 = vpop.f32.mrb[0].mxu0
    %1757 = vdwg.mxu0
    %v1758 = vadd.f32 %v1685, %v1755
    %v1759 = vxor.u32 %v1758, 2147483648
    %v1760 = vmul.f32 %v1759, 1.442695
    %v1761 = vpow.pop %v1760
    %v1762 = vadd.f32 %v1761, 1.0
    %v1763 = vrcp.pop %v1762
    %v1764 = vmul.f32 1.0, %v1763
    %v1765 = vtanh.pop %v1758
    %v1766 = vmul.f32 %v1764, %v1673
    %1768 = vrot.lane.b32.xlu0 %v1765, 64
    %v1769 = vpop.permute.xlu0 %1768
    %v1771 = vmul.f32 %v1764, %v1769
    %1773 = vrot.lane.b32.xlu0 %v1771, 32
    %v1774 = vpop.permute.xlu0 %1773
    %v1776 = vadd.f32 %v1766, %v1774
    %v1777 = vtanh.pop %v1776
    %1779 = vrot.lane.b32.xlu0 %v1777, 64
    %v1780 = vpop.permute.xlu0 %1779
    %v1782 = vmul.f32 %v1764, %v1780
    %1784 = vrot.lane.b32.xlu0 %v1782, 32
    %v1785 = vpop.permute.xlu0 %1784
    %1787 = vst.msk [vmem:[#allocation2 + $0x7] sm:$0x1] %vm155, %v1785
    %v1788 = vld [vmem:[#allocation4 + $0xb0] sm:$0xff]
    %v1789 = vld [vmem:[#allocation4 + $0xb8] sm:$0xff]
    %v1790 = vld [vmem:[#allocation4 + $0xc0] sm:$0xff]
    %v1791 = vld [vmem:[#allocation4 + $0xc8] sm:$0xff]
    %v1792 = vld [vmem:[#allocation4 + $0xd0] sm:$0x1]
    %v1793 = vld [vmem:[#allocation2] sm:$0xff]
    %v1794 = vld [vmem:[#allocation4 + $0x90] sm:$0xff]
    %v1795 = vld [vmem:[#allocation4 + $0x98] sm:$0xff]
    %v1796 = vld [vmem:[#allocation4 + $0xa0] sm:$0xff]
    %v1797 = vld [vmem:[#allocation4 + $0xa8] sm:$0xff]
    %v1798 = vlaneseq
    %v1799 = vshrl.u32 %v1798, 7
    %v1800 = vsub.s32 0, %v1799
    %v1801 = vrot.slane %v1792, %v1800
    %v1803 = vsel %vm52, %v1793, 0
    %1805 = vmatprep.subr.mxu0 0.0
    %1806 = vmatpush1.msra.mxu0 %v1794
    %1807 = vmatprep.subr.mxu0 0.0
    %1808 = vmatpush1.msra.mxu0 %v1795
    %1809 = vmatprep.subr.mxu0 0.0
    %1810 = vmatpush1.msra.mxu0 %v1796
    %1811 = vmatprep.subr.mxu0 0.0
    %1812 = vmatpush1.msra.mxu0 %v1797
    %1813 = vmatprep.subr.mxu0 0.0
    %1814 = vmatpush1.msra.mxu0 0.0
    %1815 = vmatprep.subr.mxu0 0.0
    %1816 = vmatpush1.msra.mxu0 0.0
    %1817 = vmatprep.subr.mxu0 0.0
    %1818 = vmatpush1.msra.mxu0 0.0
    %1819 = vmatprep.subr.mxu0 0.0
    %1820 = vmatpush1.msra.mxu0 0.0
    %1821 = vmatprep.subr.mxu0 0.0
    %1822 = vmatpush1.msra.mxu0 0.0
    %1823 = vmatprep.subr.mxu0 0.0
    %1824 = vmatpush1.msra.mxu0 0.0
    %1825 = vmatprep.subr.mxu0 0.0
    %1826 = vmatpush1.msra.mxu0 0.0
    %1827 = vmatprep.subr.mxu0 0.0
    %1828 = vmatpush1.msra.mxu0 0.0
    %1829 = vmatprep.subr.mxu0 0.0
    %1830 = vmatpush1.msra.mxu0 0.0
    %1831 = vmatprep.subr.mxu0 0.0
    %1832 = vmatpush1.msra.mxu0 0.0
    %1833 = vmatprep.subr.mxu0 0.0
    %1834 = vmatpush1.msra.mxu0 0.0
    %1835 = vmatprep.subr.mxu0 0.0
    %1836 = vmatpush1.msra.mxu0 0.0
    %1837 = vmatprep.subr.mxu0 0.0
    %1838 = vmatpush1.msra.mxu0 0.0
    %1839 = vmatprep.subr.mxu0 0.0
    %1840 = vmatpush1.msra.mxu0 0.0
    %1841 = vmatprep.subr.mxu0 0.0
    %1842 = vmatpush1.msra.mxu0 0.0
    %1843 = vmatprep.subr.mxu0 0.0
    %1844 = vmatpush1.msra.mxu0 0.0
    %1845 = vmatprep.subr.mxu0 0.0
    %1846 = vmatpush1.msra.mxu0 0.0
    %1847 = vmatprep.subr.mxu0 0.0
    %1848 = vmatpush1.msra.mxu0 0.0
    %1849 = vmatprep.subr.mxu0 0.0
    %1850 = vmatpush1.msra.mxu0 0.0
    %1851 = vmatprep.subr.mxu0 0.0
    %1852 = vmatpush1.msra.mxu0 0.0
    %1853 = vmatprep.subr.mxu0 0.0
    %1854 = vmatpush1.msra.mxu0 0.0
    %1855 = vmatprep.subr.mxu0 0.0
    %1856 = vmatpush1.msra.mxu0 0.0
    %1857 = vmatprep.subr.mxu0 0.0
    %1858 = vmatpush1.msra.mxu0 0.0
    %1859 = vmatprep.subr.mxu0 0.0
    %1860 = vmatpush1.msra.mxu0 0.0
    %1861 = vmatprep.subr.mxu0 0.0
    %1862 = vmatpush1.msra.mxu0 0.0
    %1863 = vmatprep.subr.mxu0 0.0
    %1864 = vmatpush1.msra.mxu0 0.0
    %1865 = vmatprep.subr.mxu0 0.0
    %1866 = vmatpush1.msra.mxu0 0.0
    %1867 = vmatprep.subr.mxu0 0.0
    %1868 = vmatpush1.msra.mxu0 0.0
    %1869 = vmatprep.mubr.f32.mxu0 0.0
    %1870 = vmatmul.mubr.f32.gmra.mrb[0].mxu0 %v1803
    %v1871 = vpop.f32.mrb[0].mxu0
    %v1872 = vadd.f32 %v1801, %v1871
    %v1873 = vpop.f32.mrb[0].mxu0
    %1874 = vdwg.mxu0
    %1875 = vst [vmem:[#allocation3] sm:$0xff] %v1872
    %v1876 = vld [vmem:[#allocation3] sm:$0x1]
    %1877 = vmatprep.subr.mxu0 0.0
    %1878 = vmatpush1.msra.mxu0 %v1788
    %1879 = vmatprep.subr.mxu0 0.0
    %1880 = vmatpush1.msra.mxu0 %v1789
    %1881 = vmatprep.subr.mxu0 0.0
    %1882 = vmatpush1.msra.mxu0 %v1790
    %1883 = vmatprep.subr.mxu0 0.0
    %1884 = vmatpush1.msra.mxu0 %v1791
    %1885 = vmatprep.subr.mxu0 0.0
    %1886 = vmatpush1.msra.mxu0 0.0
    %1887 = vmatprep.subr.mxu0 0.0
    %1888 = vmatpush1.msra.mxu0 0.0
    %1889 = vmatprep.subr.mxu0 0.0
    %1890 = vmatpush1.msra.mxu0 0.0
    %1891 = vmatprep.subr.mxu0 0.0
    %1892 = vmatpush1.msra.mxu0 0.0
    %1893 = vmatprep.subr.mxu0 0.0
    %1894 = vmatpush1.msra.mxu0 0.0
    %1895 = vmatprep.subr.mxu0 0.0
    %1896 = vmatpush1.msra.mxu0 0.0
    %1897 = vmatprep.subr.mxu0 0.0
    %1898 = vmatpush1.msra.mxu0 0.0
    %1899 = vmatprep.subr.mxu0 0.0
    %1900 = vmatpush1.msra.mxu0 0.0
    %1901 = vmatprep.subr.mxu0 0.0
    %1902 = vmatpush1.msra.mxu0 0.0
    %1903 = vmatprep.subr.mxu0 0.0
    %1904 = vmatpush1.msra.mxu0 0.0
    %1905 = vmatprep.subr.mxu0 0.0
    %1906 = vmatpush1.msra.mxu0 0.0
    %1907 = vmatprep.subr.mxu0 0.0
    %1908 = vmatpush1.msra.mxu0 0.0
    %1909 = vmatprep.subr.mxu0 0.0
    %1910 = vmatpush1.msra.mxu0 0.0
    %1911 = vmatprep.subr.mxu0 0.0
    %1912 = vmatpush1.msra.mxu0 0.0
    %1913 = vmatprep.subr.mxu0 0.0
    %1914 = vmatpush1.msra.mxu0 0.0
    %1915 = vmatprep.subr.mxu0 0.0
    %1916 = vmatpush1.msra.mxu0 0.0
    %1917 = vmatprep.subr.mxu0 0.0
    %1918 = vmatpush1.msra.mxu0 0.0
    %1919 = vmatprep.subr.mxu0 0.0
    %1920 = vmatpush1.msra.mxu0 0.0
    %1921 = vmatprep.subr.mxu0 0.0
    %1922 = vmatpush1.msra.mxu0 0.0
    %1923 = vmatprep.subr.mxu0 0.0
    %1924 = vmatpush1.msra.mxu0 0.0
    %1925 = vmatprep.subr.mxu0 0.0
    %1926 = vmatpush1.msra.mxu0 0.0
    %1927 = vmatprep.subr.mxu0 0.0
    %1928 = vmatpush1.msra.mxu0 0.0
    %1929 = vmatprep.subr.mxu0 0.0
    %1930 = vmatpush1.msra.mxu0 0.0
    %1931 = vmatprep.subr.mxu0 0.0
    %1932 = vmatpush1.msra.mxu0 0.0
    %1933 = vmatprep.subr.mxu0 0.0
    %1934 = vmatpush1.msra.mxu0 0.0
    %1935 = vmatprep.subr.mxu0 0.0
    %1936 = vmatpush1.msra.mxu0 0.0
    %1937 = vmatprep.subr.mxu0 0.0
    %1938 = vmatpush1.msra.mxu0 0.0
    %1939 = vmatprep.subr.mxu0 0.0
    %1940 = vmatpush1.msra.mxu0 0.0
    %1941 = vmatprep.mubr.f32.mxu0 0.0
    %1942 = vmatmul.mubr.f32.gmra.mrb[0].mxu0 %v54
    %v1943 = vpop.f32.mrb[0].mxu0
    %v1944 = vadd.f32 0.0, %v1943
    %v1945 = vpop.f32.mrb[0].mxu0
    %1946 = vdwg.mxu0
    %v1947 = vadd.f32 %v1876, %v1944
    %v1948 = vxor.u32 %v1947, 2147483648
    %v1949 = vmul.f32 %v1948, 1.442695
    %v1950 = vpow.pop %v1949
    %v1951 = vadd.f32 %v1950, 1.0
    %v1952 = vrcp.pop %v1951
    %v1953 = vmul.f32 1.0, %v1952
    %v1954 = vtanh.pop %v1947
    %v1955 = vmul.f32 %v1953, 0.0
    %1957 = vrot.lane.b32.xlu0 %v1954, 64
    %v1958 = vpop.permute.xlu0 %1957
    %v1960 = vmul.f32 %v1953, %v1958
    %1962 = vrot.lane.b32.xlu0 %v1960, 32
    %v1963 = vpop.permute.xlu0 %1962
    %v1965 = vadd.f32 %v1955, %v1963
    %v1966 = vtanh.pop %v1965
    %1968 = vrot.lane.b32.xlu0 %v1966, 64
    %v1969 = vpop.permute.xlu0 %1968
    %v1971 = vmul.f32 %v1953, %v1969
    %1973 = vrot.lane.b32.xlu0 %v1971, 32
    %v1974 = vpop.permute.xlu0 %1973
    %1976 = vst.msk [vmem:[#allocation2] sm:$0x1] %vm155, %v1974
    %v1977 = vld [vmem:[#allocation3 + $0x1] sm:$0x1]
    %v1978 = vsel %vm52, %v1974, 0
    %1980 = vmatprep.subr.mxu0 0.0
    %1981 = vmatpush1.msra.mxu0 %v1788
    %1982 = vmatprep.subr.mxu0 0.0
    %1983 = vmatpush1.msra.mxu0 %v1789
    %1984 = vmatprep.subr.mxu0 0.0
    %1985 = vmatpush1.msra.mxu0 %v1790
    %1986 = vmatprep.subr.mxu0 0.0
    %1987 = vmatpush1.msra.mxu0 %v1791
    %1988 = vmatprep.subr.mxu0 0.0
    %1989 = vmatpush1.msra.mxu0 0.0
    %1990 = vmatprep.subr.mxu0 0.0
    %1991 = vmatpush1.msra.mxu0 0.0
    %1992 = vmatprep.subr.mxu0 0.0
    %1993 = vmatpush1.msra.mxu0 0.0
    %1994 = vmatprep.subr.mxu0 0.0
    %1995 = vmatpush1.msra.mxu0 0.0
    %1996 = vmatprep.subr.mxu0 0.0
    %1997 = vmatpush1.msra.mxu0 0.0
    %1998 = vmatprep.subr.mxu0 0.0
    %1999 = vmatpush1.msra.mxu0 0.0
    %2000 = vmatprep.subr.mxu0 0.0
    %2001 = vmatpush1.msra.mxu0 0.0
    %2002 = vmatprep.subr.mxu0 0.0
    %2003 = vmatpush1.msra.mxu0 0.0
    %2004 = vmatprep.subr.mxu0 0.0
    %2005 = vmatpush1.msra.mxu0 0.0
    %2006 = vmatprep.subr.mxu0 0.0
    %2007 = vmatpush1.msra.mxu0 0.0
    %2008 = vmatprep.subr.mxu0 0.0
    %2009 = vmatpush1.msra.mxu0 0.0
    %2010 = vmatprep.subr.mxu0 0.0
    %2011 = vmatpush1.msra.mxu0 0.0
    %2012 = vmatprep.subr.mxu0 0.0
    %2013 = vmatpush1.msra.mxu0 0.0
    %2014 = vmatprep.subr.mxu0 0.0
    %2015 = vmatpush1.msra.mxu0 0.0
    %2016 = vmatprep.subr.mxu0 0.0
    %2017 = vmatpush1.msra.mxu0 0.0
    %2018 = vmatprep.subr.mxu0 0.0
    %2019 = vmatpush1.msra.mxu0 0.0
    %2020 = vmatprep.subr.mxu0 0.0
    %2021 = vmatpush1.msra.mxu0 0.0
    %2022 = vmatprep.subr.mxu0 0.0
    %2023 = vmatpush1.msra.mxu0 0.0
    %2024 = vmatprep.subr.mxu0 0.0
    %2025 = vmatpush1.msra.mxu0 0.0
    %2026 = vmatprep.subr.mxu0 0.0
    %2027 = vmatpush1.msra.mxu0 0.0
    %2028 = vmatprep.subr.mxu0 0.0
    %2029 = vmatpush1.msra.mxu0 0.0
    %2030 = vmatprep.subr.mxu0 0.0
    %2031 = vmatpush1.msra.mxu0 0.0
    %2032 = vmatprep.subr.mxu0 0.0
    %2033 = vmatpush1.msra.mxu0 0.0
    %2034 = vmatprep.subr.mxu0 0.0
    %2035 = vmatpush1.msra.mxu0 0.0
    %2036 = vmatprep.subr.mxu0 0.0
    %2037 = vmatpush1.msra.mxu0 0.0
    %2038 = vmatprep.subr.mxu0 0.0
    %2039 = vmatpush1.msra.mxu0 0.0
    %2040 = vmatprep.subr.mxu0 0.0
    %2041 = vmatpush1.msra.mxu0 0.0
    %2042 = vmatprep.subr.mxu0 0.0
    %2043 = vmatpush1.msra.mxu0 0.0
    %2044 = vmatprep.mubr.f32.mxu0 0.0
    %2045 = vmatmul.mubr.f32.gmra.mrb[0].mxu0 %v1978
    %v2046 = vpop.f32.mrb[0].mxu0
    %v2047 = vadd.f32 0.0, %v2046
    %v2048 = vpop.f32.mrb[0].mxu0
    %2049 = vdwg.mxu0
    %v2050 = vadd.f32 %v1977, %v2047
    %v2051 = vxor.u32 %v2050, 2147483648
    %v2052 = vmul.f32 %v2051, 1.442695
    %v2053 = vpow.pop %v2052
    %v2054 = vadd.f32 %v2053, 1.0
    %v2055 = vrcp.pop %v2054
    %v2056 = vmul.f32 1.0, %v2055
    %v2057 = vtanh.pop %v2050
    %v2058 = vmul.f32 %v2056, %v1965
    %2060 = vrot.lane.b32.xlu0 %v2057, 64
    %v2061 = vpop.permute.xlu0 %2060
    %v2063 = vmul.f32 %v2056, %v2061
    %2065 = vrot.lane.b32.xlu0 %v2063, 32
    %v2066 = vpop.permute.xlu0 %2065
    %v2068 = vadd.f32 %v2058, %v2066
    %v2069 = vtanh.pop %v2068
    %2071 = vrot.lane.b32.xlu0 %v2069, 64
    %v2072 = vpop.permute.xlu0 %2071
    %v2074 = vmul.f32 %v2056, %v2072
    %2076 = vrot.lane.b32.xlu0 %v2074, 32
    %v2077 = vpop.permute.xlu0 %2076
    %2079 = vst.msk [vmem:[#allocation2 + $0x1] sm:$0x1] %vm155, %v2077
    %v2080 = vld [vmem:[#allocation3 + $0x2] sm:$0x1]
    %v2081 = vsel %vm52, %v2077, 0
    %2083 = vmatprep.subr.mxu0 0.0
    %2084 = vmatpush1.msra.mxu0 %v1788
    %2085 = vmatprep.subr.mxu0 0.0
    %2086 = vmatpush1.msra.mxu0 %v1789
    %2087 = vmatprep.subr.mxu0 0.0
    %2088 = vmatpush1.msra.mxu0 %v1790
    %2089 = vmatprep.subr.mxu0 0.0
    %2090 = vmatpush1.msra.mxu0 %v1791
    %2091 = vmatprep.subr.mxu0 0.0
    %2092 = vmatpush1.msra.mxu0 0.0
    %2093 = vmatprep.subr.mxu0 0.0
    %2094 = vmatpush1.msra.mxu0 0.0
    %2095 = vmatprep.subr.mxu0 0.0
    %2096 = vmatpush1.msra.mxu0 0.0
    %2097 = vmatprep.subr.mxu0 0.0
    %2098 = vmatpush1.msra.mxu0 0.0
    %2099 = vmatprep.subr.mxu0 0.0
    %2100 = vmatpush1.msra.mxu0 0.0
    %2101 = vmatprep.subr.mxu0 0.0
    %2102 = vmatpush1.msra.mxu0 0.0
    %2103 = vmatprep.subr.mxu0 0.0
    %2104 = vmatpush1.msra.mxu0 0.0
    %2105 = vmatprep.subr.mxu0 0.0
    %2106 = vmatpush1.msra.mxu0 0.0
    %2107 = vmatprep.subr.mxu0 0.0
    %2108 = vmatpush1.msra.mxu0 0.0
    %2109 = vmatprep.subr.mxu0 0.0
    %2110 = vmatpush1.msra.mxu0 0.0
    %2111 = vmatprep.subr.mxu0 0.0
    %2112 = vmatpush1.msra.mxu0 0.0
    %2113 = vmatprep.subr.mxu0 0.0
    %2114 = vmatpush1.msra.mxu0 0.0
    %2115 = vmatprep.subr.mxu0 0.0
    %2116 = vmatpush1.msra.mxu0 0.0
    %2117 = vmatprep.subr.mxu0 0.0
    %2118 = vmatpush1.msra.mxu0 0.0
    %2119 = vmatprep.subr.mxu0 0.0
    %2120 = vmatpush1.msra.mxu0 0.0
    %2121 = vmatprep.subr.mxu0 0.0
    %2122 = vmatpush1.msra.mxu0 0.0
    %2123 = vmatprep.subr.mxu0 0.0
    %2124 = vmatpush1.msra.mxu0 0.0
    %2125 = vmatprep.subr.mxu0 0.0
    %2126 = vmatpush1.msra.mxu0 0.0
    %2127 = vmatprep.subr.mxu0 0.0
    %2128 = vmatpush1.msra.mxu0 0.0
    %2129 = vmatprep.subr.mxu0 0.0
    %2130 = vmatpush1.msra.mxu0 0.0
    %2131 = vmatprep.subr.mxu0 0.0
    %2132 = vmatpush1.msra.mxu0 0.0
    %2133 = vmatprep.subr.mxu0 0.0
    %2134 = vmatpush1.msra.mxu0 0.0
    %2135 = vmatprep.subr.mxu0 0.0
    %2136 = vmatpush1.msra.mxu0 0.0
    %2137 = vmatprep.subr.mxu0 0.0
    %2138 = vmatpush1.msra.mxu0 0.0
    %2139 = vmatprep.subr.mxu0 0.0
    %2140 = vmatpush1.msra.mxu0 0.0
    %2141 = vmatprep.subr.mxu0 0.0
    %2142 = vmatpush1.msra.mxu0 0.0
    %2143 = vmatprep.subr.mxu0 0.0
    %2144 = vmatpush1.msra.mxu0 0.0
    %2145 = vmatprep.subr.mxu0 0.0
    %2146 = vmatpush1.msra.mxu0 0.0
    %2147 = vmatprep.mubr.f32.mxu0 0.0
    %2148 = vmatmul.mubr.f32.gmra.mrb[0].mxu0 %v2081
    %v2149 = vpop.f32.mrb[0].mxu0
    %v2150 = vadd.f32 0.0, %v2149
    %v2151 = vpop.f32.mrb[0].mxu0
    %2152 = vdwg.mxu0
    %v2153 = vadd.f32 %v2080, %v2150
    %v2154 = vxor.u32 %v2153, 2147483648
    %v2155 = vmul.f32 %v2154, 1.442695
    %v2156 = vpow.pop %v2155
    %v2157 = vadd.f32 %v2156, 1.0
    %v2158 = vrcp.pop %v2157
    %v2159 = vmul.f32 1.0, %v2158
    %v2160 = vtanh.pop %v2153
    %v2161 = vmul.f32 %v2159, %v2068
    %2163 = vrot.lane.b32.xlu0 %v2160, 64
    %v2164 = vpop.permute.xlu0 %2163
    %v2166 = vmul.f32 %v2159, %v2164
    %2168 = vrot.lane.b32.xlu0 %v2166, 32
    %v2169 = vpop.permute.xlu0 %2168
    %v2171 = vadd.f32 %v2161, %v2169
    %v2172 = vtanh.pop %v2171
    %2174 = vrot.lane.b32.xlu0 %v2172, 64
    %v2175 = vpop.permute.xlu0 %2174
    %v2177 = vmul.f32 %v2159, %v2175
    %2179 = vrot.lane.b32.xlu0 %v2177, 32
    %v2180 = vpop.permute.xlu0 %2179
    %2182 = vst.msk [vmem:[#allocation2 + $0x2] sm:$0x1] %vm155, %v2180
    %v2183 = vld [vmem:[#allocation3 + $0x3] sm:$0x1]
    %v2184 = vsel %vm52, %v2180, 0
    %2186 = vmatprep.subr.mxu0 0.0
    %2187 = vmatpush1.msra.mxu0 %v1788
    %2188 = vmatprep.subr.mxu0 0.0
    %2189 = vmatpush1.msra.mxu0 %v1789
    %2190 = vmatprep.subr.mxu0 0.0
    %2191 = vmatpush1.msra.mxu0 %v1790
    %2192 = vmatprep.subr.mxu0 0.0
    %2193 = vmatpush1.msra.mxu0 %v1791
    %2194 = vmatprep.subr.mxu0 0.0
    %2195 = vmatpush1.msra.mxu0 0.0
    %2196 = vmatprep.subr.mxu0 0.0
    %2197 = vmatpush1.msra.mxu0 0.0
    %2198 = vmatprep.subr.mxu0 0.0
    %2199 = vmatpush1.msra.mxu0 0.0
    %2200 = vmatprep.subr.mxu0 0.0
    %2201 = vmatpush1.msra.mxu0 0.0
    %2202 = vmatprep.subr.mxu0 0.0
    %2203 = vmatpush1.msra.mxu0 0.0
    %2204 = vmatprep.subr.mxu0 0.0
    %2205 = vmatpush1.msra.mxu0 0.0
    %2206 = vmatprep.subr.mxu0 0.0
    %2207 = vmatpush1.msra.mxu0 0.0
    %2208 = vmatprep.subr.mxu0 0.0
    %2209 = vmatpush1.msra.mxu0 0.0
    %2210 = vmatprep.subr.mxu0 0.0
    %2211 = vmatpush1.msra.mxu0 0.0
    %2212 = vmatprep.subr.mxu0 0.0
    %2213 = vmatpush1.msra.mxu0 0.0
    %2214 = vmatprep.subr.mxu0 0.0
    %2215 = vmatpush1.msra.mxu0 0.0
    %2216 = vmatprep.subr.mxu0 0.0
    %2217 = vmatpush1.msra.mxu0 0.0
    %2218 = vmatprep.subr.mxu0 0.0
    %2219 = vmatpush1.msra.mxu0 0.0
    %2220 = vmatprep.subr.mxu0 0.0
    %2221 = vmatpush1.msra.mxu0 0.0
    %2222 = vmatprep.subr.mxu0 0.0
    %2223 = vmatpush1.msra.mxu0 0.0
    %2224 = vmatprep.subr.mxu0 0.0
    %2225 = vmatpush1.msra.mxu0 0.0
    %2226 = vmatprep.subr.mxu0 0.0
    %2227 = vmatpush1.msra.mxu0 0.0
    %2228 = vmatprep.subr.mxu0 0.0
    %2229 = vmatpush1.msra.mxu0 0.0
    %2230 = vmatprep.subr.mxu0 0.0
    %2231 = vmatpush1.msra.mxu0 0.0
    %2232 = vmatprep.subr.mxu0 0.0
    %2233 = vmatpush1.msra.mxu0 0.0
    %2234 = vmatprep.subr.mxu0 0.0
    %2235 = vmatpush1.msra.mxu0 0.0
    %2236 = vmatprep.subr.mxu0 0.0
    %2237 = vmatpush1.msra.mxu0 0.0
    %2238 = vmatprep.subr.mxu0 0.0
    %2239 = vmatpush1.msra.mxu0 0.0
    %2240 = vmatprep.subr.mxu0 0.0
    %2241 = vmatpush1.msra.mxu0 0.0
    %2242 = vmatprep.subr.mxu0 0.0
    %2243 = vmatpush1.msra.mxu0 0.0
    %2244 = vmatprep.subr.mxu0 0.0
    %2245 = vmatpush1.msra.mxu0 0.0
    %2246 = vmatprep.subr.mxu0 0.0
    %2247 = vmatpush1.msra.mxu0 0.0
    %2248 = vmatprep.subr.mxu0 0.0
    %2249 = vmatpush1.msra.mxu0 0.0
    %2250 = vmatprep.mubr.f32.mxu0 0.0
    %2251 = vmatmul.mubr.f32.gmra.mrb[0].mxu0 %v2184
    %v2252 = vpop.f32.mrb[0].mxu0
    %v2253 = vadd.f32 0.0, %v2252
    %v2254 = vpop.f32.mrb[0].mxu0
    %2255 = vdwg.mxu0
    %v2256 = vadd.f32 %v2183, %v2253
    %v2257 = vxor.u32 %v2256, 2147483648
    %v2258 = vmul.f32 %v2257, 1.442695
    %v2259 = vpow.pop %v2258
    %v2260 = vadd.f32 %v2259, 1.0
    %v2261 = vrcp.pop %v2260
    %v2262 = vmul.f32 1.0, %v2261
    %v2263 = vtanh.pop %v2256
    %v2264 = vmul.f32 %v2262, %v2171
    %2266 = vrot.lane.b32.xlu0 %v2263, 64
    %v2267 = vpop.permute.xlu0 %2266
    %v2269 = vmul.f32 %v2262, %v2267
    %2271 = vrot.lane.b32.xlu0 %v2269, 32
    %v2272 = vpop.permute.xlu0 %2271
    %v2274 = vadd.f32 %v2264, %v2272
    %v2275 = vtanh.pop %v2274
    %2277 = vrot.lane.b32.xlu0 %v2275, 64
    %v2278 = vpop.permute.xlu0 %2277
    %v2280 = vmul.f32 %v2262, %v2278
    %2282 = vrot.lane.b32.xlu0 %v2280, 32
    %v2283 = vpop.permute.xlu0 %2282
    %2285 = vst.msk [vmem:[#allocation2 + $0x3] sm:$0x1] %vm155, %v2283
    %v2286 = vld [vmem:[#allocation3 + $0x4] sm:$0x1]
    %v2287 = vsel %vm52, %v2283, 0
    %2289 = vmatprep.subr.mxu0 0.0
    %2290 = vmatpush1.msra.mxu0 %v1788
    %2291 = vmatprep.subr.mxu0 0.0
    %2292 = vmatpush1.msra.mxu0 %v1789
    %2293 = vmatprep.subr.mxu0 0.0
    %2294 = vmatpush1.msra.mxu0 %v1790
    %2295 = vmatprep.subr.mxu0 0.0
    %2296 = vmatpush1.msra.mxu0 %v1791
    %2297 = vmatprep.subr.mxu0 0.0
    %2298 = vmatpush1.msra.mxu0 0.0
    %2299 = vmatprep.subr.mxu0 0.0
    %2300 = vmatpush1.msra.mxu0 0.0
    %2301 = vmatprep.subr.mxu0 0.0
    %2302 = vmatpush1.msra.mxu0 0.0
    %2303 = vmatprep.subr.mxu0 0.0
    %2304 = vmatpush1.msra.mxu0 0.0
    %2305 = vmatprep.subr.mxu0 0.0
    %2306 = vmatpush1.msra.mxu0 0.0
    %2307 = vmatprep.subr.mxu0 0.0
    %2308 = vmatpush1.msra.mxu0 0.0
    %2309 = vmatprep.subr.mxu0 0.0
    %2310 = vmatpush1.msra.mxu0 0.0
    %2311 = vmatprep.subr.mxu0 0.0
    %2312 = vmatpush1.msra.mxu0 0.0
    %2313 = vmatprep.subr.mxu0 0.0
    %2314 = vmatpush1.msra.mxu0 0.0
    %2315 = vmatprep.subr.mxu0 0.0
    %2316 = vmatpush1.msra.mxu0 0.0
    %2317 = vmatprep.subr.mxu0 0.0
    %2318 = vmatpush1.msra.mxu0 0.0
    %2319 = vmatprep.subr.mxu0 0.0
    %2320 = vmatpush1.msra.mxu0 0.0
    %2321 = vmatprep.subr.mxu0 0.0
    %2322 = vmatpush1.msra.mxu0 0.0
    %2323 = vmatprep.subr.mxu0 0.0
    %2324 = vmatpush1.msra.mxu0 0.0
    %2325 = vmatprep.subr.mxu0 0.0
    %2326 = vmatpush1.msra.mxu0 0.0
    %2327 = vmatprep.subr.mxu0 0.0
    %2328 = vmatpush1.msra.mxu0 0.0
    %2329 = vmatprep.subr.mxu0 0.0
    %2330 = vmatpush1.msra.mxu0 0.0
    %2331 = vmatprep.subr.mxu0 0.0
    %2332 = vmatpush1.msra.mxu0 0.0
    %2333 = vmatprep.subr.mxu0 0.0
    %2334 = vmatpush1.msra.mxu0 0.0
    %2335 = vmatprep.subr.mxu0 0.0
    %2336 = vmatpush1.msra.mxu0 0.0
    %2337 = vmatprep.subr.mxu0 0.0
    %2338 = vmatpush1.msra.mxu0 0.0
    %2339 = vmatprep.subr.mxu0 0.0
    %2340 = vmatpush1.msra.mxu0 0.0
    %2341 = vmatprep.subr.mxu0 0.0
    %2342 = vmatpush1.msra.mxu0 0.0
    %2343 = vmatprep.subr.mxu0 0.0
    %2344 = vmatpush1.msra.mxu0 0.0
    %2345 = vmatprep.subr.mxu0 0.0
    %2346 = vmatpush1.msra.mxu0 0.0
    %2347 = vmatprep.subr.mxu0 0.0
    %2348 = vmatpush1.msra.mxu0 0.0
    %2349 = vmatprep.subr.mxu0 0.0
    %2350 = vmatpush1.msra.mxu0 0.0
    %2351 = vmatprep.subr.mxu0 0.0
    %2352 = vmatpush1.msra.mxu0 0.0
    %2353 = vmatprep.mubr.f32.mxu0 0.0
    %2354 = vmatmul.mubr.f32.gmra.mrb[0].mxu0 %v2287
    %v2355 = vpop.f32.mrb[0].mxu0
    %v2356 = vadd.f32 0.0, %v2355
    %v2357 = vpop.f32.mrb[0].mxu0
    %2358 = vdwg.mxu0
    %v2359 = vadd.f32 %v2286, %v2356
    %v2360 = vxor.u32 %v2359, 2147483648
    %v2361 = vmul.f32 %v2360, 1.442695
    %v2362 = vpow.pop %v2361
    %v2363 = vadd.f32 %v2362, 1.0
    %v2364 = vrcp.pop %v2363
    %v2365 = vmul.f32 1.0, %v2364
    %v2366 = vtanh.pop %v2359
    %v2367 = vmul.f32 %v2365, %v2274
    %2369 = vrot.lane.b32.xlu0 %v2366, 64
    %v2370 = vpop.permute.xlu0 %2369
    %v2372 = vmul.f32 %v2365, %v2370
    %2374 = vrot.lane.b32.xlu0 %v2372, 32
    %v2375 = vpop.permute.xlu0 %2374
    %v2377 = vadd.f32 %v2367, %v2375
    %v2378 = vtanh.pop %v2377
    %2380 = vrot.lane.b32.xlu0 %v2378, 64
    %v2381 = vpop.permute.xlu0 %2380
    %v2383 = vmul.f32 %v2365, %v2381
    %2385 = vrot.lane.b32.xlu0 %v2383, 32
    %v2386 = vpop.permute.xlu0 %2385
    %2388 = vst.msk [vmem:[#allocation2 + $0x4] sm:$0x1] %vm155, %v2386
    %v2389 = vld [vmem:[#allocation3 + $0x5] sm:$0x1]
    %v2390 = vsel %vm52, %v2386, 0
    %2392 = vmatprep.subr.mxu0 0.0
    %2393 = vmatpush1.msra.mxu0 %v1788
    %2394 = vmatprep.subr.mxu0 0.0
    %2395 = vmatpush1.msra.mxu0 %v1789
    %2396 = vmatprep.subr.mxu0 0.0
    %2397 = vmatpush1.msra.mxu0 %v1790
    %2398 = vmatprep.subr.mxu0 0.0
    %2399 = vmatpush1.msra.mxu0 %v1791
    %2400 = vmatprep.subr.mxu0 0.0
    %2401 = vmatpush1.msra.mxu0 0.0
    %2402 = vmatprep.subr.mxu0 0.0
    %2403 = vmatpush1.msra.mxu0 0.0
    %2404 = vmatprep.subr.mxu0 0.0
    %2405 = vmatpush1.msra.mxu0 0.0
    %2406 = vmatprep.subr.mxu0 0.0
    %2407 = vmatpush1.msra.mxu0 0.0
    %2408 = vmatprep.subr.mxu0 0.0
    %2409 = vmatpush1.msra.mxu0 0.0
    %2410 = vmatprep.subr.mxu0 0.0
    %2411 = vmatpush1.msra.mxu0 0.0
    %2412 = vmatprep.subr.mxu0 0.0
    %2413 = vmatpush1.msra.mxu0 0.0
    %2414 = vmatprep.subr.mxu0 0.0
    %2415 = vmatpush1.msra.mxu0 0.0
    %2416 = vmatprep.subr.mxu0 0.0
    %2417 = vmatpush1.msra.mxu0 0.0
    %2418 = vmatprep.subr.mxu0 0.0
    %2419 = vmatpush1.msra.mxu0 0.0
    %2420 = vmatprep.subr.mxu0 0.0
    %2421 = vmatpush1.msra.mxu0 0.0
    %2422 = vmatprep.subr.mxu0 0.0
    %2423 = vmatpush1.msra.mxu0 0.0
    %2424 = vmatprep.subr.mxu0 0.0
    %2425 = vmatpush1.msra.mxu0 0.0
    %2426 = vmatprep.subr.mxu0 0.0
    %2427 = vmatpush1.msra.mxu0 0.0
    %2428 = vmatprep.subr.mxu0 0.0
    %2429 = vmatpush1.msra.mxu0 0.0
    %2430 = vmatprep.subr.mxu0 0.0
    %2431 = vmatpush1.msra.mxu0 0.0
    %2432 = vmatprep.subr.mxu0 0.0
    %2433 = vmatpush1.msra.mxu0 0.0
    %2434 = vmatprep.subr.mxu0 0.0
    %2435 = vmatpush1.msra.mxu0 0.0
    %2436 = vmatprep.subr.mxu0 0.0
    %2437 = vmatpush1.msra.mxu0 0.0
    %2438 = vmatprep.subr.mxu0 0.0
    %2439 = vmatpush1.msra.mxu0 0.0
    %2440 = vmatprep.subr.mxu0 0.0
    %2441 = vmatpush1.msra.mxu0 0.0
    %2442 = vmatprep.subr.mxu0 0.0
    %2443 = vmatpush1.msra.mxu0 0.0
    %2444 = vmatprep.subr.mxu0 0.0
    %2445 = vmatpush1.msra.mxu0 0.0
    %2446 = vmatprep.subr.mxu0 0.0
    %2447 = vmatpush1.msra.mxu0 0.0
    %2448 = vmatprep.subr.mxu0 0.0
    %2449 = vmatpush1.msra.mxu0 0.0
    %2450 = vmatprep.subr.mxu0 0.0
    %2451 = vmatpush1.msra.mxu0 0.0
    %2452 = vmatprep.subr.mxu0 0.0
    %2453 = vmatpush1.msra.mxu0 0.0
    %2454 = vmatprep.subr.mxu0 0.0
    %2455 = vmatpush1.msra.mxu0 0.0
    %2456 = vmatprep.mubr.f32.mxu0 0.0
    %2457 = vmatmul.mubr.f32.gmra.mrb[0].mxu0 %v2390
    %v2458 = vpop.f32.mrb[0].mxu0
    %v2459 = vadd.f32 0.0, %v2458
    %v2460 = vpop.f32.mrb[0].mxu0
    %2461 = vdwg.mxu0
    %v2462 = vadd.f32 %v2389, %v2459
    %v2463 = vxor.u32 %v2462, 2147483648
    %v2464 = vmul.f32 %v2463, 1.442695
    %v2465 = vpow.pop %v2464
    %v2466 = vadd.f32 %v2465, 1.0
    %v2467 = vrcp.pop %v2466
    %v2468 = vmul.f32 1.0, %v2467
    %v2469 = vtanh.pop %v2462
    %v2470 = vmul.f32 %v2468, %v2377
    %2472 = vrot.lane.b32.xlu0 %v2469, 64
    %v2473 = vpop.permute.xlu0 %2472
    %v2475 = vmul.f32 %v2468, %v2473
    %2477 = vrot.lane.b32.xlu0 %v2475, 32
    %v2478 = vpop.permute.xlu0 %2477
    %v2480 = vadd.f32 %v2470, %v2478
    %v2481 = vtanh.pop %v2480
    %2483 = vrot.lane.b32.xlu0 %v2481, 64
    %v2484 = vpop.permute.xlu0 %2483
    %v2486 = vmul.f32 %v2468, %v2484
    %2488 = vrot.lane.b32.xlu0 %v2486, 32
    %v2489 = vpop.permute.xlu0 %2488
    %2491 = vst.msk [vmem:[#allocation2 + $0x5] sm:$0x1] %vm155, %v2489
    %v2492 = vld [vmem:[#allocation3 + $0x6] sm:$0x1]
    %v2493 = vsel %vm52, %v2489, 0
    %2495 = vmatprep.subr.mxu0 0.0
    %2496 = vmatpush1.msra.mxu0 %v1788
    %2497 = vmatprep.subr.mxu0 0.0
    %2498 = vmatpush1.msra.mxu0 %v1789
    %2499 = vmatprep.subr.mxu0 0.0
    %2500 = vmatpush1.msra.mxu0 %v1790
    %2501 = vmatprep.subr.mxu0 0.0
    %2502 = vmatpush1.msra.mxu0 %v1791
    %2503 = vmatprep.subr.mxu0 0.0
    %2504 = vmatpush1.msra.mxu0 0.0
    %2505 = vmatprep.subr.mxu0 0.0
    %2506 = vmatpush1.msra.mxu0 0.0
    %2507 = vmatprep.subr.mxu0 0.0
    %2508 = vmatpush1.msra.mxu0 0.0
    %2509 = vmatprep.subr.mxu0 0.0
    %2510 = vmatpush1.msra.mxu0 0.0
    %2511 = vmatprep.subr.mxu0 0.0
    %2512 = vmatpush1.msra.mxu0 0.0
    %2513 = vmatprep.subr.mxu0 0.0
    %2514 = vmatpush1.msra.mxu0 0.0
    %2515 = vmatprep.subr.mxu0 0.0
    %2516 = vmatpush1.msra.mxu0 0.0
    %2517 = vmatprep.subr.mxu0 0.0
    %2518 = vmatpush1.msra.mxu0 0.0
    %2519 = vmatprep.subr.mxu0 0.0
    %2520 = vmatpush1.msra.mxu0 0.0
    %2521 = vmatprep.subr.mxu0 0.0
    %2522 = vmatpush1.msra.mxu0 0.0
    %2523 = vmatprep.subr.mxu0 0.0
    %2524 = vmatpush1.msra.mxu0 0.0
    %2525 = vmatprep.subr.mxu0 0.0
    %2526 = vmatpush1.msra.mxu0 0.0
    %2527 = vmatprep.subr.mxu0 0.0
    %2528 = vmatpush1.msra.mxu0 0.0
    %2529 = vmatprep.subr.mxu0 0.0
    %2530 = vmatpush1.msra.mxu0 0.0
    %2531 = vmatprep.subr.mxu0 0.0
    %2532 = vmatpush1.msra.mxu0 0.0
    %2533 = vmatprep.subr.mxu0 0.0
    %2534 = vmatpush1.msra.mxu0 0.0
    %2535 = vmatprep.subr.mxu0 0.0
    %2536 = vmatpush1.msra.mxu0 0.0
    %2537 = vmatprep.subr.mxu0 0.0
    %2538 = vmatpush1.msra.mxu0 0.0
    %2539 = vmatprep.subr.mxu0 0.0
    %2540 = vmatpush1.msra.mxu0 0.0
    %2541 = vmatprep.subr.mxu0 0.0
    %2542 = vmatpush1.msra.mxu0 0.0
    %2543 = vmatprep.subr.mxu0 0.0
    %2544 = vmatpush1.msra.mxu0 0.0
    %2545 = vmatprep.subr.mxu0 0.0
    %2546 = vmatpush1.msra.mxu0 0.0
    %2547 = vmatprep.subr.mxu0 0.0
    %2548 = vmatpush1.msra.mxu0 0.0
    %2549 = vmatprep.subr.mxu0 0.0
    %2550 = vmatpush1.msra.mxu0 0.0
    %2551 = vmatprep.subr.mxu0 0.0
    %2552 = vmatpush1.msra.mxu0 0.0
    %2553 = vmatprep.subr.mxu0 0.0
    %2554 = vmatpush1.msra.mxu0 0.0
    %2555 = vmatprep.subr.mxu0 0.0
    %2556 = vmatpush1.msra.mxu0 0.0
    %2557 = vmatprep.subr.mxu0 0.0
    %2558 = vmatpush1.msra.mxu0 0.0
    %2559 = vmatprep.mubr.f32.mxu0 0.0
    %2560 = vmatmul.mubr.f32.gmra.mrb[0].mxu0 %v2493
    %v2561 = vpop.f32.mrb[0].mxu0
    %v2562 = vadd.f32 0.0, %v2561
    %v2563 = vpop.f32.mrb[0].mxu0
    %2564 = vdwg.mxu0
    %v2565 = vadd.f32 %v2492, %v2562
    %v2566 = vxor.u32 %v2565, 2147483648
    %v2567 = vmul.f32 %v2566, 1.442695
    %v2568 = vpow.pop %v2567
    %v2569 = vadd.f32 %v2568, 1.0
    %v2570 = vrcp.pop %v2569
    %v2571 = vmul.f32 1.0, %v2570
    %v2572 = vtanh.pop %v2565
    %v2573 = vmul.f32 %v2571, %v2480
    %2575 = vrot.lane.b32.xlu0 %v2572, 64
    %v2576 = vpop.permute.xlu0 %2575
    %v2578 = vmul.f32 %v2571, %v2576
    %2580 = vrot.lane.b32.xlu0 %v2578, 32
    %v2581 = vpop.permute.xlu0 %2580
    %v2583 = vadd.f32 %v2573, %v2581
    %v2584 = vtanh.pop %v2583
    %2586 = vrot.lane.b32.xlu0 %v2584, 64
    %v2587 = vpop.permute.xlu0 %2586
    %v2589 = vmul.f32 %v2571, %v2587
    %2591 = vrot.lane.b32.xlu0 %v2589, 32
    %v2592 = vpop.permute.xlu0 %2591
    %2594 = vst.msk [vmem:[#allocation2 + $0x6] sm:$0x1] %vm155, %v2592
    %v2595 = vld [vmem:[#allocation3 + $0x7] sm:$0x1]
    %v2596 = vsel %vm52, %v2592, 0
    %2598 = vmatprep.subr.mxu0 0.0
    %2599 = vmatpush1.msra.mxu0 %v1788
    %2600 = vmatprep.subr.mxu0 0.0
    %2601 = vmatpush1.msra.mxu0 %v1789
    %2602 = vmatprep.subr.mxu0 0.0
    %2603 = vmatpush1.msra.mxu0 %v1790
    %2604 = vmatprep.subr.mxu0 0.0
    %2605 = vmatpush1.msra.mxu0 %v1791
    %2606 = vmatprep.subr.mxu0 0.0
    %2607 = vmatpush1.msra.mxu0 0.0
    %2608 = vmatprep.subr.mxu0 0.0
    %2609 = vmatpush1.msra.mxu0 0.0
    %2610 = vmatprep.subr.mxu0 0.0
    %2611 = vmatpush1.msra.mxu0 0.0
    %2612 = vmatprep.subr.mxu0 0.0
    %2613 = vmatpush1.msra.mxu0 0.0
    %2614 = vmatprep.subr.mxu0 0.0
    %2615 = vmatpush1.msra.mxu0 0.0
    %2616 = vmatprep.subr.mxu0 0.0
    %2617 = vmatpush1.msra.mxu0 0.0
    %2618 = vmatprep.subr.mxu0 0.0
    %2619 = vmatpush1.msra.mxu0 0.0
    %2620 = vmatprep.subr.mxu0 0.0
    %2621 = vmatpush1.msra.mxu0 0.0
    %2622 = vmatprep.subr.mxu0 0.0
    %2623 = vmatpush1.msra.mxu0 0.0
    %2624 = vmatprep.subr.mxu0 0.0
    %2625 = vmatpush1.msra.mxu0 0.0
    %2626 = vmatprep.subr.mxu0 0.0
    %2627 = vmatpush1.msra.mxu0 0.0
    %2628 = vmatprep.subr.mxu0 0.0
    %2629 = vmatpush1.msra.mxu0 0.0
    %2630 = vmatprep.subr.mxu0 0.0
    %2631 = vmatpush1.msra.mxu0 0.0
    %2632 = vmatprep.subr.mxu0 0.0
    %2633 = vmatpush1.msra.mxu0 0.0
    %2634 = vmatprep.subr.mxu0 0.0
    %2635 = vmatpush1.msra.mxu0 0.0
    %2636 = vmatprep.subr.mxu0 0.0
    %2637 = vmatpush1.msra.mxu0 0.0
    %2638 = vmatprep.subr.mxu0 0.0
    %2639 = vmatpush1.msra.mxu0 0.0
    %2640 = vmatprep.subr.mxu0 0.0
    %2641 = vmatpush1.msra.mxu0 0.0
    %2642 = vmatprep.subr.mxu0 0.0
    %2643 = vmatpush1.msra.mxu0 0.0
    %2644 = vmatprep.subr.mxu0 0.0
    %2645 = vmatpush1.msra.mxu0 0.0
    %2646 = vmatprep.subr.mxu0 0.0
    %2647 = vmatpush1.msra.mxu0 0.0
    %2648 = vmatprep.subr.mxu0 0.0
    %2649 = vmatpush1.msra.mxu0 0.0
    %2650 = vmatprep.subr.mxu0 0.0
    %2651 = vmatpush1.msra.mxu0 0.0
    %2652 = vmatprep.subr.mxu0 0.0
    %2653 = vmatpush1.msra.mxu0 0.0
    %2654 = vmatprep.subr.mxu0 0.0
    %2655 = vmatpush1.msra.mxu0 0.0
    %2656 = vmatprep.subr.mxu0 0.0
    %2657 = vmatpush1.msra.mxu0 0.0
    %2658 = vmatprep.subr.mxu0 0.0
    %2659 = vmatpush1.msra.mxu0 0.0
    %2660 = vmatprep.subr.mxu0 0.0
    %2661 = vmatpush1.msra.mxu0 0.0
    %2662 = vmatprep.mubr.f32.mxu0 0.0
    %2663 = vmatmul.mubr.f32.gmra.mrb[0].mxu0 %v2596
    %v2664 = vpop.f32.mrb[0].mxu0
    %v2665 = vadd.f32 0.0, %v2664
    %v2666 = vpop.f32.mrb[0].mxu0
    %2667 = vdwg.mxu0
    %v2668 = vadd.f32 %v2595, %v2665
    %v2669 = vxor.u32 %v2668, 2147483648
    %v2670 = vmul.f32 %v2669, 1.442695
    %v2671 = vpow.pop %v2670
    %v2672 = vadd.f32 %v2671, 1.0
    %v2673 = vrcp.pop %v2672
    %v2674 = vmul.f32 1.0, %v2673
    %v2675 = vtanh.pop %v2668
    %v2676 = vmul.f32 %v2674, %v2583
    %2678 = vrot.lane.b32.xlu0 %v2675, 64
    %v2679 = vpop.permute.xlu0 %2678
    %v2681 = vmul.f32 %v2674, %v2679
    %2683 = vrot.lane.b32.xlu0 %v2681, 32
    %v2684 = vpop.permute.xlu0 %2683
    %v2686 = vadd.f32 %v2676, %v2684
    %v2687 = vtanh.pop %v2686
    %2689 = vrot.lane.b32.xlu0 %v2687, 64
    %v2690 = vpop.permute.xlu0 %2689
    %v2692 = vmul.f32 %v2674, %v2690
    %2694 = vrot.lane.b32.xlu0 %v2692, 32
    %v2695 = vpop.permute.xlu0 %2694
    %2697 = vst.msk [vmem:[#allocation2 + $0x7] sm:$0x1] %vm155, %v2695
    %v2698 = vld [vmem:[#allocation4 + $0xf8] sm:$0xff]
    %v2699 = vld [vmem:[#allocation4 + $0x100] sm:$0xff]
    %v2700 = vld [vmem:[#allocation4 + $0x108] sm:$0xff]
    %v2701 = vld [vmem:[#allocation4 + $0x110] sm:$0xff]
    %v2702 = vld [vmem:[#allocation4 + $0x118] sm:$0x1]
    %v2703 = vld [vmem:[#allocation2] sm:$0xff]
    %v2704 = vld [vmem:[#allocation4 + $0xd8] sm:$0xff]
    %v2705 = vld [vmem:[#allocation4 + $0xe0] sm:$0xff]
    %v2706 = vld [vmem:[#allocation4 + $0xe8] sm:$0xff]
    %v2707 = vld [vmem:[#allocation4 + $0xf0] sm:$0xff]
    %v2708 = vlaneseq
    %v2709 = vshrl.u32 %v2708, 7
    %v2710 = vsub.s32 0, %v2709
    %v2711 = vrot.slane %v2702, %v2710
    %v2713 = vsel %vm52, %v2703, 0
    %2715 = vmatprep.subr.mxu0 0.0
    %2716 = vmatpush1.msra.mxu0 %v2704
    %2717 = vmatprep.subr.mxu0 0.0
    %2718 = vmatpush1.msra.mxu0 %v2705
    %2719 = vmatprep.subr.mxu0 0.0
    %2720 = vmatpush1.msra.mxu0 %v2706
    %2721 = vmatprep.subr.mxu0 0.0
    %2722 = vmatpush1.msra.mxu0 %v2707
    %2723 = vmatprep.subr.mxu0 0.0
    %2724 = vmatpush1.msra.mxu0 0.0
    %2725 = vmatprep.subr.mxu0 0.0
    %2726 = vmatpush1.msra.mxu0 0.0
    %2727 = vmatprep.subr.mxu0 0.0
    %2728 = vmatpush1.msra.mxu0 0.0
    %2729 = vmatprep.subr.mxu0 0.0
    %2730 = vmatpush1.msra.mxu0 0.0
    %2731 = vmatprep.subr.mxu0 0.0
    %2732 = vmatpush1.msra.mxu0 0.0
    %2733 = vmatprep.subr.mxu0 0.0
    %2734 = vmatpush1.msra.mxu0 0.0
    %2735 = vmatprep.subr.mxu0 0.0
    %2736 = vmatpush1.msra.mxu0 0.0
    %2737 = vmatprep.subr.mxu0 0.0
    %2738 = vmatpush1.msra.mxu0 0.0
    %2739 = vmatprep.subr.mxu0 0.0
    %2740 = vmatpush1.msra.mxu0 0.0
    %2741 = vmatprep.subr.mxu0 0.0
    %2742 = vmatpush1.msra.mxu0 0.0
    %2743 = vmatprep.subr.mxu0 0.0
    %2744 = vmatpush1.msra.mxu0 0.0
    %2745 = vmatprep.subr.mxu0 0.0
    %2746 = vmatpush1.msra.mxu0 0.0
    %2747 = vmatprep.subr.mxu0 0.0
    %2748 = vmatpush1.msra.mxu0 0.0
    %2749 = vmatprep.subr.mxu0 0.0
    %2750 = vmatpush1.msra.mxu0 0.0
    %2751 = vmatprep.subr.mxu0 0.0
    %2752 = vmatpush1.msra.mxu0 0.0
    %2753 = vmatprep.subr.mxu0 0.0
    %2754 = vmatpush1.msra.mxu0 0.0
    %2755 = vmatprep.subr.mxu0 0.0
    %2756 = vmatpush1.msra.mxu0 0.0
    %2757 = vmatprep.subr.mxu0 0.0
    %2758 = vmatpush1.msra.mxu0 0.0
    %2759 = vmatprep.subr.mxu0 0.0
    %2760 = vmatpush1.msra.mxu0 0.0
    %2761 = vmatprep.subr.mxu0 0.0
    %2762 = vmatpush1.msra.mxu0 0.0
    %2763 = vmatprep.subr.mxu0 0.0
    %2764 = vmatpush1.msra.mxu0 0.0
    %2765 = vmatprep.subr.mxu0 0.0
    %2766 = vmatpush1.msra.mxu0 0.0
    %2767 = vmatprep.subr.mxu0 0.0
    %2768 = vmatpush1.msra.mxu0 0.0
    %2769 = vmatprep.subr.mxu0 0.0
    %2770 = vmatpush1.msra.mxu0 0.0
    %2771 = vmatprep.subr.mxu0 0.0
    %2772 = vmatpush1.msra.mxu0 0.0
    %2773 = vmatprep.subr.mxu0 0.0
    %2774 = vmatpush1.msra.mxu0 0.0
    %2775 = vmatprep.subr.mxu0 0.0
    %2776 = vmatpush1.msra.mxu0 0.0
    %2777 = vmatprep.subr.mxu0 0.0
    %2778 = vmatpush1.msra.mxu0 0.0
    %2779 = vmatprep.mubr.f32.mxu0 0.0
    %2780 = vmatmul.mubr.f32.gmra.mrb[0].mxu0 %v2713
    %v2781 = vpop.f32.mrb[0].mxu0
    %v2782 = vadd.f32 %v2711, %v2781
    %v2783 = vpop.f32.mrb[0].mxu0
    %2784 = vdwg.mxu0
    %2785 = vst [vmem:[#allocation3] sm:$0xff] %v2782
    %v2786 = vld [vmem:[#allocation3] sm:$0x1]
    %2787 = vmatprep.subr.mxu0 0.0
    %2788 = vmatpush1.msra.mxu0 %v2698
    %2789 = vmatprep.subr.mxu0 0.0
    %2790 = vmatpush1.msra.mxu0 %v2699
    %2791 = vmatprep.subr.mxu0 0.0
    %2792 = vmatpush1.msra.mxu0 %v2700
    %2793 = vmatprep.subr.mxu0 0.0
    %2794 = vmatpush1.msra.mxu0 %v2701
    %2795 = vmatprep.subr.mxu0 0.0
    %2796 = vmatpush1.msra.mxu0 0.0
    %2797 = vmatprep.subr.mxu0 0.0
    %2798 = vmatpush1.msra.mxu0 0.0
    %2799 = vmatprep.subr.mxu0 0.0
    %2800 = vmatpush1.msra.mxu0 0.0
    %2801 = vmatprep.subr.mxu0 0.0
    %2802 = vmatpush1.msra.mxu0 0.0
    %2803 = vmatprep.subr.mxu0 0.0
    %2804 = vmatpush1.msra.mxu0 0.0
    %2805 = vmatprep.subr.mxu0 0.0
    %2806 = vmatpush1.msra.mxu0 0.0
    %2807 = vmatprep.subr.mxu0 0.0
    %2808 = vmatpush1.msra.mxu0 0.0
    %2809 = vmatprep.subr.mxu0 0.0
    %2810 = vmatpush1.msra.mxu0 0.0
    %2811 = vmatprep.subr.mxu0 0.0
    %2812 = vmatpush1.msra.mxu0 0.0
    %2813 = vmatprep.subr.mxu0 0.0
    %2814 = vmatpush1.msra.mxu0 0.0
    %2815 = vmatprep.subr.mxu0 0.0
    %2816 = vmatpush1.msra.mxu0 0.0
    %2817 = vmatprep.subr.mxu0 0.0
    %2818 = vmatpush1.msra.mxu0 0.0
    %2819 = vmatprep.subr.mxu0 0.0
    %2820 = vmatpush1.msra.mxu0 0.0
    %2821 = vmatprep.subr.mxu0 0.0
    %2822 = vmatpush1.msra.mxu0 0.0
    %2823 = vmatprep.subr.mxu0 0.0
    %2824 = vmatpush1.msra.mxu0 0.0
    %2825 = vmatprep.subr.mxu0 0.0
    %2826 = vmatpush1.msra.mxu0 0.0
    %2827 = vmatprep.subr.mxu0 0.0
    %2828 = vmatpush1.msra.mxu0 0.0
    %2829 = vmatprep.subr.mxu0 0.0
    %2830 = vmatpush1.msra.mxu0 0.0
    %2831 = vmatprep.subr.mxu0 0.0
    %2832 = vmatpush1.msra.mxu0 0.0
    %2833 = vmatprep.subr.mxu0 0.0
    %2834 = vmatpush1.msra.mxu0 0.0
    %2835 = vmatprep.subr.mxu0 0.0
    %2836 = vmatpush1.msra.mxu0 0.0
    %2837 = vmatprep.subr.mxu0 0.0
    %2838 = vmatpush1.msra.mxu0 0.0
    %2839 = vmatprep.subr.mxu0 0.0
    %2840 = vmatpush1.msra.mxu0 0.0
    %2841 = vmatprep.subr.mxu0 0.0
    %2842 = vmatpush1.msra.mxu0 0.0
    %2843 = vmatprep.subr.mxu0 0.0
    %2844 = vmatpush1.msra.mxu0 0.0
    %2845 = vmatprep.subr.mxu0 0.0
    %2846 = vmatpush1.msra.mxu0 0.0
    %2847 = vmatprep.subr.mxu0 0.0
    %2848 = vmatpush1.msra.mxu0 0.0
    %2849 = vmatprep.subr.mxu0 0.0
    %2850 = vmatpush1.msra.mxu0 0.0
    %2851 = vmatprep.mubr.f32.mxu0 0.0
    %2852 = vmatmul.mubr.f32.gmra.mrb[0].mxu0 %v54
    %v2853 = vpop.f32.mrb[0].mxu0
    %v2854 = vadd.f32 0.0, %v2853
    %v2855 = vpop.f32.mrb[0].mxu0
    %2856 = vdwg.mxu0
    %v2857 = vadd.f32 %v2786, %v2854
    %v2858 = vxor.u32 %v2857, 2147483648
    %v2859 = vmul.f32 %v2858, 1.442695
    %v2860 = vpow.pop %v2859
    %v2861 = vadd.f32 %v2860, 1.0
    %v2862 = vrcp.pop %v2861
    %v2863 = vmul.f32 1.0, %v2862
    %v2864 = vtanh.pop %v2857
    %v2865 = vmul.f32 %v2863, 0.0
    %2867 = vrot.lane.b32.xlu0 %v2864, 64
    %v2868 = vpop.permute.xlu0 %2867
    %v2870 = vmul.f32 %v2863, %v2868
    %2872 = vrot.lane.b32.xlu0 %v2870, 32
    %v2873 = vpop.permute.xlu0 %2872
    %v2875 = vadd.f32 %v2865, %v2873
    %v2876 = vtanh.pop %v2875
    %2878 = vrot.lane.b32.xlu0 %v2876, 64
    %v2879 = vpop.permute.xlu0 %2878
    %v2881 = vmul.f32 %v2863, %v2879
    %2883 = vrot.lane.b32.xlu0 %v2881, 32
    %v2884 = vpop.permute.xlu0 %2883
    %2886 = vst.msk [vmem:[#allocation2] sm:$0x1] %vm155, %v2884
    %v2887 = vld [vmem:[#allocation3 + $0x1] sm:$0x1]
    %v2888 = vsel %vm52, %v2884, 0
    %2890 = vmatprep.subr.mxu0 0.0
    %2891 = vmatpush1.msra.mxu0 %v2698
    %2892 = vmatprep.subr.mxu0 0.0
    %2893 = vmatpush1.msra.mxu0 %v2699
    %2894 = vmatprep.subr.mxu0 0.0
    %2895 = vmatpush1.msra.mxu0 %v2700
    %2896 = vmatprep.subr.mxu0 0.0
    %2897 = vmatpush1.msra.mxu0 %v2701
    %2898 = vmatprep.subr.mxu0 0.0
    %2899 = vmatpush1.msra.mxu0 0.0
    %2900 = vmatprep.subr.mxu0 0.0
    %2901 = vmatpush1.msra.mxu0 0.0
    %2902 = vmatprep.subr.mxu0 0.0
    %2903 = vmatpush1.msra.mxu0 0.0
    %2904 = vmatprep.subr.mxu0 0.0
    %2905 = vmatpush1.msra.mxu0 0.0
    %2906 = vmatprep.subr.mxu0 0.0
    %2907 = vmatpush1.msra.mxu0 0.0
    %2908 = vmatprep.subr.mxu0 0.0
    %2909 = vmatpush1.msra.mxu0 0.0
    %2910 = vmatprep.subr.mxu0 0.0
    %2911 = vmatpush1.msra.mxu0 0.0
    %2912 = vmatprep.subr.mxu0 0.0
    %2913 = vmatpush1.msra.mxu0 0.0
    %2914 = vmatprep.subr.mxu0 0.0
    %2915 = vmatpush1.msra.mxu0 0.0
    %2916 = vmatprep.subr.mxu0 0.0
    %2917 = vmatpush1.msra.mxu0 0.0
    %2918 = vmatprep.subr.mxu0 0.0
    %2919 = vmatpush1.msra.mxu0 0.0
    %2920 = vmatprep.subr.mxu0 0.0
    %2921 = vmatpush1.msra.mxu0 0.0
    %2922 = vmatprep.subr.mxu0 0.0
    %2923 = vmatpush1.msra.mxu0 0.0
    %2924 = vmatprep.subr.mxu0 0.0
    %2925 = vmatpush1.msra.mxu0 0.0
    %2926 = vmatprep.subr.mxu0 0.0
    %2927 = vmatpush1.msra.mxu0 0.0
    %2928 = vmatprep.subr.mxu0 0.0
    %2929 = vmatpush1.msra.mxu0 0.0
    %2930 = vmatprep.subr.mxu0 0.0
    %2931 = vmatpush1.msra.mxu0 0.0
    %2932 = vmatprep.subr.mxu0 0.0
    %2933 = vmatpush1.msra.mxu0 0.0
    %2934 = vmatprep.subr.mxu0 0.0
    %2935 = vmatpush1.msra.mxu0 0.0
    %2936 = vmatprep.subr.mxu0 0.0
    %2937 = vmatpush1.msra.mxu0 0.0
    %2938 = vmatprep.subr.mxu0 0.0
    %2939 = vmatpush1.msra.mxu0 0.0
    %2940 = vmatprep.subr.mxu0 0.0
    %2941 = vmatpush1.msra.mxu0 0.0
    %2942 = vmatprep.subr.mxu0 0.0
    %2943 = vmatpush1.msra.mxu0 0.0
    %2944 = vmatprep.subr.mxu0 0.0
    %2945 = vmatpush1.msra.mxu0 0.0
    %2946 = vmatprep.subr.mxu0 0.0
    %2947 = vmatpush1.msra.mxu0 0.0
    %2948 = vmatprep.subr.mxu0 0.0
    %2949 = vmatpush1.msra.mxu0 0.0
    %2950 = vmatprep.subr.mxu0 0.0
    %2951 = vmatpush1.msra.mxu0 0.0
    %2952 = vmatprep.subr.mxu0 0.0
    %2953 = vmatpush1.msra.mxu0 0.0
    %2954 = vmatprep.mubr.f32.mxu0 0.0
    %2955 = vmatmul.mubr.f32.gmra.mrb[0].mxu0 %v2888
    %v2956 = vpop.f32.mrb[0].mxu0
    %v2957 = vadd.f32 0.0, %v2956
    %v2958 = vpop.f32.mrb[0].mxu0
    %2959 = vdwg.mxu0
    %v2960 = vadd.f32 %v2887, %v2957
    %v2961 = vxor.u32 %v2960, 2147483648
    %v2962 = vmul.f32 %v2961, 1.442695
    %v2963 = vpow.pop %v2962
    %v2964 = vadd.f32 %v2963, 1.0
    %v2965 = vrcp.pop %v2964
    %v2966 = vmul.f32 1.0, %v2965
    %v2967 = vtanh.pop %v2960
    %v2968 = vmul.f32 %v2966, %v2875
    %2970 = vrot.lane.b32.xlu0 %v2967, 64
    %v2971 = vpop.permute.xlu0 %2970
    %v2973 = vmul.f32 %v2966, %v2971
    %2975 = vrot.lane.b32.xlu0 %v2973, 32
    %v2976 = vpop.permute.xlu0 %2975
    %v2978 = vadd.f32 %v2968, %v2976
    %v2979 = vtanh.pop %v2978
    %2981 = vrot.lane.b32.xlu0 %v2979, 64
    %v2982 = vpop.permute.xlu0 %2981
    %v2984 = vmul.f32 %v2966, %v2982
    %2986 = vrot.lane.b32.xlu0 %v2984, 32
    %v2987 = vpop.permute.xlu0 %2986
    %2989 = vst.msk [vmem:[#allocation2 + $0x1] sm:$0x1] %vm155, %v2987
    %v2990 = vld [vmem:[#allocation3 + $0x2] sm:$0x1]
    %v2991 = vsel %vm52, %v2987, 0
    %2993 = vmatprep.subr.mxu0 0.0
    %2994 = vmatpush1.msra.mxu0 %v2698
    %2995 = vmatprep.subr.mxu0 0.0
    %2996 = vmatpush1.msra.mxu0 %v2699
    %2997 = vmatprep.subr.mxu0 0.0
    %2998 = vmatpush1.msra.mxu0 %v2700
    %2999 = vmatprep.subr.mxu0 0.0
    %3000 = vmatpush1.msra.mxu0 %v2701
    %3001 = vmatprep.subr.mxu0 0.0
    %3002 = vmatpush1.msra.mxu0 0.0
    %3003 = vmatprep.subr.mxu0 0.0
    %3004 = vmatpush1.msra.mxu0 0.0
    %3005 = vmatprep.subr.mxu0 0.0
    %3006 = vmatpush1.msra.mxu0 0.0
    %3007 = vmatprep.subr.mxu0 0.0
    %3008 = vmatpush1.msra.mxu0 0.0
    %3009 = vmatprep.subr.mxu0 0.0
    %3010 = vmatpush1.msra.mxu0 0.0
    %3011 = vmatprep.subr.mxu0 0.0
    %3012 = vmatpush1.msra.mxu0 0.0
    %3013 = vmatprep.subr.mxu0 0.0
    %3014 = vmatpush1.msra.mxu0 0.0
    %3015 = vmatprep.subr.mxu0 0.0
    %3016 = vmatpush1.msra.mxu0 0.0
    %3017 = vmatprep.subr.mxu0 0.0
    %3018 = vmatpush1.msra.mxu0 0.0
    %3019 = vmatprep.subr.mxu0 0.0
    %3020 = vmatpush1.msra.mxu0 0.0
    %3021 = vmatprep.subr.mxu0 0.0
    %3022 = vmatpush1.msra.mxu0 0.0
    %3023 = vmatprep.subr.mxu0 0.0
    %3024 = vmatpush1.msra.mxu0 0.0
    %3025 = vmatprep.subr.mxu0 0.0
    %3026 = vmatpush1.msra.mxu0 0.0
    %3027 = vmatprep.subr.mxu0 0.0
    %3028 = vmatpush1.msra.mxu0 0.0
    %3029 = vmatprep.subr.mxu0 0.0
    %3030 = vmatpush1.msra.mxu0 0.0
    %3031 = vmatprep.subr.mxu0 0.0
    %3032 = vmatpush1.msra.mxu0 0.0
    %3033 = vmatprep.subr.mxu0 0.0
    %3034 = vmatpush1.msra.mxu0 0.0
    %3035 = vmatprep.subr.mxu0 0.0
    %3036 = vmatpush1.msra.mxu0 0.0
    %3037 = vmatprep.subr.mxu0 0.0
    %3038 = vmatpush1.msra.mxu0 0.0
    %3039 = vmatprep.subr.mxu0 0.0
    %3040 = vmatpush1.msra.mxu0 0.0
    %3041 = vmatprep.subr.mxu0 0.0
    %3042 = vmatpush1.msra.mxu0 0.0
    %3043 = vmatprep.subr.mxu0 0.0
    %3044 = vmatpush1.msra.mxu0 0.0
    %3045 = vmatprep.subr.mxu0 0.0
    %3046 = vmatpush1.msra.mxu0 0.0
    %3047 = vmatprep.subr.mxu0 0.0
    %3048 = vmatpush1.msra.mxu0 0.0
    %3049 = vmatprep.subr.mxu0 0.0
    %3050 = vmatpush1.msra.mxu0 0.0
    %3051 = vmatprep.subr.mxu0 0.0
    %3052 = vmatpush1.msra.mxu0 0.0
    %3053 = vmatprep.subr.mxu0 0.0
    %3054 = vmatpush1.msra.mxu0 0.0
    %3055 = vmatprep.subr.mxu0 0.0
    %3056 = vmatpush1.msra.mxu0 0.0
    %3057 = vmatprep.mubr.f32.mxu0 0.0
    %3058 = vmatmul.mubr.f32.gmra.mrb[0].mxu0 %v2991
    %v3059 = vpop.f32.mrb[0].mxu0
    %v3060 = vadd.f32 0.0, %v3059
    %v3061 = vpop.f32.mrb[0].mxu0
    %3062 = vdwg.mxu0
    %v3063 = vadd.f32 %v2990, %v3060
    %v3064 = vxor.u32 %v3063, 2147483648
    %v3065 = vmul.f32 %v3064, 1.442695
    %v3066 = vpow.pop %v3065
    %v3067 = vadd.f32 %v3066, 1.0
    %v3068 = vrcp.pop %v3067
    %v3069 = vmul.f32 1.0, %v3068
    %v3070 = vtanh.pop %v3063
    %v3071 = vmul.f32 %v3069, %v2978
    %3073 = vrot.lane.b32.xlu0 %v3070, 64
    %v3074 = vpop.permute.xlu0 %3073
    %v3076 = vmul.f32 %v3069, %v3074
    %3078 = vrot.lane.b32.xlu0 %v3076, 32
    %v3079 = vpop.permute.xlu0 %3078
    %v3081 = vadd.f32 %v3071, %v3079
    %v3082 = vtanh.pop %v3081
    %3084 = vrot.lane.b32.xlu0 %v3082, 64
    %v3085 = vpop.permute.xlu0 %3084
    %v3087 = vmul.f32 %v3069, %v3085
    %3089 = vrot.lane.b32.xlu0 %v3087, 32
    %v3090 = vpop.permute.xlu0 %3089
    %3092 = vst.msk [vmem:[#allocation2 + $0x2] sm:$0x1] %vm155, %v3090
    %v3093 = vld [vmem:[#allocation3 + $0x3] sm:$0x1]
    %v3094 = vsel %vm52, %v3090, 0
    %3096 = vmatprep.subr.mxu0 0.0
    %3097 = vmatpush1.msra.mxu0 %v2698
    %3098 = vmatprep.subr.mxu0 0.0
    %3099 = vmatpush1.msra.mxu0 %v2699
    %3100 = vmatprep.subr.mxu0 0.0
    %3101 = vmatpush1.msra.mxu0 %v2700
    %3102 = vmatprep.subr.mxu0 0.0
    %3103 = vmatpush1.msra.mxu0 %v2701
    %3104 = vmatprep.subr.mxu0 0.0
    %3105 = vmatpush1.msra.mxu0 0.0
    %3106 = vmatprep.subr.mxu0 0.0
    %3107 = vmatpush1.msra.mxu0 0.0
    %3108 = vmatprep.subr.mxu0 0.0
    %3109 = vmatpush1.msra.mxu0 0.0
    %3110 = vmatprep.subr.mxu0 0.0
    %3111 = vmatpush1.msra.mxu0 0.0
    %3112 = vmatprep.subr.mxu0 0.0
    %3113 = vmatpush1.msra.mxu0 0.0
    %3114 = vmatprep.subr.mxu0 0.0
    %3115 = vmatpush1.msra.mxu0 0.0
    %3116 = vmatprep.subr.mxu0 0.0
    %3117 = vmatpush1.msra.mxu0 0.0
    %3118 = vmatprep.subr.mxu0 0.0
    %3119 = vmatpush1.msra.mxu0 0.0
    %3120 = vmatprep.subr.mxu0 0.0
    %3121 = vmatpush1.msra.mxu0 0.0
    %3122 = vmatprep.subr.mxu0 0.0
    %3123 = vmatpush1.msra.mxu0 0.0
    %3124 = vmatprep.subr.mxu0 0.0
    %3125 = vmatpush1.msra.mxu0 0.0
    %3126 = vmatprep.subr.mxu0 0.0
    %3127 = vmatpush1.msra.mxu0 0.0
    %3128 = vmatprep.subr.mxu0 0.0
    %3129 = vmatpush1.msra.mxu0 0.0
    %3130 = vmatprep.subr.mxu0 0.0
    %3131 = vmatpush1.msra.mxu0 0.0
    %3132 = vmatprep.subr.mxu0 0.0
    %3133 = vmatpush1.msra.mxu0 0.0
    %3134 = vmatprep.subr.mxu0 0.0
    %3135 = vmatpush1.msra.mxu0 0.0
    %3136 = vmatprep.subr.mxu0 0.0
    %3137 = vmatpush1.msra.mxu0 0.0
    %3138 = vmatprep.subr.mxu0 0.0
    %3139 = vmatpush1.msra.mxu0 0.0
    %3140 = vmatprep.subr.mxu0 0.0
    %3141 = vmatpush1.msra.mxu0 0.0
    %3142 = vmatprep.subr.mxu0 0.0
    %3143 = vmatpush1.msra.mxu0 0.0
    %3144 = vmatprep.subr.mxu0 0.0
    %3145 = vmatpush1.msra.mxu0 0.0
    %3146 = vmatprep.subr.mxu0 0.0
    %3147 = vmatpush1.msra.mxu0 0.0
    %3148 = vmatprep.subr.mxu0 0.0
    %3149 = vmatpush1.msra.mxu0 0.0
    %3150 = vmatprep.subr.mxu0 0.0
    %3151 = vmatpush1.msra.mxu0 0.0
    %3152 = vmatprep.subr.mxu0 0.0
    %3153 = vmatpush1.msra.mxu0 0.0
    %3154 = vmatprep.subr.mxu0 0.0
    %3155 = vmatpush1.msra.mxu0 0.0
    %3156 = vmatprep.subr.mxu0 0.0
    %3157 = vmatpush1.msra.mxu0 0.0
    %3158 = vmatprep.subr.mxu0 0.0
    %3159 = vmatpush1.msra.mxu0 0.0
    %3160 = vmatprep.mubr.f32.mxu0 0.0
    %3161 = vmatmul.mubr.f32.gmra.mrb[0].mxu0 %v3094
    %v3162 = vpop.f32.mrb[0].mxu0
    %v3163 = vadd.f32 0.0, %v3162
    %v3164 = vpop.f32.mrb[0].mxu0
    %3165 = vdwg.mxu0
    %v3166 = vadd.f32 %v3093, %v3163
    %v3167 = vxor.u32 %v3166, 2147483648
    %v3168 = vmul.f32 %v3167, 1.442695
    %v3169 = vpow.pop %v3168
    %v3170 = vadd.f32 %v3169, 1.0
    %v3171 = vrcp.pop %v3170
    %v3172 = vmul.f32 1.0, %v3171
    %v3173 = vtanh.pop %v3166
    %v3174 = vmul.f32 %v3172, %v3081
    %3176 = vrot.lane.b32.xlu0 %v3173, 64
    %v3177 = vpop.permute.xlu0 %3176
    %v3179 = vmul.f32 %v3172, %v3177
    %3181 = vrot.lane.b32.xlu0 %v3179, 32
    %v3182 = vpop.permute.xlu0 %3181
    %v3184 = vadd.f32 %v3174, %v3182
    %v3185 = vtanh.pop %v3184
    %3187 = vrot.lane.b32.xlu0 %v3185, 64
    %v3188 = vpop.permute.xlu0 %3187
    %v3190 = vmul.f32 %v3172, %v3188
    %3192 = vrot.lane.b32.xlu0 %v3190, 32
    %v3193 = vpop.permute.xlu0 %3192
    %3195 = vst.msk [vmem:[#allocation2 + $0x3] sm:$0x1] %vm155, %v3193
    %v3196 = vld [vmem:[#allocation3 + $0x4] sm:$0x1]
    %v3197 = vsel %vm52, %v3193, 0
    %3199 = vmatprep.subr.mxu0 0.0
    %3200 = vmatpush1.msra.mxu0 %v2698
    %3201 = vmatprep.subr.mxu0 0.0
    %3202 = vmatpush1.msra.mxu0 %v2699
    %3203 = vmatprep.subr.mxu0 0.0
    %3204 = vmatpush1.msra.mxu0 %v2700
    %3205 = vmatprep.subr.mxu0 0.0
    %3206 = vmatpush1.msra.mxu0 %v2701
    %3207 = vmatprep.subr.mxu0 0.0
    %3208 = vmatpush1.msra.mxu0 0.0
    %3209 = vmatprep.subr.mxu0 0.0
    %3210 = vmatpush1.msra.mxu0 0.0
    %3211 = vmatprep.subr.mxu0 0.0
    %3212 = vmatpush1.msra.mxu0 0.0
    %3213 = vmatprep.subr.mxu0 0.0
    %3214 = vmatpush1.msra.mxu0 0.0
    %3215 = vmatprep.subr.mxu0 0.0
    %3216 = vmatpush1.msra.mxu0 0.0
    %3217 = vmatprep.subr.mxu0 0.0
    %3218 = vmatpush1.msra.mxu0 0.0
    %3219 = vmatprep.subr.mxu0 0.0
    %3220 = vmatpush1.msra.mxu0 0.0
    %3221 = vmatprep.subr.mxu0 0.0
    %3222 = vmatpush1.msra.mxu0 0.0
    %3223 = vmatprep.subr.mxu0 0.0
    %3224 = vmatpush1.msra.mxu0 0.0
    %3225 = vmatprep.subr.mxu0 0.0
    %3226 = vmatpush1.msra.mxu0 0.0
    %3227 = vmatprep.subr.mxu0 0.0
    %3228 = vmatpush1.msra.mxu0 0.0
    %3229 = vmatprep.subr.mxu0 0.0
    %3230 = vmatpush1.msra.mxu0 0.0
    %3231 = vmatprep.subr.mxu0 0.0
    %3232 = vmatpush1.msra.mxu0 0.0
    %3233 = vmatprep.subr.mxu0 0.0
    %3234 = vmatpush1.msra.mxu0 0.0
    %3235 = vmatprep.subr.mxu0 0.0
    %3236 = vmatpush1.msra.mxu0 0.0
    %3237 = vmatprep.subr.mxu0 0.0
    %3238 = vmatpush1.msra.mxu0 0.0
    %3239 = vmatprep.subr.mxu0 0.0
    %3240 = vmatpush1.msra.mxu0 0.0
    %3241 = vmatprep.subr.mxu0 0.0
    %3242 = vmatpush1.msra.mxu0 0.0
    %3243 = vmatprep.subr.mxu0 0.0
    %3244 = vmatpush1.msra.mxu0 0.0
    %3245 = vmatprep.subr.mxu0 0.0
    %3246 = vmatpush1.msra.mxu0 0.0
    %3247 = vmatprep.subr.mxu0 0.0
    %3248 = vmatpush1.msra.mxu0 0.0
    %3249 = vmatprep.subr.mxu0 0.0
    %3250 = vmatpush1.msra.mxu0 0.0
    %3251 = vmatprep.subr.mxu0 0.0
    %3252 = vmatpush1.msra.mxu0 0.0
    %3253 = vmatprep.subr.mxu0 0.0
    %3254 = vmatpush1.msra.mxu0 0.0
    %3255 = vmatprep.subr.mxu0 0.0
    %3256 = vmatpush1.msra.mxu0 0.0
    %3257 = vmatprep.subr.mxu0 0.0
    %3258 = vmatpush1.msra.mxu0 0.0
    %3259 = vmatprep.subr.mxu0 0.0
    %3260 = vmatpush1.msra.mxu0 0.0
    %3261 = vmatprep.subr.mxu0 0.0
    %3262 = vmatpush1.msra.mxu0 0.0
    %3263 = vmatprep.mubr.f32.mxu0 0.0
    %3264 = vmatmul.mubr.f32.gmra.mrb[0].mxu0 %v3197
    %v3265 = vpop.f32.mrb[0].mxu0
    %v3266 = vadd.f32 0.0, %v3265
    %v3267 = vpop.f32.mrb[0].mxu0
    %3268 = vdwg.mxu0
    %v3269 = vadd.f32 %v3196, %v3266
    %v3270 = vxor.u32 %v3269, 2147483648
    %v3271 = vmul.f32 %v3270, 1.442695
    %v3272 = vpow.pop %v3271
    %v3273 = vadd.f32 %v3272, 1.0
    %v3274 = vrcp.pop %v3273
    %v3275 = vmul.f32 1.0, %v3274
    %v3276 = vtanh.pop %v3269
    %v3277 = vmul.f32 %v3275, %v3184
    %3279 = vrot.lane.b32.xlu0 %v3276, 64
    %v3280 = vpop.permute.xlu0 %3279
    %v3282 = vmul.f32 %v3275, %v3280
    %3284 = vrot.lane.b32.xlu0 %v3282, 32
    %v3285 = vpop.permute.xlu0 %3284
    %v3287 = vadd.f32 %v3277, %v3285
    %v3288 = vtanh.pop %v3287
    %3290 = vrot.lane.b32.xlu0 %v3288, 64
    %v3291 = vpop.permute.xlu0 %3290
    %v3293 = vmul.f32 %v3275, %v3291
    %3295 = vrot.lane.b32.xlu0 %v3293, 32
    %v3296 = vpop.permute.xlu0 %3295
    %3298 = vst.msk [vmem:[#allocation2 + $0x4] sm:$0x1] %vm155, %v3296
    %v3299 = vld [vmem:[#allocation3 + $0x5] sm:$0x1]
    %v3300 = vsel %vm52, %v3296, 0
    %3302 = vmatprep.subr.mxu0 0.0
    %3303 = vmatpush1.msra.mxu0 %v2698
    %3304 = vmatprep.subr.mxu0 0.0
    %3305 = vmatpush1.msra.mxu0 %v2699
    %3306 = vmatprep.subr.mxu0 0.0
    %3307 = vmatpush1.msra.mxu0 %v2700
    %3308 = vmatprep.subr.mxu0 0.0
    %3309 = vmatpush1.msra.mxu0 %v2701
    %3310 = vmatprep.subr.mxu0 0.0
    %3311 = vmatpush1.msra.mxu0 0.0
    %3312 = vmatprep.subr.mxu0 0.0
    %3313 = vmatpush1.msra.mxu0 0.0
    %3314 = vmatprep.subr.mxu0 0.0
    %3315 = vmatpush1.msra.mxu0 0.0
    %3316 = vmatprep.subr.mxu0 0.0
    %3317 = vmatpush1.msra.mxu0 0.0
    %3318 = vmatprep.subr.mxu0 0.0
    %3319 = vmatpush1.msra.mxu0 0.0
    %3320 = vmatprep.subr.mxu0 0.0
    %3321 = vmatpush1.msra.mxu0 0.0
    %3322 = vmatprep.subr.mxu0 0.0
    %3323 = vmatpush1.msra.mxu0 0.0
    %3324 = vmatprep.subr.mxu0 0.0
    %3325 = vmatpush1.msra.mxu0 0.0
    %3326 = vmatprep.subr.mxu0 0.0
    %3327 = vmatpush1.msra.mxu0 0.0
    %3328 = vmatprep.subr.mxu0 0.0
    %3329 = vmatpush1.msra.mxu0 0.0
    %3330 = vmatprep.subr.mxu0 0.0
    %3331 = vmatpush1.msra.mxu0 0.0
    %3332 = vmatprep.subr.mxu0 0.0
    %3333 = vmatpush1.msra.mxu0 0.0
    %3334 = vmatprep.subr.mxu0 0.0
    %3335 = vmatpush1.msra.mxu0 0.0
    %3336 = vmatprep.subr.mxu0 0.0
    %3337 = vmatpush1.msra.mxu0 0.0
    %3338 = vmatprep.subr.mxu0 0.0
    %3339 = vmatpush1.msra.mxu0 0.0
    %3340 = vmatprep.subr.mxu0 0.0
    %3341 = vmatpush1.msra.mxu0 0.0
    %3342 = vmatprep.subr.mxu0 0.0
    %3343 = vmatpush1.msra.mxu0 0.0
    %3344 = vmatprep.subr.mxu0 0.0
    %3345 = vmatpush1.msra.mxu0 0.0
    %3346 = vmatprep.subr.mxu0 0.0
    %3347 = vmatpush1.msra.mxu0 0.0
    %3348 = vmatprep.subr.mxu0 0.0
    %3349 = vmatpush1.msra.mxu0 0.0
    %3350 = vmatprep.subr.mxu0 0.0
    %3351 = vmatpush1.msra.mxu0 0.0
    %3352 = vmatprep.subr.mxu0 0.0
    %3353 = vmatpush1.msra.mxu0 0.0
    %3354 = vmatprep.subr.mxu0 0.0
    %3355 = vmatpush1.msra.mxu0 0.0
    %3356 = vmatprep.subr.mxu0 0.0
    %3357 = vmatpush1.msra.mxu0 0.0
    %3358 = vmatprep.subr.mxu0 0.0
    %3359 = vmatpush1.msra.mxu0 0.0
    %3360 = vmatprep.subr.mxu0 0.0
    %3361 = vmatpush1.msra.mxu0 0.0
    %3362 = vmatprep.subr.mxu0 0.0
    %3363 = vmatpush1.msra.mxu0 0.0
    %3364 = vmatprep.subr.mxu0 0.0
    %3365 = vmatpush1.msra.mxu0 0.0
    %3366 = vmatprep.mubr.f32.mxu0 0.0
    %3367 = vmatmul.mubr.f32.gmra.mrb[0].mxu0 %v3300
    %v3368 = vpop.f32.mrb[0].mxu0
    %v3369 = vadd.f32 0.0, %v3368
    %v3370 = vpop.f32.mrb[0].mxu0
    %3371 = vdwg.mxu0
    %v3372 = vadd.f32 %v3299, %v3369
    %v3373 = vxor.u32 %v3372, 2147483648
    %v3374 = vmul.f32 %v3373, 1.442695
    %v3375 = vpow.pop %v3374
    %v3376 = vadd.f32 %v3375, 1.0
    %v3377 = vrcp.pop %v3376
    %v3378 = vmul.f32 1.0, %v3377
    %v3379 = vtanh.pop %v3372
    %v3380 = vmul.f32 %v3378, %v3287
    %3382 = vrot.lane.b32.xlu0 %v3379, 64
    %v3383 = vpop.permute.xlu0 %3382
    %v3385 = vmul.f32 %v3378, %v3383
    %3387 = vrot.lane.b32.xlu0 %v3385, 32
    %v3388 = vpop.permute.xlu0 %3387
    %v3390 = vadd.f32 %v3380, %v3388
    %v3391 = vtanh.pop %v3390
    %3393 = vrot.lane.b32.xlu0 %v3391, 64
    %v3394 = vpop.permute.xlu0 %3393
    %v3396 = vmul.f32 %v3378, %v3394
    %3398 = vrot.lane.b32.xlu0 %v3396, 32
    %v3399 = vpop.permute.xlu0 %3398
    %3401 = vst.msk [vmem:[#allocation2 + $0x5] sm:$0x1] %vm155, %v3399
    %v3402 = vld [vmem:[#allocation3 + $0x6] sm:$0x1]
    %v3403 = vsel %vm52, %v3399, 0
    %3405 = vmatprep.subr.mxu0 0.0
    %3406 = vmatpush1.msra.mxu0 %v2698
    %3407 = vmatprep.subr.mxu0 0.0
    %3408 = vmatpush1.msra.mxu0 %v2699
    %3409 = vmatprep.subr.mxu0 0.0
    %3410 = vmatpush1.msra.mxu0 %v2700
    %3411 = vmatprep.subr.mxu0 0.0
    %3412 = vmatpush1.msra.mxu0 %v2701
    %3413 = vmatprep.subr.mxu0 0.0
    %3414 = vmatpush1.msra.mxu0 0.0
    %3415 = vmatprep.subr.mxu0 0.0
    %3416 = vmatpush1.msra.mxu0 0.0
    %3417 = vmatprep.subr.mxu0 0.0
    %3418 = vmatpush1.msra.mxu0 0.0
    %3419 = vmatprep.subr.mxu0 0.0
    %3420 = vmatpush1.msra.mxu0 0.0
    %3421 = vmatprep.subr.mxu0 0.0
    %3422 = vmatpush1.msra.mxu0 0.0
    %3423 = vmatprep.subr.mxu0 0.0
    %3424 = vmatpush1.msra.mxu0 0.0
    %3425 = vmatprep.subr.mxu0 0.0
    %3426 = vmatpush1.msra.mxu0 0.0
    %3427 = vmatprep.subr.mxu0 0.0
    %3428 = vmatpush1.msra.mxu0 0.0
    %3429 = vmatprep.subr.mxu0 0.0
    %3430 = vmatpush1.msra.mxu0 0.0
    %3431 = vmatprep.subr.mxu0 0.0
    %3432 = vmatpush1.msra.mxu0 0.0
    %3433 = vmatprep.subr.mxu0 0.0
    %3434 = vmatpush1.msra.mxu0 0.0
    %3435 = vmatprep.subr.mxu0 0.0
    %3436 = vmatpush1.msra.mxu0 0.0
    %3437 = vmatprep.subr.mxu0 0.0
    %3438 = vmatpush1.msra.mxu0 0.0
    %3439 = vmatprep.subr.mxu0 0.0
    %3440 = vmatpush1.msra.mxu0 0.0
    %3441 = vmatprep.subr.mxu0 0.0
    %3442 = vmatpush1.msra.mxu0 0.0
    %3443 = vmatprep.subr.mxu0 0.0
    %3444 = vmatpush1.msra.mxu0 0.0
    %3445 = vmatprep.subr.mxu0 0.0
    %3446 = vmatpush1.msra.mxu0 0.0
    %3447 = vmatprep.subr.mxu0 0.0
    %3448 = vmatpush1.msra.mxu0 0.0
    %3449 = vmatprep.subr.mxu0 0.0
    %3450 = vmatpush1.msra.mxu0 0.0
    %3451 = vmatprep.subr.mxu0 0.0
    %3452 = vmatpush1.msra.mxu0 0.0
    %3453 = vmatprep.subr.mxu0 0.0
    %3454 = vmatpush1.msra.mxu0 0.0
    %3455 = vmatprep.subr.mxu0 0.0
    %3456 = vmatpush1.msra.mxu0 0.0
    %3457 = vmatprep.subr.mxu0 0.0
    %3458 = vmatpush1.msra.mxu0 0.0
    %3459 = vmatprep.subr.mxu0 0.0
    %3460 = vmatpush1.msra.mxu0 0.0
    %3461 = vmatprep.subr.mxu0 0.0
    %3462 = vmatpush1.msra.mxu0 0.0
    %3463 = vmatprep.subr.mxu0 0.0
    %3464 = vmatpush1.msra.mxu0 0.0
    %3465 = vmatprep.subr.mxu0 0.0
    %3466 = vmatpush1.msra.mxu0 0.0
    %3467 = vmatprep.subr.mxu0 0.0
    %3468 = vmatpush1.msra.mxu0 0.0
    %3469 = vmatprep.mubr.f32.mxu0 0.0
    %3470 = vmatmul.mubr.f32.gmra.mrb[0].mxu0 %v3403
    %v3471 = vpop.f32.mrb[0].mxu0
    %v3472 = vadd.f32 0.0, %v3471
    %v3473 = vpop.f32.mrb[0].mxu0
    %3474 = vdwg.mxu0
    %v3475 = vadd.f32 %v3402, %v3472
    %v3476 = vxor.u32 %v3475, 2147483648
    %v3477 = vmul.f32 %v3476, 1.442695
    %v3478 = vpow.pop %v3477
    %v3479 = vadd.f32 %v3478, 1.0
    %v3480 = vrcp.pop %v3479
    %v3481 = vmul.f32 1.0, %v3480
    %v3482 = vtanh.pop %v3475
    %v3483 = vmul.f32 %v3481, %v3390
    %3485 = vrot.lane.b32.xlu0 %v3482, 64
    %v3486 = vpop.permute.xlu0 %3485
    %v3488 = vmul.f32 %v3481, %v3486
    %3490 = vrot.lane.b32.xlu0 %v3488, 32
    %v3491 = vpop.permute.xlu0 %3490
    %v3493 = vadd.f32 %v3483, %v3491
    %v3494 = vtanh.pop %v3493
    %3496 = vrot.lane.b32.xlu0 %v3494, 64
    %v3497 = vpop.permute.xlu0 %3496
    %v3499 = vmul.f32 %v3481, %v3497
    %3501 = vrot.lane.b32.xlu0 %v3499, 32
    %v3502 = vpop.permute.xlu0 %3501
    %3504 = vst.msk [vmem:[#allocation2 + $0x6] sm:$0x1] %vm155, %v3502
    %v3505 = vld [vmem:[#allocation3 + $0x7] sm:$0x1]
    %v3506 = vsel %vm52, %v3502, 0
    %3508 = vmatprep.subr.mxu0 0.0
    %3509 = vmatpush1.msra.mxu0 %v2698
    %3510 = vmatprep.subr.mxu0 0.0
    %3511 = vmatpush1.msra.mxu0 %v2699
    %3512 = vmatprep.subr.mxu0 0.0
    %3513 = vmatpush1.msra.mxu0 %v2700
    %3514 = vmatprep.subr.mxu0 0.0
    %3515 = vmatpush1.msra.mxu0 %v2701
    %3516 = vmatprep.subr.mxu0 0.0
    %3517 = vmatpush1.msra.mxu0 0.0
    %3518 = vmatprep.subr.mxu0 0.0
    %3519 = vmatpush1.msra.mxu0 0.0
    %3520 = vmatprep.subr.mxu0 0.0
    %3521 = vmatpush1.msra.mxu0 0.0
    %3522 = vmatprep.subr.mxu0 0.0
    %3523 = vmatpush1.msra.mxu0 0.0
    %3524 = vmatprep.subr.mxu0 0.0
    %3525 = vmatpush1.msra.mxu0 0.0
    %3526 = vmatprep.subr.mxu0 0.0
    %3527 = vmatpush1.msra.mxu0 0.0
    %3528 = vmatprep.subr.mxu0 0.0
    %3529 = vmatpush1.msra.mxu0 0.0
    %3530 = vmatprep.subr.mxu0 0.0
    %3531 = vmatpush1.msra.mxu0 0.0
    %3532 = vmatprep.subr.mxu0 0.0
    %3533 = vmatpush1.msra.mxu0 0.0
    %3534 = vmatprep.subr.mxu0 0.0
    %3535 = vmatpush1.msra.mxu0 0.0
    %3536 = vmatprep.subr.mxu0 0.0
    %3537 = vmatpush1.msra.mxu0 0.0
    %3538 = vmatprep.subr.mxu0 0.0
    %3539 = vmatpush1.msra.mxu0 0.0
    %3540 = vmatprep.subr.mxu0 0.0
    %3541 = vmatpush1.msra.mxu0 0.0
    %3542 = vmatprep.subr.mxu0 0.0
    %3543 = vmatpush1.msra.mxu0 0.0
    %3544 = vmatprep.subr.mxu0 0.0
    %3545 = vmatpush1.msra.mxu0 0.0
    %3546 = vmatprep.subr.mxu0 0.0
    %3547 = vmatpush1.msra.mxu0 0.0
    %3548 = vmatprep.subr.mxu0 0.0
    %3549 = vmatpush1.msra.mxu0 0.0
    %3550 = vmatprep.subr.mxu0 0.0
    %3551 = vmatpush1.msra.mxu0 0.0
    %3552 = vmatprep.subr.mxu0 0.0
    %3553 = vmatpush1.msra.mxu0 0.0
    %3554 = vmatprep.subr.mxu0 0.0
    %3555 = vmatpush1.msra.mxu0 0.0
    %3556 = vmatprep.subr.mxu0 0.0
    %3557 = vmatpush1.msra.mxu0 0.0
    %3558 = vmatprep.subr.mxu0 0.0
    %3559 = vmatpush1.msra.mxu0 0.0
    %3560 = vmatprep.subr.mxu0 0.0
    %3561 = vmatpush1.msra.mxu0 0.0
    %3562 = vmatprep.subr.mxu0 0.0
    %3563 = vmatpush1.msra.mxu0 0.0
    %3564 = vmatprep.subr.mxu0 0.0
    %3565 = vmatpush1.msra.mxu0 0.0
    %3566 = vmatprep.subr.mxu0 0.0
    %3567 = vmatpush1.msra.mxu0 0.0
    %3568 = vmatprep.subr.mxu0 0.0
    %3569 = vmatpush1.msra.mxu0 0.0
    %3570 = vmatprep.subr.mxu0 0.0
    %3571 = vmatpush1.msra.mxu0 0.0
    %3572 = vmatprep.mubr.f32.mxu0 0.0
    %3573 = vmatmul.mubr.f32.gmra.mrb[0].mxu0 %v3506
    %v3574 = vpop.f32.mrb[0].mxu0
    %v3575 = vadd.f32 0.0, %v3574
    %v3576 = vpop.f32.mrb[0].mxu0
    %3577 = vdwg.mxu0
    %v3578 = vadd.f32 %v3505, %v3575
    %v3579 = vxor.u32 %v3578, 2147483648
    %v3580 = vmul.f32 %v3579, 1.442695
    %v3581 = vpow.pop %v3580
    %v3582 = vadd.f32 %v3581, 1.0
    %v3583 = vrcp.pop %v3582
    %v3584 = vmul.f32 1.0, %v3583
    %v3585 = vtanh.pop %v3578
    %v3586 = vmul.f32 %v3584, %v3493
    %3588 = vrot.lane.b32.xlu0 %v3585, 64
    %v3589 = vpop.permute.xlu0 %3588
    %v3591 = vmul.f32 %v3584, %v3589
    %3593 = vrot.lane.b32.xlu0 %v3591, 32
    %v3594 = vpop.permute.xlu0 %3593
    %v3596 = vadd.f32 %v3586, %v3594
    %v3597 = vtanh.pop %v3596
    %3599 = vrot.lane.b32.xlu0 %v3597, 64
    %v3600 = vpop.permute.xlu0 %3599
    %v3602 = vmul.f32 %v3584, %v3600
    %3604 = vrot.lane.b32.xlu0 %v3602, 32
    %v3605 = vpop.permute.xlu0 %3604
    %3607 = vst.msk [vmem:[#allocation2 + $0x7] sm:$0x1] %vm155, %v3605
    %v3608 = vld [vmem:[%s2] sm:$0xff]
    %v3609 = vld [vmem:[%s2 + $0x8] sm:$0xff]
    %v3610 = vld [vmem:[%s2 + $0x10] sm:$0xff]
    %v3611 = vld [vmem:[%s2 + $0x18] sm:$0xff]
    %v3612 = vld [vmem:[%s2 + $0x20] sm:$0x1]
    %v3613 = vld [vmem:[#allocation2] sm:$0xff]
    %v3614 = vlaneseq
    %v3615 = vshrl.u32 %v3614, 7
    %v3616 = vsub.s32 0, %v3615
    %v3617 = vrot.slane %v3612, %v3616
    %v3619 = vsel %vm52, %v3613, 0
    %3621 = vmatprep.subr.mxu0 0.0
    %3622 = vmatpush1.msra.mxu0 %v3608
    %3623 = vmatprep.subr.mxu0 0.0
    %3624 = vmatpush1.msra.mxu0 %v3609
    %3625 = vmatprep.subr.mxu0 0.0
    %3626 = vmatpush1.msra.mxu0 %v3610
    %3627 = vmatprep.subr.mxu0 0.0
    %3628 = vmatpush1.msra.mxu0 %v3611
    %3629 = vmatprep.subr.mxu0 0.0
    %3630 = vmatpush1.msra.mxu0 0.0
    %3631 = vmatprep.subr.mxu0 0.0
    %3632 = vmatpush1.msra.mxu0 0.0
    %3633 = vmatprep.subr.mxu0 0.0
    %3634 = vmatpush1.msra.mxu0 0.0
    %3635 = vmatprep.subr.mxu0 0.0
    %3636 = vmatpush1.msra.mxu0 0.0
    %3637 = vmatprep.subr.mxu0 0.0
    %3638 = vmatpush1.msra.mxu0 0.0
    %3639 = vmatprep.subr.mxu0 0.0
    %3640 = vmatpush1.msra.mxu0 0.0
    %3641 = vmatprep.subr.mxu0 0.0
    %3642 = vmatpush1.msra.mxu0 0.0
    %3643 = vmatprep.subr.mxu0 0.0
    %3644 = vmatpush1.msra.mxu0 0.0
    %3645 = vmatprep.subr.mxu0 0.0
    %3646 = vmatpush1.msra.mxu0 0.0
    %3647 = vmatprep.subr.mxu0 0.0
    %3648 = vmatpush1.msra.mxu0 0.0
    %3649 = vmatprep.subr.mxu0 0.0
    %3650 = vmatpush1.msra.mxu0 0.0
    %3651 = vmatprep.subr.mxu0 0.0
    %3652 = vmatpush1.msra.mxu0 0.0
    %3653 = vmatprep.subr.mxu0 0.0
    %3654 = vmatpush1.msra.mxu0 0.0
    %3655 = vmatprep.subr.mxu0 0.0
    %3656 = vmatpush1.msra.mxu0 0.0
    %3657 = vmatprep.subr.mxu0 0.0
    %3658 = vmatpush1.msra.mxu0 0.0
    %3659 = vmatprep.subr.mxu0 0.0
    %3660 = vmatpush1.msra.mxu0 0.0
    %3661 = vmatprep.subr.mxu0 0.0
    %3662 = vmatpush1.msra.mxu0 0.0
    %3663 = vmatprep.subr.mxu0 0.0
    %3664 = vmatpush1.msra.mxu0 0.0
    %3665 = vmatprep.subr.mxu0 0.0
    %3666 = vmatpush1.msra.mxu0 0.0
    %3667 = vmatprep.subr.mxu0 0.0
    %3668 = vmatpush1.msra.mxu0 0.0
    %3669 = vmatprep.subr.mxu0 0.0
    %3670 = vmatpush1.msra.mxu0 0.0
    %3671 = vmatprep.subr.mxu0 0.0
    %3672 = vmatpush1.msra.mxu0 0.0
    %3673 = vmatprep.subr.mxu0 0.0
    %3674 = vmatpush1.msra.mxu0 0.0
    %3675 = vmatprep.subr.mxu0 0.0
    %3676 = vmatpush1.msra.mxu0 0.0
    %3677 = vmatprep.subr.mxu0 0.0
    %3678 = vmatpush1.msra.mxu0 0.0
    %3679 = vmatprep.subr.mxu0 0.0
    %3680 = vmatpush1.msra.mxu0 0.0
    %3681 = vmatprep.subr.mxu0 0.0
    %3682 = vmatpush1.msra.mxu0 0.0
    %3683 = vmatprep.subr.mxu0 0.0
    %3684 = vmatpush1.msra.mxu0 0.0
    %3685 = vmatprep.mubr.f32.mxu0 0.0
    %3686 = vmatmul.mubr.f32.gmra.mrb[0].mxu0 %v3619
    %v3687 = vpop.f32.mrb[0].mxu0
    %v3688 = vadd.f32 %v3617, %v3687
    %v3689 = vpop.f32.mrb[0].mxu0
    %3690 = vdwg.mxu0
    %vm3691 = vcmask 7168
    %3692 = vst.msk [vmem:[%s3] sm:$0xff] %vm3691, %v3688
    // Predicated region
    $region18: #{lstm_forward.1} parent=1 // pred_check
      _
    $region19: #{lstm_forward.1} parent=1 // pred_check_branch
      %3694 = sbr.rel (0) target = $region21
    $region20: #{lstm_forward.1} parent=1 // pred_region
      _
    $region21: #{lstm_forward.1} parent=1 // pred_fallthru
      _
    // Predicated region
    $region22: #{lstm_forward.1} parent=1 // pred_check
      _
    $region23: #{lstm_forward.1} parent=1 // pred_check_branch
      %3696 = sbr.rel (0) target = $region25
    $region24: #{lstm_forward.1} parent=1 // pred_region
      _
    $region25: #{lstm_forward.1} parent=1 // pred_fallthru
      _
    %3697 = vsyncpa [#allocation5], 1

</llo_original>
